<compile_context>
chip_gen: v7x
topology: tpu7x:2x2x1
jax: 0.10.0
libtpu: 0.0.40
codegen_flags: <defaults>
</compile_context>

<pallas_src>
import functools

import numpy as np
import jax
import jax.numpy as jnp
from jax.experimental import pallas as pl
from jax.experimental.pallas import tpu as pltpu


_M2P = 40   # conv2: 36 output positions padded to 40 (multiple of 8)
_M3 = 16    # conv3: 16 output positions (already a multiple of 8)


# ------------------------------ fused kernel -------------------------------- #

def _qnet_kernel(p1_ref, w1_ref, b1_ref,
                 s2_ref, w2_ref, b2_ref,
                 s3_ref, w3_ref, b3_ref,
                 f1w_ref, f1b_ref, f2w_ref, f2b_ref, f3w_ref, f3b_ref,
                 o_ref):
    """One sample per grid step; all intermediates stay in vregs/VMEM."""
    f32, bf16 = jnp.float32, jnp.bfloat16

    # ---- conv1: im2col (wrapper) @ weight, bias+ReLU in f32 ----------------
    h1 = jnp.dot(p1_ref[0], w1_ref[...], preferred_element_type=f32)
    h1 = jnp.maximum(h1 + b1_ref[...], 0.0).astype(bf16)          # (196, 16)

    # ---- conv2: per-sample 0/1 spatial gather (K=196) then ONE K=256 dot ---
    p2 = jnp.dot(s2_ref[...], h1, preferred_element_type=f32).astype(bf16)   # (640,16)
    im2 = jnp.concatenate(
        [p2[k * _M2P:(k + 1) * _M2P, :] for k in range(16)], axis=1)          # (40,256)
    h2 = jnp.dot(im2, w2_ref[...], preferred_element_type=f32)
    h2 = jnp.maximum(h2 + b2_ref[...], 0.0).astype(bf16)          # (40, 32); rows>=36 pad

    # ---- conv3: same structure, 9 taps fused into one K=288 matmul ---------
    p3 = jnp.dot(s3_ref[...], h2, preferred_element_type=f32).astype(bf16)   # (144,32)
    im3 = jnp.concatenate(
        [p3[k * _M3:(k + 1) * _M3, :] for k in range(9)], axis=1)             # (16,288)
    h3 = jnp.dot(im3, w3_ref[...], preferred_element_type=f32)
    h3 = jnp.maximum(h3 + b3_ref[...], 0.0).astype(bf16)          # (16, 32)

    # ---- flatten (NCHW order folded into the pre-permuted fc1 weight) ------
    # row p of h3 -> lanes [32p, 32p+32); fc1 weight rows are ordered p*32+c.
    flat = jnp.concatenate([h3[p:p + 1, :] for p in range(16)], axis=1)       # (1, 512)

    # ---- FC1 / FC2 / FC3 (K=512 / 64 / 64), bias+ReLU in f32 ---------------
    h4 = jnp.dot(flat, f1w_ref[...], preferred_element_type=f32) + f1b_ref[...]
    h4 = jnp.maximum(h4, 0.0).astype(bf16)                         # (1, 64)
    h5 = jnp.dot(h4, f2w_ref[...], preferred_element_type=f32) + f2b_ref[...]
    h5 = jnp.maximum(h5, 0.0).astype(bf16)                         # (1, 64)
    q = jnp.dot(h5, f3w_ref[...], preferred_element_type=f32) + f3b_ref[...]
    o_ref[0] = q.astype(o_ref.dtype)                               # (1, 128)


# ------------------- one-time layout / constant preparation ------------------ #

def prepare_kernel_params(params):
    """Precompute per-SAMPLE selection matrices and bf16 weight layouts.

    All constants are O(1) in batch size and are reused for every call.
    """
    bf16, f32 = jnp.bfloat16, jnp.float32
    kp = {}

    # conv1 im2col gather indices (single XLA gather in the wrapper) and
    # weight in (ki*8+kj, cout) layout.
    y1 = np.arange(14); x1 = np.arange(14)
    ki = np.arange(8); kj = np.arange(8)
    rows = 4 * y1[:, None, None, None] + ki[None, None, :, None]
    cols = 4 * x1[None, :, None, None] + kj[None, None, None, :]
    kp["idx1"] = jnp.asarray((rows * 60 + cols).reshape(196, 64), jnp.int32)
    kp["w1m"] = jnp.transpose(params["c1w"], (2, 3, 1, 0)).reshape(64, 16).astype(bf16)
    kp["b1"] = params["c1b"].reshape(1, 16).astype(f32)

    # conv2: per-sample tap-major selection (16 taps x 40 padded rows) and
    # tap-concatenated weight (256, 32) with row index (i*4+j)*16 + cin.
    s2 = np.zeros((16 * _M2P, 196), np.float32)
    for i in range(4):
        for j in range(4):
            k = i * 4 + j
            for y2 in range(6):
                for x2 in range(6):
                    s2[k * _M2P + y2 * 6 + x2, (2 * y2 + i) * 14 + (2 * x2 + j)] = 1.0
    kp["s2"] = jnp.asarray(s2, bf16)
    kp["w2c"] = jnp.transpose(params["c2w"], (2, 3, 1, 0)).reshape(256, 32).astype(bf16)
    kp["b2"] = params["c2b"].reshape(1, 32).astype(f32)

    # conv3: 9 taps x 16 rows; columns index h2's 40 padded rows (only 0..35).
    s3 = np.zeros((9 * _M3, _M2P), np.float32)
    for i in range(3):
        for j in range(3):
            k = i * 3 + j
            for y3 in range(4):
                for x3 in range(4):
                    s3[k * _M3 + y3 * 4 + x3, (y3 + i) * 6 + (x3 + j)] = 1.0
    kp["s3"] = jnp.asarray(s3, bf16)
    kp["w3c"] = jnp.transpose(params["c3w"], (2, 3, 1, 0)).reshape(288, 32).astype(bf16)
    kp["b3"] = params["c3b"].reshape(1, 32).astype(f32)

    # fc1: stored (in=512, out=64) with in-index c*16+p (torch NCHW flatten);
    # permute rows to p*32+c so the in-kernel lane-concat flatten matches.
    kp["f1w"] = jnp.transpose(params["f1w"].reshape(32, 16, 64),
                              (1, 0, 2)).reshape(512, 64).astype(bf16)
    kp["f1b"] = params["f1b"].reshape(1, 64).astype(f32)
    kp["f2w"] = params["f2w"].astype(bf16)
    kp["f2b"] = params["f2b"].reshape(1, 64).astype(f32)

    # fc3 padded to a lane-dense 128-wide output; sliced in the wrapper.
    a = params["f3w"].shape[1]
    n_pad = max(128, ((a + 127) // 128) * 128)
    f3w = jnp.zeros((64, n_pad), f32).at[:, :a].set(params["f3w"])
    f3b = jnp.zeros((1, n_pad), f32).at[:, :a].set(params["f3b"].reshape(1, -1))
    kp["f3w"] = f3w.astype(bf16)
    kp["f3b"] = f3b
    kp["num_actions"] = a
    return kp


# ------------------------------- forward pass -------------------------------- #

def jumping_qnetwork_forward(kp, x):
    """x: (B,1,60,60) or (1,60,60) NCHW float32 -> (B,A) or (A,) Q-values."""
    if x.ndim == 3:
        x = x[None]
    B = x.shape[0]
    n_pad = kp["f3w"].shape[1]

    # conv1 im2col with one gather (C=1 so NCHW spatial == flat spatial).
    x2d = x.reshape(B, 60 * 60)
    p1 = jnp.take(x2d, kp["idx1"], axis=1).astype(jnp.bfloat16)     # (B,196,64)

    consts = (kp["w1m"], kp["b1"], kp["s2"], kp["w2c"], kp["b2"],
              kp["s3"], kp["w3c"], kp["b3"], kp["f1w"], kp["f1b"],
              kp["f2w"], kp["f2b"], kp["f3w"], kp["f3b"])

    def const(r, c):
        return pl.BlockSpec((r, c), lambda b: (0, 0))

    flops = 2 * B * (196 * 64 * 16 + 640 * 196 * 16 + 40 * 256 * 32
                     + 144 * 40 * 32 + 16 * 288 * 32 + 512 * 64
                     + 64 * 64 + 64 * n_pad)
    bytes_accessed = int(p1.size * p1.dtype.itemsize
                         + sum(c.size * c.dtype.itemsize for c in consts)
                         + B * n_pad * 4)

    q = pl.pallas_call(
        _qnet_kernel,
        out_shape=jax.ShapeDtypeStruct((B, 1, n_pad), jnp.float32),
        grid_spec=pltpu.PrefetchScalarGridSpec(
            num_scalar_prefetch=0,
            grid=(B,),
            in_specs=[
                pl.BlockSpec((1, 196, 64), lambda b: (b, 0, 0)),   # p1 (per sample)
                const(64, 16), const(1, 16),                       # conv1 w,b
                const(16 * _M2P, 196), const(256, 32), const(1, 32),   # conv2
                const(9 * _M3, _M2P), const(288, 32), const(1, 32),    # conv3
                const(512, 64), const(1, 64),                      # fc1
                const(64, 64), const(1, 64),                       # fc2
                const(64, n_pad), const(1, n_pad),                 # fc3
            ],
            out_specs=pl.BlockSpec((1, 1, n_pad), lambda b: (b, 0, 0)),
        ),
        compiler_params=pltpu.CompilerParams(
            dimension_semantics=("parallel",),
            vmem_limit_bytes=32 * 1024 * 1024),
        cost_estimate=pl.CostEstimate(flops=flops, transcendentals=0,
                                      bytes_accessed=bytes_accessed),
    )(p1, *consts)

    q = q[:, 0, :kp["num_actions"]]
    return q[0] if q.shape[0] == 1 else q          # mirrors .squeeze(0)


# --------------------------- deterministic init ------------------------------ #

def init_params(key, num_actions):
    """PyTorch-default-style uniform(-1/sqrt(fan_in), 1/sqrt(fan_in)) init."""
    def uni(k, shape, fan_in):
        bound = 1.0 / float(fan_in) ** 0.5
        return jax.random.uniform(k, shape, jnp.float32, -bound, bound)

    keys = jax.random.split(key, 12)
    p = {}
    p["c1w"] = uni(keys[0], (16, 1, 8, 8), 1 * 8 * 8)
    p["c1b"] = uni(keys[1], (16,), 1 * 8 * 8)
    p["c2w"] = uni(keys[2], (32, 16, 4, 4), 16 * 4 * 4)
    p["c2b"] = uni(keys[3], (32,), 16 * 4 * 4)
    p["c3w"] = uni(keys[4], (32, 32, 3, 3), 32 * 3 * 3)
    p["c3b"] = uni(keys[5], (32,), 32 * 3 * 3)
    # Linear weights stored as (in, out).
    p["f1w"] = uni(keys[6], (512, 64), 512)
    p["f1b"] = uni(keys[7], (64,), 512)
    p["f2w"] = uni(keys[8], (64, 64), 64)
    p["f2b"] = uni(keys[9], (64,), 64)
    p["f3w"] = uni(keys[10], (64, num_actions), 64)
    p["f3b"] = uni(keys[11], (num_actions,), 64)
    return p


# ------------------------------ pure-JAX ref ---------------------------------- #

def reference_forward(params, x):
    if x.ndim == 3:
        x = x[None]
    h = x
    for wk, bk, s in (("c1w", "c1b", 4), ("c2w", "c2b", 2), ("c3w", "c3b", 1)):
        h = jax.lax.conv_general_dilated(
            h, params[wk], (s, s), "VALID",
            dimension_numbers=("NCHW", "OIHW", "NCHW"))
        h = jnp.maximum(h + params[bk][None, :, None, None], 0.0)
    fa = h.reshape(h.shape[0], -1)
    h = jnp.maximum(fa @ params["f1w"] + params["f1b"], 0.0)
    h = jnp.maximum(h @ params["f2w"] + params["f2b"], 0.0)
    q = h @ params["f3w"] + params["f3b"]
    return q[0] if q.shape[0] == 1 else q


# ---------------------------------- main -------------------------------------- #

if __name__ == "__main__":
    num_actions = 2
    key = jax.random.PRNGKey(0)
    pkey, xkey = jax.random.split(key)

    params = init_params(pkey, num_actions)
    # 60x60 input is what makes the flatten == 512 (32*4*4).
    x = jax.random.uniform(xkey, (2, 1, 60, 60), jnp.float32)

    kparams = prepare_kernel_params(params)            # one-time, batch-free
    fwd = jax.jit(functools.partial(jumping_qnetwork_forward, kparams))
    q = jax.block_until_ready(fwd(x))

    ref = reference_forward(params, x)
    assert q.shape == (2, num_actions)
    # bf16 matmul operands with f32 accumulation -> slightly looser tolerance.
    assert jnp.allclose(q, ref, rtol=5e-2, atol=5e-2), (q, ref)

    print("KERNEL_OK")
</pallas_src>

<mosaic_0001>
module attributes {stable_mosaic.version = 11 : i64} {
  func.func @_qnet_kernel(%arg0: i32, %arg1: memref<1x196x64xbf16, #tpu.memory_space<vmem>>, %arg2: memref<64x16xbf16, #tpu.memory_space<vmem>>, %arg3: memref<1x16xf32, #tpu.memory_space<vmem>>, %arg4: memref<640x196xbf16, #tpu.memory_space<vmem>>, %arg5: memref<256x32xbf16, #tpu.memory_space<vmem>>, %arg6: memref<1x32xf32, #tpu.memory_space<vmem>>, %arg7: memref<144x40xbf16, #tpu.memory_space<vmem>>, %arg8: memref<288x32xbf16, #tpu.memory_space<vmem>>, %arg9: memref<1x32xf32, #tpu.memory_space<vmem>>, %arg10: memref<512x64xbf16, #tpu.memory_space<vmem>>, %arg11: memref<1x64xf32, #tpu.memory_space<vmem>>, %arg12: memref<64x64xbf16, #tpu.memory_space<vmem>>, %arg13: memref<1x64xf32, #tpu.memory_space<vmem>>, %arg14: memref<64x128xbf16, #tpu.memory_space<vmem>>, %arg15: memref<1x128xf32, #tpu.memory_space<vmem>>, %arg16: memref<1x1x128xf32, #tpu.memory_space<vmem>>) attributes {dimension_semantics = [#tpu.dimension_semantics<parallel>], iteration_bounds = array<i64: 2>, scalar_prefetch = 0 : i64, scratch_operands = 0 : i64, tpu.core_type = #tpu.core_type<tc>, window_params = [{transform_indices = @transform_0, window_bounds = array<i64: 1, 196, 64>}, {pipeline_mode = #tpu.pipeline_mode<synchronous>, transform_indices = @transform_1, window_bounds = array<i64: 64, 16>}, {pipeline_mode = #tpu.pipeline_mode<synchronous>, transform_indices = @transform_2, window_bounds = array<i64: 1, 16>}, {pipeline_mode = #tpu.pipeline_mode<synchronous>, transform_indices = @transform_3, window_bounds = array<i64: 640, 196>}, {pipeline_mode = #tpu.pipeline_mode<synchronous>, transform_indices = @transform_4, window_bounds = array<i64: 256, 32>}, {pipeline_mode = #tpu.pipeline_mode<synchronous>, transform_indices = @transform_5, window_bounds = array<i64: 1, 32>}, {pipeline_mode = #tpu.pipeline_mode<synchronous>, transform_indices = @transform_6, window_bounds = array<i64: 144, 40>}, {pipeline_mode = #tpu.pipeline_mode<synchronous>, transform_indices = @transform_7, window_bounds = array<i64: 288, 32>}, {pipeline_mode = #tpu.pipeline_mode<synchronous>, transform_indices = @transform_8, window_bounds = array<i64: 1, 32>}, {pipeline_mode = #tpu.pipeline_mode<synchronous>, transform_indices = @transform_9, window_bounds = array<i64: 512, 64>}, {pipeline_mode = #tpu.pipeline_mode<synchronous>, transform_indices = @transform_10, window_bounds = array<i64: 1, 64>}, {pipeline_mode = #tpu.pipeline_mode<synchronous>, transform_indices = @transform_11, window_bounds = array<i64: 64, 64>}, {pipeline_mode = #tpu.pipeline_mode<synchronous>, transform_indices = @transform_12, window_bounds = array<i64: 1, 64>}, {pipeline_mode = #tpu.pipeline_mode<synchronous>, transform_indices = @transform_13, window_bounds = array<i64: 64, 128>}, {pipeline_mode = #tpu.pipeline_mode<synchronous>, transform_indices = @transform_14, window_bounds = array<i64: 1, 128>}, {transform_indices = @transform_15, window_bounds = array<i64: 1, 1, 128>}]} {
    %c0 = arith.constant 0 : index
    %c0_0 = arith.constant 0 : index
    %c0_1 = arith.constant 0 : index
    %0 = vector.load %arg1[%c0, %c0_0, %c0_1] : memref<1x196x64xbf16, #tpu.memory_space<vmem>>, vector<1x196x64xbf16>
    %1 = vector.shape_cast %0 : vector<1x196x64xbf16> to vector<196x64xbf16>
    %c0_2 = arith.constant 0 : index
    %c0_3 = arith.constant 0 : index
    %2 = vector.load %arg2[%c0_2, %c0_3] : memref<64x16xbf16, #tpu.memory_space<vmem>>, vector<64x16xbf16>
    %cst = arith.constant dense<0.000000e+00> : vector<196x16xf32>
    %3 = tpu.matmul %1, %2, %cst {dimension_numbers = #tpu.dot_dimension_numbers<[1], [0], [0], [1], [0, 0, 1, 1], [], []>} : vector<196x64xbf16>, vector<64x16xbf16>, vector<196x16xf32> -> vector<196x16xf32>
    %c0_4 = arith.constant 0 : index
    %c0_5 = arith.constant 0 : index
    %4 = vector.load %arg3[%c0_4, %c0_5] : memref<1x16xf32, #tpu.memory_space<vmem>>, vector<1x16xf32>
    %5 = vector.broadcast %4 : vector<1x16xf32> to vector<196x16xf32>
    %6 = arith.addf %3, %5 : vector<196x16xf32>
    %cst_6 = arith.constant 0.000000e+00 : f32
    %7 = vector.broadcast %cst_6 : f32 to vector<196x16xf32>
    %8 = arith.maximumf %6, %7 : vector<196x16xf32>
    %9 = arith.truncf %8 : vector<196x16xf32> to vector<196x16xbf16>
    %c0_7 = arith.constant 0 : index
    %c0_8 = arith.constant 0 : index
    %10 = vector.load %arg4[%c0_7, %c0_8] : memref<640x196xbf16, #tpu.memory_space<vmem>>, vector<640x196xbf16>
    %cst_9 = arith.constant dense<0.000000e+00> : vector<640x16xf32>
    %11 = tpu.matmul %10, %9, %cst_9 {dimension_numbers = #tpu.dot_dimension_numbers<[1], [0], [0], [1], [0, 0, 1, 1], [], []>} : vector<640x196xbf16>, vector<196x16xbf16>, vector<640x16xf32> -> vector<640x16xf32>
    %12 = arith.truncf %11 : vector<640x16xf32> to vector<640x16xbf16>
    %13 = vector.extract_strided_slice %12 {offsets = [0, 0], sizes = [40, 16], strides = [1, 1]} : vector<640x16xbf16> to vector<40x16xbf16>
    %14 = vector.extract_strided_slice %12 {offsets = [40, 0], sizes = [40, 16], strides = [1, 1]} : vector<640x16xbf16> to vector<40x16xbf16>
    %15 = vector.extract_strided_slice %12 {offsets = [80, 0], sizes = [40, 16], strides = [1, 1]} : vector<640x16xbf16> to vector<40x16xbf16>
    %16 = vector.extract_strided_slice %12 {offsets = [120, 0], sizes = [40, 16], strides = [1, 1]} : vector<640x16xbf16> to vector<40x16xbf16>
    %17 = vector.extract_strided_slice %12 {offsets = [160, 0], sizes = [40, 16], strides = [1, 1]} : vector<640x16xbf16> to vector<40x16xbf16>
    %18 = vector.extract_strided_slice %12 {offsets = [200, 0], sizes = [40, 16], strides = [1, 1]} : vector<640x16xbf16> to vector<40x16xbf16>
    %19 = vector.extract_strided_slice %12 {offsets = [240, 0], sizes = [40, 16], strides = [1, 1]} : vector<640x16xbf16> to vector<40x16xbf16>
    %20 = vector.extract_strided_slice %12 {offsets = [280, 0], sizes = [40, 16], strides = [1, 1]} : vector<640x16xbf16> to vector<40x16xbf16>
    %21 = vector.extract_strided_slice %12 {offsets = [320, 0], sizes = [40, 16], strides = [1, 1]} : vector<640x16xbf16> to vector<40x16xbf16>
    %22 = vector.extract_strided_slice %12 {offsets = [360, 0], sizes = [40, 16], strides = [1, 1]} : vector<640x16xbf16> to vector<40x16xbf16>
    %23 = vector.extract_strided_slice %12 {offsets = [400, 0], sizes = [40, 16], strides = [1, 1]} : vector<640x16xbf16> to vector<40x16xbf16>
    %24 = vector.extract_strided_slice %12 {offsets = [440, 0], sizes = [40, 16], strides = [1, 1]} : vector<640x16xbf16> to vector<40x16xbf16>
    %25 = vector.extract_strided_slice %12 {offsets = [480, 0], sizes = [40, 16], strides = [1, 1]} : vector<640x16xbf16> to vector<40x16xbf16>
    %26 = vector.extract_strided_slice %12 {offsets = [520, 0], sizes = [40, 16], strides = [1, 1]} : vector<640x16xbf16> to vector<40x16xbf16>
    %27 = vector.extract_strided_slice %12 {offsets = [560, 0], sizes = [40, 16], strides = [1, 1]} : vector<640x16xbf16> to vector<40x16xbf16>
    %28 = vector.extract_strided_slice %12 {offsets = [600, 0], sizes = [40, 16], strides = [1, 1]} : vector<640x16xbf16> to vector<40x16xbf16>
    %29 = tpu.concatenate %13, %14, %15, %16, %17, %18, %19, %20, %21, %22, %23, %24, %25, %26, %27, %28 in 1 : vector<40x16xbf16>, vector<40x16xbf16>, vector<40x16xbf16>, vector<40x16xbf16>, vector<40x16xbf16>, vector<40x16xbf16>, vector<40x16xbf16>, vector<40x16xbf16>, vector<40x16xbf16>, vector<40x16xbf16>, vector<40x16xbf16>, vector<40x16xbf16>, vector<40x16xbf16>, vector<40x16xbf16>, vector<40x16xbf16>, vector<40x16xbf16> -> vector<40x256xbf16>
    %c0_10 = arith.constant 0 : index
    %c0_11 = arith.constant 0 : index
    %30 = vector.load %arg5[%c0_10, %c0_11] : memref<256x32xbf16, #tpu.memory_space<vmem>>, vector<256x32xbf16>
    %cst_12 = arith.constant dense<0.000000e+00> : vector<40x32xf32>
    %31 = tpu.matmul %29, %30, %cst_12 {dimension_numbers = #tpu.dot_dimension_numbers<[1], [0], [0], [1], [0, 0, 1, 1], [], []>} : vector<40x256xbf16>, vector<256x32xbf16>, vector<40x32xf32> -> vector<40x32xf32>
    %c0_13 = arith.constant 0 : index
    %c0_14 = arith.constant 0 : index
    %32 = vector.load %arg6[%c0_13, %c0_14] : memref<1x32xf32, #tpu.memory_space<vmem>>, vector<1x32xf32>
    %33 = vector.broadcast %32 : vector<1x32xf32> to vector<40x32xf32>
    %34 = arith.addf %31, %33 : vector<40x32xf32>
    %cst_15 = arith.constant 0.000000e+00 : f32
    %35 = vector.broadcast %cst_15 : f32 to vector<40x32xf32>
    %36 = arith.maximumf %34, %35 : vector<40x32xf32>
    %37 = arith.truncf %36 : vector<40x32xf32> to vector<40x32xbf16>
    %c0_16 = arith.constant 0 : index
    %c0_17 = arith.constant 0 : index
    %38 = vector.load %arg7[%c0_16, %c0_17] : memref<144x40xbf16, #tpu.memory_space<vmem>>, vector<144x40xbf16>
    %cst_18 = arith.constant dense<0.000000e+00> : vector<144x32xf32>
    %39 = tpu.matmul %38, %37, %cst_18 {dimension_numbers = #tpu.dot_dimension_numbers<[1], [0], [0], [1], [0, 0, 1, 1], [], []>} : vector<144x40xbf16>, vector<40x32xbf16>, vector<144x32xf32> -> vector<144x32xf32>
    %40 = arith.truncf %39 : vector<144x32xf32> to vector<144x32xbf16>
    %41 = vector.extract_strided_slice %40 {offsets = [0, 0], sizes = [16, 32], strides = [1, 1]} : vector<144x32xbf16> to vector<16x32xbf16>
    %42 = vector.extract_strided_slice %40 {offsets = [16, 0], sizes = [16, 32], strides = [1, 1]} : vector<144x32xbf16> to vector<16x32xbf16>
    %43 = vector.extract_strided_slice %40 {offsets = [32, 0], sizes = [16, 32], strides = [1, 1]} : vector<144x32xbf16> to vector<16x32xbf16>
    %44 = vector.extract_strided_slice %40 {offsets = [48, 0], sizes = [16, 32], strides = [1, 1]} : vector<144x32xbf16> to vector<16x32xbf16>
    %45 = vector.extract_strided_slice %40 {offsets = [64, 0], sizes = [16, 32], strides = [1, 1]} : vector<144x32xbf16> to vector<16x32xbf16>
    %46 = vector.extract_strided_slice %40 {offsets = [80, 0], sizes = [16, 32], strides = [1, 1]} : vector<144x32xbf16> to vector<16x32xbf16>
    %47 = vector.extract_strided_slice %40 {offsets = [96, 0], sizes = [16, 32], strides = [1, 1]} : vector<144x32xbf16> to vector<16x32xbf16>
    %48 = vector.extract_strided_slice %40 {offsets = [112, 0], sizes = [16, 32], strides = [1, 1]} : vector<144x32xbf16> to vector<16x32xbf16>
    %49 = vector.extract_strided_slice %40 {offsets = [128, 0], sizes = [16, 32], strides = [1, 1]} : vector<144x32xbf16> to vector<16x32xbf16>
    %50 = tpu.concatenate %41, %42, %43, %44, %45, %46, %47, %48, %49 in 1 : vector<16x32xbf16>, vector<16x32xbf16>, vector<16x32xbf16>, vector<16x32xbf16>, vector<16x32xbf16>, vector<16x32xbf16>, vector<16x32xbf16>, vector<16x32xbf16>, vector<16x32xbf16> -> vector<16x288xbf16>
    %c0_19 = arith.constant 0 : index
    %c0_20 = arith.constant 0 : index
    %51 = vector.load %arg8[%c0_19, %c0_20] : memref<288x32xbf16, #tpu.memory_space<vmem>>, vector<288x32xbf16>
    %cst_21 = arith.constant dense<0.000000e+00> : vector<16x32xf32>
    %52 = tpu.matmul %50, %51, %cst_21 {dimension_numbers = #tpu.dot_dimension_numbers<[1], [0], [0], [1], [0, 0, 1, 1], [], []>} : vector<16x288xbf16>, vector<288x32xbf16>, vector<16x32xf32> -> vector<16x32xf32>
    %c0_22 = arith.constant 0 : index
    %c0_23 = arith.constant 0 : index
    %53 = vector.load %arg9[%c0_22, %c0_23] : memref<1x32xf32, #tpu.memory_space<vmem>>, vector<1x32xf32>
    %54 = vector.broadcast %53 : vector<1x32xf32> to vector<16x32xf32>
    %55 = arith.addf %52, %54 : vector<16x32xf32>
    %cst_24 = arith.constant 0.000000e+00 : f32
    %56 = vector.broadcast %cst_24 : f32 to vector<16x32xf32>
    %57 = arith.maximumf %55, %56 : vector<16x32xf32>
    %58 = arith.truncf %57 : vector<16x32xf32> to vector<16x32xbf16>
    %59 = vector.extract_strided_slice %58 {offsets = [0, 0], sizes = [1, 32], strides = [1, 1]} : vector<16x32xbf16> to vector<1x32xbf16>
    %60 = vector.extract_strided_slice %58 {offsets = [1, 0], sizes = [1, 32], strides = [1, 1]} : vector<16x32xbf16> to vector<1x32xbf16>
    %61 = vector.extract_strided_slice %58 {offsets = [2, 0], sizes = [1, 32], strides = [1, 1]} : vector<16x32xbf16> to vector<1x32xbf16>
    %62 = vector.extract_strided_slice %58 {offsets = [3, 0], sizes = [1, 32], strides = [1, 1]} : vector<16x32xbf16> to vector<1x32xbf16>
    %63 = vector.extract_strided_slice %58 {offsets = [4, 0], sizes = [1, 32], strides = [1, 1]} : vector<16x32xbf16> to vector<1x32xbf16>
    %64 = vector.extract_strided_slice %58 {offsets = [5, 0], sizes = [1, 32], strides = [1, 1]} : vector<16x32xbf16> to vector<1x32xbf16>
    %65 = vector.extract_strided_slice %58 {offsets = [6, 0], sizes = [1, 32], strides = [1, 1]} : vector<16x32xbf16> to vector<1x32xbf16>
    %66 = vector.extract_strided_slice %58 {offsets = [7, 0], sizes = [1, 32], strides = [1, 1]} : vector<16x32xbf16> to vector<1x32xbf16>
    %67 = vector.extract_strided_slice %58 {offsets = [8, 0], sizes = [1, 32], strides = [1, 1]} : vector<16x32xbf16> to vector<1x32xbf16>
    %68 = vector.extract_strided_slice %58 {offsets = [9, 0], sizes = [1, 32], strides = [1, 1]} : vector<16x32xbf16> to vector<1x32xbf16>
    %69 = vector.extract_strided_slice %58 {offsets = [10, 0], sizes = [1, 32], strides = [1, 1]} : vector<16x32xbf16> to vector<1x32xbf16>
    %70 = vector.extract_strided_slice %58 {offsets = [11, 0], sizes = [1, 32], strides = [1, 1]} : vector<16x32xbf16> to vector<1x32xbf16>
    %71 = vector.extract_strided_slice %58 {offsets = [12, 0], sizes = [1, 32], strides = [1, 1]} : vector<16x32xbf16> to vector<1x32xbf16>
    %72 = vector.extract_strided_slice %58 {offsets = [13, 0], sizes = [1, 32], strides = [1, 1]} : vector<16x32xbf16> to vector<1x32xbf16>
    %73 = vector.extract_strided_slice %58 {offsets = [14, 0], sizes = [1, 32], strides = [1, 1]} : vector<16x32xbf16> to vector<1x32xbf16>
    %74 = vector.extract_strided_slice %58 {offsets = [15, 0], sizes = [1, 32], strides = [1, 1]} : vector<16x32xbf16> to vector<1x32xbf16>
    %75 = tpu.concatenate %59, %60, %61, %62, %63, %64, %65, %66, %67, %68, %69, %70, %71, %72, %73, %74 in 1 : vector<1x32xbf16>, vector<1x32xbf16>, vector<1x32xbf16>, vector<1x32xbf16>, vector<1x32xbf16>, vector<1x32xbf16>, vector<1x32xbf16>, vector<1x32xbf16>, vector<1x32xbf16>, vector<1x32xbf16>, vector<1x32xbf16>, vector<1x32xbf16>, vector<1x32xbf16>, vector<1x32xbf16>, vector<1x32xbf16>, vector<1x32xbf16> -> vector<1x512xbf16>
    %c0_25 = arith.constant 0 : index
    %c0_26 = arith.constant 0 : index
    %76 = vector.load %arg10[%c0_25, %c0_26] : memref<512x64xbf16, #tpu.memory_space<vmem>>, vector<512x64xbf16>
    %cst_27 = arith.constant dense<0.000000e+00> : vector<1x64xf32>
    %77 = tpu.matmul %75, %76, %cst_27 {dimension_numbers = #tpu.dot_dimension_numbers<[1], [0], [0], [1], [0, 0, 1, 1], [], []>} : vector<1x512xbf16>, vector<512x64xbf16>, vector<1x64xf32> -> vector<1x64xf32>
    %c0_28 = arith.constant 0 : index
    %c0_29 = arith.constant 0 : index
    %78 = vector.load %arg11[%c0_28, %c0_29] : memref<1x64xf32, #tpu.memory_space<vmem>>, vector<1x64xf32>
    %79 = arith.addf %77, %78 : vector<1x64xf32>
    %cst_30 = arith.constant 0.000000e+00 : f32
    %80 = vector.broadcast %cst_30 : f32 to vector<1x64xf32>
    %81 = arith.maximumf %79, %80 : vector<1x64xf32>
    %82 = arith.truncf %81 : vector<1x64xf32> to vector<1x64xbf16>
    %c0_31 = arith.constant 0 : index
    %c0_32 = arith.constant 0 : index
    %83 = vector.load %arg12[%c0_31, %c0_32] : memref<64x64xbf16, #tpu.memory_space<vmem>>, vector<64x64xbf16>
    %cst_33 = arith.constant dense<0.000000e+00> : vector<1x64xf32>
    %84 = tpu.matmul %82, %83, %cst_33 {dimension_numbers = #tpu.dot_dimension_numbers<[1], [0], [0], [1], [0, 0, 1, 1], [], []>} : vector<1x64xbf16>, vector<64x64xbf16>, vector<1x64xf32> -> vector<1x64xf32>
    %c0_34 = arith.constant 0 : index
    %c0_35 = arith.constant 0 : index
    %85 = vector.load %arg13[%c0_34, %c0_35] : memref<1x64xf32, #tpu.memory_space<vmem>>, vector<1x64xf32>
    %86 = arith.addf %84, %85 : vector<1x64xf32>
    %cst_36 = arith.constant 0.000000e+00 : f32
    %87 = vector.broadcast %cst_36 : f32 to vector<1x64xf32>
    %88 = arith.maximumf %86, %87 : vector<1x64xf32>
    %89 = arith.truncf %88 : vector<1x64xf32> to vector<1x64xbf16>
    %c0_37 = arith.constant 0 : index
    %c0_38 = arith.constant 0 : index
    %90 = vector.load %arg14[%c0_37, %c0_38] : memref<64x128xbf16, #tpu.memory_space<vmem>>, vector<64x128xbf16>
    %cst_39 = arith.constant dense<0.000000e+00> : vector<1x128xf32>
    %91 = tpu.matmul %89, %90, %cst_39 {dimension_numbers = #tpu.dot_dimension_numbers<[1], [0], [0], [1], [0, 0, 1, 1], [], []>} : vector<1x64xbf16>, vector<64x128xbf16>, vector<1x128xf32> -> vector<1x128xf32>
    %c0_40 = arith.constant 0 : index
    %c0_41 = arith.constant 0 : index
    %92 = vector.load %arg15[%c0_40, %c0_41] : memref<1x128xf32, #tpu.memory_space<vmem>>, vector<1x128xf32>
    %93 = arith.addf %91, %92 : vector<1x128xf32>
    %c0_42 = arith.constant 0 : index
    %c0_43 = arith.constant 0 : index
    %c0_44 = arith.constant 0 : index
    %94 = vector.load %arg16[%c0_42, %c0_43, %c0_44] : memref<1x1x128xf32, #tpu.memory_space<vmem>>, vector<1x1x128xf32>
    %95 = vector.shape_cast %94 : vector<1x1x128xf32> to vector<1x128xf32>
    %96 = vector.shape_cast %93 : vector<1x128xf32> to vector<1x1x128xf32>
    tpu.vector_store %arg16[%c0_42, %c0_43, %c0_44], %96 {strides = array<i32>} : memref<1x1x128xf32, #tpu.memory_space<vmem>>, vector<1x1x128xf32>,
    return
  }
  func.func @transform_0(%arg0: i32) -> (i32, i32, i32) {
    %c0_i32 = arith.constant 0 : i32
    %c0_i32_0 = arith.constant 0 : i32
    %c0_i32_1 = arith.constant 0 : i32
    return %arg0, %c0_i32, %c0_i32_0 : i32, i32, i32
  }
  func.func @transform_1(%arg0: i32) -> (i32, i32) {
    %c0_i32 = arith.constant 0 : i32
    %c0_i32_0 = arith.constant 0 : i32
    %c0_i32_1 = arith.constant 0 : i32
    return %c0_i32, %c0_i32_0 : i32, i32
  }
  func.func @transform_2(%arg0: i32) -> (i32, i32) {
    %c0_i32 = arith.constant 0 : i32
    %c0_i32_0 = arith.constant 0 : i32
    %c0_i32_1 = arith.constant 0 : i32
    return %c0_i32, %c0_i32_0 : i32, i32
  }
  func.func @transform_3(%arg0: i32) -> (i32, i32) {
    %c0_i32 = arith.constant 0 : i32
    %c0_i32_0 = arith.constant 0 : i32
    %c0_i32_1 = arith.constant 0 : i32
    return %c0_i32, %c0_i32_0 : i32, i32
  }
  func.func @transform_4(%arg0: i32) -> (i32, i32) {
    %c0_i32 = arith.constant 0 : i32
    %c0_i32_0 = arith.constant 0 : i32
    %c0_i32_1 = arith.constant 0 : i32
    return %c0_i32, %c0_i32_0 : i32, i32
  }
  func.func @transform_5(%arg0: i32) -> (i32, i32) {
    %c0_i32 = arith.constant 0 : i32
    %c0_i32_0 = arith.constant 0 : i32
    %c0_i32_1 = arith.constant 0 : i32
    return %c0_i32, %c0_i32_0 : i32, i32
  }
  func.func @transform_6(%arg0: i32) -> (i32, i32) {
    %c0_i32 = arith.constant 0 : i32
    %c0_i32_0 = arith.constant 0 : i32
    %c0_i32_1 = arith.constant 0 : i32
    return %c0_i32, %c0_i32_0 : i32, i32
  }
  func.func @transform_7(%arg0: i32) -> (i32, i32) {
    %c0_i32 = arith.constant 0 : i32
    %c0_i32_0 = arith.constant 0 : i32
    %c0_i32_1 = arith.constant 0 : i32
    return %c0_i32, %c0_i32_0 : i32, i32
  }
  func.func @transform_8(%arg0: i32) -> (i32, i32) {
    %c0_i32 = arith.constant 0 : i32
    %c0_i32_0 = arith.constant 0 : i32
    %c0_i32_1 = arith.constant 0 : i32
    return %c0_i32, %c0_i32_0 : i32, i32
  }
  func.func @transform_9(%arg0: i32) -> (i32, i32) {
    %c0_i32 = arith.constant 0 : i32
    %c0_i32_0 = arith.constant 0 : i32
    %c0_i32_1 = arith.constant 0 : i32
    return %c0_i32, %c0_i32_0 : i32, i32
  }
  func.func @transform_10(%arg0: i32) -> (i32, i32) {
    %c0_i32 = arith.constant 0 : i32
    %c0_i32_0 = arith.constant 0 : i32
    %c0_i32_1 = arith.constant 0 : i32
    return %c0_i32, %c0_i32_0 : i32, i32
  }
  func.func @transform_11(%arg0: i32) -> (i32, i32) {
    %c0_i32 = arith.constant 0 : i32
    %c0_i32_0 = arith.constant 0 : i32
    %c0_i32_1 = arith.constant 0 : i32
    return %c0_i32, %c0_i32_0 : i32, i32
  }
  func.func @transform_12(%arg0: i32) -> (i32, i32) {
    %c0_i32 = arith.constant 0 : i32
    %c0_i32_0 = arith.constant 0 : i32
    %c0_i32_1 = arith.constant 0 : i32
    return %c0_i32, %c0_i32_0 : i32, i32
  }
  func.func @transform_13(%arg0: i32) -> (i32, i32) {
    %c0_i32 = arith.constant 0 : i32
    %c0_i32_0 = arith.constant 0 : i32
    %c0_i32_1 = arith.constant 0 : i32
    return %c0_i32, %c0_i32_0 : i32, i32
  }
  func.func @transform_14(%arg0: i32) -> (i32, i32) {
    %c0_i32 = arith.constant 0 : i32
    %c0_i32_0 = arith.constant 0 : i32
    %c0_i32_1 = arith.constant 0 : i32
    return %c0_i32, %c0_i32_0 : i32, i32
  }
  func.func @transform_15(%arg0: i32) -> (i32, i32, i32) {
    %c0_i32 = arith.constant 0 : i32
    %c0_i32_0 = arith.constant 0 : i32
    %c0_i32_1 = arith.constant 0 : i32
    return %arg0, %c0_i32, %c0_i32_0 : i32, i32, i32
  }
}

</mosaic_0001>

<llo_original>
// kernel: jumping_qnetwork_forward.1
$region0: #{jumping_qnetwork_forward.1}
  #allocation0 [shape = 'u32[]', space=smem, size = 0x4, offset = 0x4, fixed_abs, tag = 'smem constant byte address 0x4 - core index']
  #allocation1 [shape = 'u32[144,128]{1,0:T(1,128)}', space=vmem, size = 0x12000, scoped, tag = 'internal scratch']
  %s0 = inlined_call_operand.vmem [shape: bf16[2,196,64], index: 0, kind: input, shape index: {}]
  %s1 = inlined_call_operand.vmem [shape: bf16[64,16], index: 1, kind: input, shape index: {}]
  %s2 = inlined_call_operand.vmem [shape: f32[1,16], index: 2, kind: input, shape index: {}]
  %s3 = inlined_call_operand.vmem [shape: bf16[640,196], index: 3, kind: input, shape index: {}]
  %s4 = inlined_call_operand.vmem [shape: bf16[256,32], index: 4, kind: input, shape index: {}]
  %s5 = inlined_call_operand.vmem [shape: f32[1,32], index: 5, kind: input, shape index: {}]
  %s6 = inlined_call_operand.vmem [shape: bf16[144,40], index: 6, kind: input, shape index: {}]
  %s7 = inlined_call_operand.vmem [shape: bf16[288,32], index: 7, kind: input, shape index: {}]
  %s8 = inlined_call_operand.vmem [shape: f32[1,32], index: 8, kind: input, shape index: {}]
  %s9 = inlined_call_operand.vmem [shape: bf16[512,64], index: 9, kind: input, shape index: {}]
  %s10 = inlined_call_operand.vmem [shape: f32[1,64], index: 10, kind: input, shape index: {}]
  %s11 = inlined_call_operand.vmem [shape: bf16[64,64], index: 11, kind: input, shape index: {}]
  %s12 = inlined_call_operand.vmem [shape: f32[1,64], index: 12, kind: input, shape index: {}]
  %s13 = inlined_call_operand.vmem [shape: bf16[64,128], index: 13, kind: input, shape index: {}]
  %s14 = inlined_call_operand.vmem [shape: f32[1,128], index: 14, kind: input, shape index: {}]
  %s15 = inlined_call_operand.hbm [shape: f32[2,1,128], index: 15, kind: output, shape index: {}]
  %s16 = sld [smem:[#allocation0]]
  $region93: #{jumping_qnetwork_forward.1} parent=0
    _
  %s18 = ssub.s32 1, %s16
  %s19 = scalar_select 0, %s18, %s16
  $region1: #{jumping_qnetwork_forward.1} parent=0
    #allocation2 [shape = 'u8[1024]{0}', space=vmem, size = 0x400, scoped, tag = 'output window, operand 0']
    #allocation3 [shape = 's32[2]{0}', space=sflag, size = 0x8, scoped, tag = 'scoped memory for jumping_qnetwork_forward.1']
    %20 = vsyncpa [#allocation3], 0
    %s21 = scalar_lea.sflag [#allocation3], 1
    %22 = vsyncpa %s21, 0
    loop: start=0, step=1, limit=4
    $region2: #{jumping_qnetwork_forward.1} parent=1 // loop_pre_header
      _
    $region3: #{jumping_qnetwork_forward.1} parent=1 // loop_header
      %s24 = sphi 0, %s28
      %p25 = scmp.ge.s32.totalorder %s24, 4
      %s34 = sphi 0, %s36
      %s37 = sphi 0, %s34
      %s38 = sphi 0, %s37
      %s54 = sphi 0, %s38
      %s58 = sphi 0, %s58
      %s60 = sphi 0, %s58
      %s61 = sphi 0, %s60
      %s75 = sphi 0, %s61
      %s79 = sphi 0, %s79
      %s81 = sphi 0, %s79
      %s82 = sphi 0, %s81
      %s96 = sphi 0, %s82
      %s100 = sphi 0, %s100
      %s102 = sphi 0, %s100
      %s103 = sphi 0, %s102
      %s117 = sphi 0, %s103
      %s121 = sphi 0, %s121
      %s123 = sphi 0, %s121
      %s124 = sphi 0, %s123
      %s138 = sphi 0, %s124
      %s142 = sphi 0, %s142
      %s144 = sphi 0, %s142
      %s145 = sphi 0, %s144
      %s159 = sphi 0, %s145
      %s163 = sphi 0, %s163
      %s165 = sphi 0, %s163
      %s166 = sphi 0, %s165
      %s180 = sphi 0, %s166
      %s184 = sphi 0, %s184
      %s186 = sphi 0, %s184
      %s187 = sphi 0, %s186
      %s201 = sphi 0, %s187
      %s205 = sphi 0, %s205
      %s207 = sphi 0, %s205
      %s208 = sphi 0, %s207
      %s222 = sphi 0, %s208
      %s226 = sphi 0, %s226
      %s228 = sphi 0, %s226
      %s229 = sphi 0, %s228
      %s243 = sphi 0, %s229
      %s247 = sphi 0, %s247
      %s249 = sphi 0, %s247
      %s250 = sphi 0, %s249
      %s264 = sphi 0, %s250
      %s268 = sphi 0, %s268
      %s270 = sphi 0, %s268
      %s271 = sphi 0, %s270
      %s285 = sphi 0, %s271
      %s289 = sphi 0, %s289
      %s291 = sphi 0, %s289
      %s292 = sphi 0, %s291
      %s306 = sphi 0, %s292
      %s310 = sphi 0, %s310
      %s312 = sphi 0, %s310
      %s313 = sphi 0, %s312
      %s327 = sphi 0, %s313
      %s331 = sphi 0, %s331
      %s333 = sphi 0, %s331
      %s334 = sphi 0, %s333
      %s348 = sphi 0, %s334
      %s354 = sphi 0, %s356
      %s357 = sphi 0, %s354
      %s358 = sphi 0, %s357
      %s374 = sphi 0, %s358
    $region4: #{jumping_qnetwork_forward.1} parent=1 // loop_header_branch
      %27 = sbr.rel (%p25) target = $region8
    $region5: #{jumping_qnetwork_forward.1} parent=1 // loop_body
      %s29 = ssub.s32 %s24, 1
      %s30 = ssub.s32 %s24, 2
      %s31 = sadd.s32 %s24, 1
      %s32 = ssub.s32 %s24, %s31
      %p33 = scmp.eq.s32.totalorder %s32, 0
      %s35 = sadd.s32 %s34, 1
      %s36 = scalar_select %p33, %s34, %s35
      %p39 = pneg %p33
      %p40 = scmp.eq.s32.totalorder %s24, 1
      %p41 = por %p39, %p40
      %p42 = scmp.ne.s32.totalorder %s34, %s37
      %p43 = scmp.eq.s32.totalorder %s24, 0
      %p44 = por %p42, %p43
      %p45 = scmp.ne.s32.totalorder %s34, %s37
      %p46 = scmp.eq.s32.totalorder %s29, 1
      %p47 = por %p45, %p46
      %p48 = scmp.ne.s32.totalorder %s37, %s38
      %p49 = scmp.eq.s32.totalorder %s29, 0
      %p50 = por %p48, %p49
      %p51 = scmp.ne.s32.totalorder %s37, %s38
      %p52 = scmp.eq.s32.totalorder %s30, 1
      %p53 = por %p51, %p52
      %p55 = scmp.ne.s32.totalorder %s38, %s54
      %p56 = scmp.eq.s32.totalorder %s30, 0
      %p57 = por %p55, %p56
      %s59 = sadd.s32 %s58, 1
      %p62 = scmp.eq.s32.totalorder %s24, 1
      %p63 = scmp.ne.s32.totalorder %s58, %s60
      %p64 = scmp.eq.s32.totalorder %s24, 0
      %p65 = por %p63, %p64
      %p66 = scmp.ne.s32.totalorder %s58, %s60
      %p67 = scmp.eq.s32.totalorder %s29, 1
      %p68 = por %p66, %p67
      %p69 = scmp.ne.s32.totalorder %s60, %s61
      %p70 = scmp.eq.s32.totalorder %s29, 0
      %p71 = por %p69, %p70
      %p72 = scmp.ne.s32.totalorder %s60, %s61
      %p73 = scmp.eq.s32.totalorder %s30, 1
      %p74 = por %p72, %p73
      %p76 = scmp.ne.s32.totalorder %s61, %s75
      %p77 = scmp.eq.s32.totalorder %s30, 0
      %p78 = por %p76, %p77
      %s80 = sadd.s32 %s79, 1
      %p83 = scmp.eq.s32.totalorder %s24, 1
      %p84 = scmp.ne.s32.totalorder %s79, %s81
      %p85 = scmp.eq.s32.totalorder %s24, 0
      %p86 = por %p84, %p85
      %p87 = scmp.ne.s32.totalorder %s79, %s81
      %p88 = scmp.eq.s32.totalorder %s29, 1
      %p89 = por %p87, %p88
      %p90 = scmp.ne.s32.totalorder %s81, %s82
      %p91 = scmp.eq.s32.totalorder %s29, 0
      %p92 = por %p90, %p91
      %p93 = scmp.ne.s32.totalorder %s81, %s82
      %p94 = scmp.eq.s32.totalorder %s30, 1
      %p95 = por %p93, %p94
      %p97 = scmp.ne.s32.totalorder %s82, %s96
      %p98 = scmp.eq.s32.totalorder %s30, 0
      %p99 = por %p97, %p98
      %s101 = sadd.s32 %s100, 1
      %p104 = scmp.eq.s32.totalorder %s24, 1
      %p105 = scmp.ne.s32.totalorder %s100, %s102
      %p106 = scmp.eq.s32.totalorder %s24, 0
      %p107 = por %p105, %p106
      %p108 = scmp.ne.s32.totalorder %s100, %s102
      %p109 = scmp.eq.s32.totalorder %s29, 1
      %p110 = por %p108, %p109
      %p111 = scmp.ne.s32.totalorder %s102, %s103
      %p112 = scmp.eq.s32.totalorder %s29, 0
      %p113 = por %p111, %p112
      %p114 = scmp.ne.s32.totalorder %s102, %s103
      %p115 = scmp.eq.s32.totalorder %s30, 1
      %p116 = por %p114, %p115
      %p118 = scmp.ne.s32.totalorder %s103, %s117
      %p119 = scmp.eq.s32.totalorder %s30, 0
      %p120 = por %p118, %p119
      %s122 = sadd.s32 %s121, 1
      %p125 = scmp.eq.s32.totalorder %s24, 1
      %p126 = scmp.ne.s32.totalorder %s121, %s123
      %p127 = scmp.eq.s32.totalorder %s24, 0
      %p128 = por %p126, %p127
      %p129 = scmp.ne.s32.totalorder %s121, %s123
      %p130 = scmp.eq.s32.totalorder %s29, 1
      %p131 = por %p129, %p130
      %p132 = scmp.ne.s32.totalorder %s123, %s124
      %p133 = scmp.eq.s32.totalorder %s29, 0
      %p134 = por %p132, %p133
      %p135 = scmp.ne.s32.totalorder %s123, %s124
      %p136 = scmp.eq.s32.totalorder %s30, 1
      %p137 = por %p135, %p136
      %p139 = scmp.ne.s32.totalorder %s124, %s138
      %p140 = scmp.eq.s32.totalorder %s30, 0
      %p141 = por %p139, %p140
      %s143 = sadd.s32 %s142, 1
      %p146 = scmp.eq.s32.totalorder %s24, 1
      %p147 = scmp.ne.s32.totalorder %s142, %s144
      %p148 = scmp.eq.s32.totalorder %s24, 0
      %p149 = por %p147, %p148
      %p150 = scmp.ne.s32.totalorder %s142, %s144
      %p151 = scmp.eq.s32.totalorder %s29, 1
      %p152 = por %p150, %p151
      %p153 = scmp.ne.s32.totalorder %s144, %s145
      %p154 = scmp.eq.s32.totalorder %s29, 0
      %p155 = por %p153, %p154
      %p156 = scmp.ne.s32.totalorder %s144, %s145
      %p157 = scmp.eq.s32.totalorder %s30, 1
      %p158 = por %p156, %p157
      %p160 = scmp.ne.s32.totalorder %s145, %s159
      %p161 = scmp.eq.s32.totalorder %s30, 0
      %p162 = por %p160, %p161
      %s164 = sadd.s32 %s163, 1
      %p167 = scmp.eq.s32.totalorder %s24, 1
      %p168 = scmp.ne.s32.totalorder %s163, %s165
      %p169 = scmp.eq.s32.totalorder %s24, 0
      %p170 = por %p168, %p169
      %p171 = scmp.ne.s32.totalorder %s163, %s165
      %p172 = scmp.eq.s32.totalorder %s29, 1
      %p173 = por %p171, %p172
      %p174 = scmp.ne.s32.totalorder %s165, %s166
      %p175 = scmp.eq.s32.totalorder %s29, 0
      %p176 = por %p174, %p175
      %p177 = scmp.ne.s32.totalorder %s165, %s166
      %p178 = scmp.eq.s32.totalorder %s30, 1
      %p179 = por %p177, %p178
      %p181 = scmp.ne.s32.totalorder %s166, %s180
      %p182 = scmp.eq.s32.totalorder %s30, 0
      %p183 = por %p181, %p182
      %s185 = sadd.s32 %s184, 1
      %p188 = scmp.eq.s32.totalorder %s24, 1
      %p189 = scmp.ne.s32.totalorder %s184, %s186
      %p190 = scmp.eq.s32.totalorder %s24, 0
      %p191 = por %p189, %p190
      %p192 = scmp.ne.s32.totalorder %s184, %s186
      %p193 = scmp.eq.s32.totalorder %s29, 1
      %p194 = por %p192, %p193
      %p195 = scmp.ne.s32.totalorder %s186, %s187
      %p196 = scmp.eq.s32.totalorder %s29, 0
      %p197 = por %p195, %p196
      %p198 = scmp.ne.s32.totalorder %s186, %s187
      %p199 = scmp.eq.s32.totalorder %s30, 1
      %p200 = por %p198, %p199
      %p202 = scmp.ne.s32.totalorder %s187, %s201
      %p203 = scmp.eq.s32.totalorder %s30, 0
      %p204 = por %p202, %p203
      %s206 = sadd.s32 %s205, 1
      %p209 = scmp.eq.s32.totalorder %s24, 1
      %p210 = scmp.ne.s32.totalorder %s205, %s207
      %p211 = scmp.eq.s32.totalorder %s24, 0
      %p212 = por %p210, %p211
      %p213 = scmp.ne.s32.totalorder %s205, %s207
      %p214 = scmp.eq.s32.totalorder %s29, 1
      %p215 = por %p213, %p214
      %p216 = scmp.ne.s32.totalorder %s207, %s208
      %p217 = scmp.eq.s32.totalorder %s29, 0
      %p218 = por %p216, %p217
      %p219 = scmp.ne.s32.totalorder %s207, %s208
      %p220 = scmp.eq.s32.totalorder %s30, 1
      %p221 = por %p219, %p220
      %p223 = scmp.ne.s32.totalorder %s208, %s222
      %p224 = scmp.eq.s32.totalorder %s30, 0
      %p225 = por %p223, %p224
      %s227 = sadd.s32 %s226, 1
      %p230 = scmp.eq.s32.totalorder %s24, 1
      %p231 = scmp.ne.s32.totalorder %s226, %s228
      %p232 = scmp.eq.s32.totalorder %s24, 0
      %p233 = por %p231, %p232
      %p234 = scmp.ne.s32.totalorder %s226, %s228
      %p235 = scmp.eq.s32.totalorder %s29, 1
      %p236 = por %p234, %p235
      %p237 = scmp.ne.s32.totalorder %s228, %s229
      %p238 = scmp.eq.s32.totalorder %s29, 0
      %p239 = por %p237, %p238
      %p240 = scmp.ne.s32.totalorder %s228, %s229
      %p241 = scmp.eq.s32.totalorder %s30, 1
      %p242 = por %p240, %p241
      %p244 = scmp.ne.s32.totalorder %s229, %s243
      %p245 = scmp.eq.s32.totalorder %s30, 0
      %p246 = por %p244, %p245
      %s248 = sadd.s32 %s247, 1
      %p251 = scmp.eq.s32.totalorder %s24, 1
      %p252 = scmp.ne.s32.totalorder %s247, %s249
      %p253 = scmp.eq.s32.totalorder %s24, 0
      %p254 = por %p252, %p253
      %p255 = scmp.ne.s32.totalorder %s247, %s249
      %p256 = scmp.eq.s32.totalorder %s29, 1
      %p257 = por %p255, %p256
      %p258 = scmp.ne.s32.totalorder %s249, %s250
      %p259 = scmp.eq.s32.totalorder %s29, 0
      %p260 = por %p258, %p259
      %p261 = scmp.ne.s32.totalorder %s249, %s250
      %p262 = scmp.eq.s32.totalorder %s30, 1
      %p263 = por %p261, %p262
      %p265 = scmp.ne.s32.totalorder %s250, %s264
      %p266 = scmp.eq.s32.totalorder %s30, 0
      %p267 = por %p265, %p266
      %s269 = sadd.s32 %s268, 1
      %p272 = scmp.eq.s32.totalorder %s24, 1
      %p273 = scmp.ne.s32.totalorder %s268, %s270
      %p274 = scmp.eq.s32.totalorder %s24, 0
      %p275 = por %p273, %p274
      %p276 = scmp.ne.s32.totalorder %s268, %s270
      %p277 = scmp.eq.s32.totalorder %s29, 1
      %p278 = por %p276, %p277
      %p279 = scmp.ne.s32.totalorder %s270, %s271
      %p280 = scmp.eq.s32.totalorder %s29, 0
      %p281 = por %p279, %p280
      %p282 = scmp.ne.s32.totalorder %s270, %s271
      %p283 = scmp.eq.s32.totalorder %s30, 1
      %p284 = por %p282, %p283
      %p286 = scmp.ne.s32.totalorder %s271, %s285
      %p287 = scmp.eq.s32.totalorder %s30, 0
      %p288 = por %p286, %p287
      %s290 = sadd.s32 %s289, 1
      %p293 = scmp.eq.s32.totalorder %s24, 1
      %p294 = scmp.ne.s32.totalorder %s289, %s291
      %p295 = scmp.eq.s32.totalorder %s24, 0
      %p296 = por %p294, %p295
      %p297 = scmp.ne.s32.totalorder %s289, %s291
      %p298 = scmp.eq.s32.totalorder %s29, 1
      %p299 = por %p297, %p298
      %p300 = scmp.ne.s32.totalorder %s291, %s292
      %p301 = scmp.eq.s32.totalorder %s29, 0
      %p302 = por %p300, %p301
      %p303 = scmp.ne.s32.totalorder %s291, %s292
      %p304 = scmp.eq.s32.totalorder %s30, 1
      %p305 = por %p303, %p304
      %p307 = scmp.ne.s32.totalorder %s292, %s306
      %p308 = scmp.eq.s32.totalorder %s30, 0
      %p309 = por %p307, %p308
      %s311 = sadd.s32 %s310, 1
      %p314 = scmp.eq.s32.totalorder %s24, 1
      %p315 = scmp.ne.s32.totalorder %s310, %s312
      %p316 = scmp.eq.s32.totalorder %s24, 0
      %p317 = por %p315, %p316
      %p318 = scmp.ne.s32.totalorder %s310, %s312
      %p319 = scmp.eq.s32.totalorder %s29, 1
      %p320 = por %p318, %p319
      %p321 = scmp.ne.s32.totalorder %s312, %s313
      %p322 = scmp.eq.s32.totalorder %s29, 0
      %p323 = por %p321, %p322
      %p324 = scmp.ne.s32.totalorder %s312, %s313
      %p325 = scmp.eq.s32.totalorder %s30, 1
      %p326 = por %p324, %p325
      %p328 = scmp.ne.s32.totalorder %s313, %s327
      %p329 = scmp.eq.s32.totalorder %s30, 0
      %p330 = por %p328, %p329
      %s332 = sadd.s32 %s331, 1
      %p335 = scmp.eq.s32.totalorder %s24, 1
      %p336 = scmp.ne.s32.totalorder %s331, %s333
      %p337 = scmp.eq.s32.totalorder %s24, 0
      %p338 = por %p336, %p337
      %p339 = scmp.ne.s32.totalorder %s331, %s333
      %p340 = scmp.eq.s32.totalorder %s29, 1
      %p341 = por %p339, %p340
      %p342 = scmp.ne.s32.totalorder %s333, %s334
      %p343 = scmp.eq.s32.totalorder %s29, 0
      %p344 = por %p342, %p343
      %p345 = scmp.ne.s32.totalorder %s333, %s334
      %p346 = scmp.eq.s32.totalorder %s30, 1
      %p347 = por %p345, %p346
      %p349 = scmp.ne.s32.totalorder %s334, %s348
      %p350 = scmp.eq.s32.totalorder %s30, 0
      %p351 = por %p349, %p350
      %s352 = ssub.s32 %s24, %s31
      %p353 = scmp.eq.s32.totalorder %s352, 0
      %s355 = sadd.s32 %s354, 1
      %s356 = scalar_select %p353, %s354, %s355
      %p359 = pneg %p353
      %p360 = scmp.eq.s32.totalorder %s24, 1
      %p361 = por %p359, %p360
      %p362 = scmp.ne.s32.totalorder %s354, %s357
      %p363 = scmp.eq.s32.totalorder %s24, 0
      %p364 = por %p362, %p363
      %p365 = scmp.ne.s32.totalorder %s354, %s357
      %p366 = scmp.eq.s32.totalorder %s29, 1
      %p367 = por %p365, %p366
      %p368 = scmp.ne.s32.totalorder %s357, %s358
      %p369 = scmp.eq.s32.totalorder %s29, 0
      %p370 = por %p368, %p369
      %p371 = scmp.ne.s32.totalorder %s357, %s358
      %p372 = scmp.eq.s32.totalorder %s30, 1
      %p373 = por %p371, %p372
      %p375 = scmp.ne.s32.totalorder %s358, %s374
      %p376 = scmp.eq.s32.totalorder %s30, 0
      %p377 = por %p375, %p376
      %p378 = scmp.le.s32.totalorder 1, %s24
      %p379 = scmp.lt.s32.totalorder %s24, 3
      %p380 = pnand %p378, %p379
      %p381 = pneg %p380
      // Predicated region
      $region9: #{jumping_qnetwork_forward.1} parent=5 // pred_check
        _
      $region10: #{jumping_qnetwork_forward.1} parent=5 // pred_check_branch
        %383 = sbr.rel (%p380) target = $region12
      $region11: #{jumping_qnetwork_forward.1} parent=5 // pred_region
        %s384 = ssub.s32 %s24, 1
        // Predicated region
        $region13: #{jumping_qnetwork_forward.1} parent=11 // pred_check
          %p385 = pneg %p71
        $region14: #{jumping_qnetwork_forward.1} parent=11 // pred_check_branch
          %387 = sbr.rel (%p385) target = $region16
        $region15: #{jumping_qnetwork_forward.1} parent=11 // pred_region
          _
        $region16: #{jumping_qnetwork_forward.1} parent=11 // pred_fallthru
          _
        // Predicated region
        $region17: #{jumping_qnetwork_forward.1} parent=11 // pred_check
          %p388 = pneg %p92
        $region18: #{jumping_qnetwork_forward.1} parent=11 // pred_check_branch
          %390 = sbr.rel (%p388) target = $region20
        $region19: #{jumping_qnetwork_forward.1} parent=11 // pred_region
          _
        $region20: #{jumping_qnetwork_forward.1} parent=11 // pred_fallthru
          _
        // Predicated region
        $region21: #{jumping_qnetwork_forward.1} parent=11 // pred_check
          %p391 = pneg %p113
        $region22: #{jumping_qnetwork_forward.1} parent=11 // pred_check_branch
          %393 = sbr.rel (%p391) target = $region24
        $region23: #{jumping_qnetwork_forward.1} parent=11 // pred_region
          _
        $region24: #{jumping_qnetwork_forward.1} parent=11 // pred_fallthru
          _
        // Predicated region
        $region25: #{jumping_qnetwork_forward.1} parent=11 // pred_check
          %p394 = pneg %p134
        $region26: #{jumping_qnetwork_forward.1} parent=11 // pred_check_branch
          %396 = sbr.rel (%p394) target = $region28
        $region27: #{jumping_qnetwork_forward.1} parent=11 // pred_region
          _
        $region28: #{jumping_qnetwork_forward.1} parent=11 // pred_fallthru
          _
        // Predicated region
        $region29: #{jumping_qnetwork_forward.1} parent=11 // pred_check
          %p397 = pneg %p155
        $region30: #{jumping_qnetwork_forward.1} parent=11 // pred_check_branch
          %399 = sbr.rel (%p397) target = $region32
        $region31: #{jumping_qnetwork_forward.1} parent=11 // pred_region
          _
        $region32: #{jumping_qnetwork_forward.1} parent=11 // pred_fallthru
          _
        // Predicated region
        $region33: #{jumping_qnetwork_forward.1} parent=11 // pred_check
          %p400 = pneg %p176
        $region34: #{jumping_qnetwork_forward.1} parent=11 // pred_check_branch
          %402 = sbr.rel (%p400) target = $region36
        $region35: #{jumping_qnetwork_forward.1} parent=11 // pred_region
          _
        $region36: #{jumping_qnetwork_forward.1} parent=11 // pred_fallthru
          _
        // Predicated region
        $region37: #{jumping_qnetwork_forward.1} parent=11 // pred_check
          %p403 = pneg %p197
        $region38: #{jumping_qnetwork_forward.1} parent=11 // pred_check_branch
          %405 = sbr.rel (%p403) target = $region40
        $region39: #{jumping_qnetwork_forward.1} parent=11 // pred_region
          _
        $region40: #{jumping_qnetwork_forward.1} parent=11 // pred_fallthru
          _
        // Predicated region
        $region41: #{jumping_qnetwork_forward.1} parent=11 // pred_check
          %p406 = pneg %p218
        $region42: #{jumping_qnetwork_forward.1} parent=11 // pred_check_branch
          %408 = sbr.rel (%p406) target = $region44
        $region43: #{jumping_qnetwork_forward.1} parent=11 // pred_region
          _
        $region44: #{jumping_qnetwork_forward.1} parent=11 // pred_fallthru
          _
        // Predicated region
        $region45: #{jumping_qnetwork_forward.1} parent=11 // pred_check
          %p409 = pneg %p239
        $region46: #{jumping_qnetwork_forward.1} parent=11 // pred_check_branch
          %411 = sbr.rel (%p409) target = $region48
        $region47: #{jumping_qnetwork_forward.1} parent=11 // pred_region
          _
        $region48: #{jumping_qnetwork_forward.1} parent=11 // pred_fallthru
          _
        // Predicated region
        $region49: #{jumping_qnetwork_forward.1} parent=11 // pred_check
          %p412 = pneg %p260
        $region50: #{jumping_qnetwork_forward.1} parent=11 // pred_check_branch
          %414 = sbr.rel (%p412) target = $region52
        $region51: #{jumping_qnetwork_forward.1} parent=11 // pred_region
          _
        $region52: #{jumping_qnetwork_forward.1} parent=11 // pred_fallthru
          _
        // Predicated region
        $region53: #{jumping_qnetwork_forward.1} parent=11 // pred_check
          %p415 = pneg %p281
        $region54: #{jumping_qnetwork_forward.1} parent=11 // pred_check_branch
          %417 = sbr.rel (%p415) target = $region56
        $region55: #{jumping_qnetwork_forward.1} parent=11 // pred_region
          _
        $region56: #{jumping_qnetwork_forward.1} parent=11 // pred_fallthru
          _
        // Predicated region
        $region57: #{jumping_qnetwork_forward.1} parent=11 // pred_check
          %p418 = pneg %p302
        $region58: #{jumping_qnetwork_forward.1} parent=11 // pred_check_branch
          %420 = sbr.rel (%p418) target = $region60
        $region59: #{jumping_qnetwork_forward.1} parent=11 // pred_region
          _
        $region60: #{jumping_qnetwork_forward.1} parent=11 // pred_fallthru
          _
        // Predicated region
        $region61: #{jumping_qnetwork_forward.1} parent=11 // pred_check
          %p421 = pneg %p323
        $region62: #{jumping_qnetwork_forward.1} parent=11 // pred_check_branch
          %423 = sbr.rel (%p421) target = $region64
        $region63: #{jumping_qnetwork_forward.1} parent=11 // pred_region
          _
        $region64: #{jumping_qnetwork_forward.1} parent=11 // pred_fallthru
          _
        // Predicated region
        $region65: #{jumping_qnetwork_forward.1} parent=11 // pred_check
          %p424 = pneg %p344
        $region66: #{jumping_qnetwork_forward.1} parent=11 // pred_check_branch
          %426 = sbr.rel (%p424) target = $region68
        $region67: #{jumping_qnetwork_forward.1} parent=11 // pred_region
          _
        $region68: #{jumping_qnetwork_forward.1} parent=11 // pred_fallthru
          _
      $region12: #{jumping_qnetwork_forward.1} parent=5 // pred_fallthru
        _
      %p427 = scmp.lt.s32.totalorder %s24, 2
      // Predicated region
      $region69: #{jumping_qnetwork_forward.1} parent=5 // pred_check
        %p428 = pneg %p427
      $region70: #{jumping_qnetwork_forward.1} parent=5 // pred_check_branch
        %430 = sbr.rel (%p428) target = $region72
      $region71: #{jumping_qnetwork_forward.1} parent=5 // pred_region
        // Predicated region
        $region73: #{jumping_qnetwork_forward.1} parent=71 // pred_check
          %p431 = pneg %p44
        $region74: #{jumping_qnetwork_forward.1} parent=71 // pred_check_branch
          %433 = sbr.rel (%p431) target = $region76
        $region75: #{jumping_qnetwork_forward.1} parent=71 // pred_region
          %p434 = scmp.lt.s32.totalorder %s24, 1
          %s435 = scalar_select %p434, %s24, 1
          %s436 = smul.addr %s435, 25
          %s437 = smul.addr %s436, 4
          %s438 = scalar_lea.vmem %s0, %s437
        $region76: #{jumping_qnetwork_forward.1} parent=71 // pred_fallthru
          _
      $region72: #{jumping_qnetwork_forward.1} parent=5 // pred_fallthru
        _
      %p439 = scmp.le.s32.totalorder 1, %s24
      %p440 = scmp.lt.s32.totalorder %s24, 3
      %p441 = pnand %p439, %p440
      %p442 = pneg %p441
      // Predicated region
      $region77: #{jumping_qnetwork_forward.1} parent=5 // pred_check
        _
      $region78: #{jumping_qnetwork_forward.1} parent=5 // pred_check_branch
        %444 = sbr.rel (%p441) target = $region80
      $region79: #{jumping_qnetwork_forward.1} parent=5 // pred_region
        %s445 = ssub.s32 %s24, 1
        %p446 = scmp.lt.s32.totalorder %s29, 1
        %s447 = scalar_select %p446, %s29, 1
        %s448 = smul.addr %s447, 25
        %s449 = smul.addr %s448, 4
        %s450 = scalar_lea.vmem %s0, %s449
        %p451 = pneg %p50
        %p452 = pneg %p47
        %p453 = pneg %p71
        %p454 = pneg %p68
        %p455 = pneg %p92
        %p456 = pneg %p89
        %p457 = pneg %p113
        %p458 = pneg %p110
        %p459 = pneg %p134
        %p460 = pneg %p131
        %p461 = pneg %p155
        %p462 = pneg %p152
        %p463 = pneg %p176
        %p464 = pneg %p173
        %p465 = pneg %p197
        %p466 = pneg %p194
        %p467 = pneg %p218
        %p468 = pneg %p215
        %p469 = pneg %p239
        %p470 = pneg %p236
        %p471 = pneg %p260
        %p472 = pneg %p257
        %p473 = pneg %p281
        %p474 = pneg %p278
        %p475 = pneg %p302
        %p476 = pneg %p299
        %p477 = pneg %p323
        %p478 = pneg %p320
        %p479 = pneg %p344
        %p480 = pneg %p341
        %p481 = pneg %p370
        %p482 = pneg %p367
        %s483 = sand.u32 %s357, 1
        %s484 = scalar_lea.sflag [#allocation3], %s483
        %s485 = sand.u32 %s357, 1
        %s486 = scalar_lea.vmem [#allocation2], %s485
        %p487 = scmp.lt.s32.totalorder %s29, 1
        %s488 = scalar_select %p487, %s29, 1
        %s489 = smul.addr %s488, 25
        %s490 = smul.addr %s489, 4
        %s491 = scalar_lea.vmem %s0, %s490
        %v493 = vld [vmem:[%s491] sm:$0xf]
        %v494 = vld [vmem:[%s491 + $0x4] sm:$0xf]
        %v495 = vld [vmem:[%s491 + $0x8] sm:$0xf]
        %v496 = vld [vmem:[%s491 + $0xc] sm:$0xf]
        %v497 = vld [vmem:[%s491 + $0x10] sm:$0xf]
        %v498 = vld [vmem:[%s491 + $0x14] sm:$0xf]
        %v499 = vld [vmem:[%s491 + $0x18] sm:$0xf]
        %v500 = vld [vmem:[%s491 + $0x1c] sm:$0xf]
        %v501 = vld [vmem:[%s491 + $0x20] sm:$0xf]
        %v502 = vld [vmem:[%s491 + $0x24] sm:$0xf]
        %v503 = vld [vmem:[%s491 + $0x28] sm:$0xf]
        %v504 = vld [vmem:[%s491 + $0x2c] sm:$0xf]
        %v505 = vld [vmem:[%s491 + $0x30] sm:$0xf]
        %v506 = vld [vmem:[%s491 + $0x34] sm:$0xf]
        %v507 = vld [vmem:[%s491 + $0x38] sm:$0xf]
        %v508 = vld [vmem:[%s491 + $0x3c] sm:$0xf]
        %v509 = vld [vmem:[%s491 + $0x40] sm:$0xf]
        %v510 = vld [vmem:[%s491 + $0x44] sm:$0xf]
        %v511 = vld [vmem:[%s491 + $0x48] sm:$0xf]
        %v512 = vld [vmem:[%s491 + $0x4c] sm:$0xf]
        %v513 = vld [vmem:[%s491 + $0x50] sm:$0xf]
        %v514 = vld [vmem:[%s491 + $0x54] sm:$0xf]
        %v515 = vld [vmem:[%s491 + $0x58] sm:$0xf]
        %v516 = vld [vmem:[%s491 + $0x5c] sm:$0xf]
        %v517 = vld [vmem:[%s491 + $0x60] sm:$0x3]
        %v518 = vld [vmem:[%s1] sm:$0xf]
        %v519 = vld [vmem:[%s1 + $0x4] sm:$0xf]
        %v520 = vld [vmem:[%s1 + $0x8] sm:$0xf]
        %v521 = vld [vmem:[%s1 + $0xc] sm:$0xf]
        %v522 = vld [vmem:[%s1 + $0x10] sm:$0xf]
        %v523 = vld [vmem:[%s1 + $0x14] sm:$0xf]
        %v524 = vld [vmem:[%s1 + $0x18] sm:$0xf]
        %v525 = vld [vmem:[%s1 + $0x1c] sm:$0xf]
        %v526 = vld [vmem:[%s2] sm:$0x1]
        %v528 = vlaneseq
        %v529 = vshrl.u32 %v528, 7
        %v530 = vsub.s32 0, %v529
        %v531 = vrot.slane %v526, %v530
        %v558 = vunpack.c.l.b16 %v493
        %v559 = vunpack.c.l.b16 %v494
        %v560 = vunpack.c.l.b16 %v495
        %v561 = vunpack.c.l.b16 %v496
        %v562 = vunpack.c.l.b16 %v497
        %v563 = vunpack.c.l.b16 %v498
        %v564 = vunpack.c.l.b16 %v499
        %v565 = vunpack.c.l.b16 %v500
        %v566 = vunpack.c.l.b16 %v501
        %v567 = vunpack.c.l.b16 %v502
        %v568 = vunpack.c.l.b16 %v503
        %v569 = vunpack.c.l.b16 %v504
        %v570 = vunpack.c.l.b16 %v505
        %v571 = vunpack.c.l.b16 %v506
        %v572 = vunpack.c.l.b16 %v507
        %v573 = vunpack.c.l.b16 %v508
        %v574 = vunpack.c.l.b16 %v509
        %v575 = vunpack.c.l.b16 %v510
        %v576 = vunpack.c.l.b16 %v511
        %v577 = vunpack.c.l.b16 %v512
        %v578 = vunpack.c.l.b16 %v513
        %v579 = vunpack.c.l.b16 %v514
        %v580 = vunpack.c.l.b16 %v515
        %v581 = vunpack.c.l.b16 %v516
        %v582 = vunpack.c.l.b16 %v517
        %v583 = vpack.c.b16 %v559, %v558
        %v584 = vpack.c.b16 %v561, %v560
        %v585 = vpack.c.b16 %v563, %v562
        %v586 = vpack.c.b16 %v565, %v564
        %v587 = vpack.c.b16 %v567, %v566
        %v588 = vpack.c.b16 %v569, %v568
        %v589 = vpack.c.b16 %v571, %v570
        %v590 = vpack.c.b16 %v573, %v572
        %v591 = vpack.c.b16 %v575, %v574
        %v592 = vpack.c.b16 %v577, %v576
        %v593 = vpack.c.b16 %v579, %v578
        %v594 = vpack.c.b16 %v581, %v580
        %v595 = vpack.c.b16 %v582, %v582
        %v604 = vunpack.c.l.b16 %v518
        %v605 = vunpack.c.l.b16 %v519
        %v606 = vunpack.c.l.b16 %v520
        %v607 = vunpack.c.l.b16 %v521
        %v608 = vunpack.c.l.b16 %v522
        %v609 = vunpack.c.l.b16 %v523
        %v610 = vunpack.c.l.b16 %v524
        %v611 = vunpack.c.l.b16 %v525
        %v612 = vpack.c.b16 %v605, %v604
        %v613 = vpack.c.b16 %v607, %v606
        %v614 = vpack.c.b16 %v609, %v608
        %v615 = vpack.c.b16 %v611, %v610
        %vm620 = vcmask 523264
        %v622 = vsel %vm620, %v583, 0
        %v625 = vsel %vm620, %v584, 0
        %v628 = vsel %vm620, %v585, 0
        %v631 = vsel %vm620, %v586, 0
        %v634 = vsel %vm620, %v587, 0
        %v637 = vsel %vm620, %v588, 0
        %v640 = vsel %vm620, %v589, 0
        %v643 = vsel %vm620, %v590, 0
        %v646 = vsel %vm620, %v591, 0
        %v649 = vsel %vm620, %v592, 0
        %v652 = vsel %vm620, %v593, 0
        %v655 = vsel %vm620, %v594, 0
        %v658 = vsel %vm620, %v595, 0
        %660 = vmatprep.subr.bf16.mxu0 0
        %661 = vmatpush1.bf16.msra.mxu0 %v612
        %662 = vmatprep.subr.bf16.mxu0 0
        %663 = vmatpush1.bf16.msra.mxu0 %v613
        %664 = vmatprep.subr.bf16.mxu0 0
        %665 = vmatpush1.bf16.msra.mxu0 %v614
        %666 = vmatprep.subr.bf16.mxu0 0
        %667 = vmatpush1.bf16.msra.mxu0 %v615
        %668 = vmatprep.subr.bf16.mxu0 0
        %669 = vmatpush1.bf16.msra.mxu0 0
        %670 = vmatprep.subr.bf16.mxu0 0
        %671 = vmatpush1.bf16.msra.mxu0 0
        %672 = vmatprep.subr.bf16.mxu0 0
        %673 = vmatpush1.bf16.msra.mxu0 0
        %674 = vmatprep.subr.bf16.mxu0 0
        %675 = vmatpush1.bf16.msra.mxu0 0
        %676 = vmatprep.subr.bf16.mxu0 0
        %677 = vmatpush1.bf16.msra.mxu0 0
        %678 = vmatprep.subr.bf16.mxu0 0
        %679 = vmatpush1.bf16.msra.mxu0 0
        %680 = vmatprep.subr.bf16.mxu0 0
        %681 = vmatpush1.bf16.msra.mxu0 0
        %682 = vmatprep.subr.bf16.mxu0 0
        %683 = vmatpush1.bf16.msra.mxu0 0
        %684 = vmatprep.subr.bf16.mxu0 0
        %685 = vmatpush1.bf16.msra.mxu0 0
        %686 = vmatprep.subr.bf16.mxu0 0
        %687 = vmatpush1.bf16.msra.mxu0 0
        %688 = vmatprep.subr.bf16.mxu0 0
        %689 = vmatpush1.bf16.msra.mxu0 0
        %690 = vmatprep.subr.bf16.mxu0 0
        %691 = vmatpush1.bf16.msra.mxu0 0
        %692 = vmatprep.mubr.bf16.mxu0 0
        %693 = vmatmul.mubr.bf16.gmra.mrb[0].mxu0 %v622
        %v694 = vpop.f32.mrb[0].mxu0
        %v695 = vadd.f32 %v531, %v694
        %v696 = vpop.f32.mrb[0].mxu0
        %v697 = vpop.f32.mrb[0].mxu0
        %v698 = vadd.f32 %v531, %v697
        %v699 = vpop.f32.mrb[0].mxu0
        %700 = vmatprep.mubr.bf16.mxu0 0
        %701 = vmatmul.mubr.bf16.gmra.mrb[0].mxu0 %v625
        %v702 = vpop.f32.mrb[0].mxu0
        %v703 = vadd.f32 %v531, %v702
        %v704 = vpop.f32.mrb[0].mxu0
        %v705 = vpop.f32.mrb[0].mxu0
        %v706 = vadd.f32 %v531, %v705
        %v707 = vpop.f32.mrb[0].mxu0
        %708 = vmatprep.mubr.bf16.mxu0 0
        %709 = vmatmul.mubr.bf16.gmra.mrb[0].mxu0 %v628
        %v710 = vpop.f32.mrb[0].mxu0
        %v711 = vadd.f32 %v531, %v710
        %v712 = vpop.f32.mrb[0].mxu0
        %v713 = vpop.f32.mrb[0].mxu0
        %v714 = vadd.f32 %v531, %v713
        %v715 = vpop.f32.mrb[0].mxu0
        %716 = vmatprep.mubr.bf16.mxu0 0
        %717 = vmatmul.mubr.bf16.gmra.mrb[0].mxu0 %v631
        %v718 = vpop.f32.mrb[0].mxu0
        %v719 = vadd.f32 %v531, %v718
        %v720 = vpop.f32.mrb[0].mxu0
        %v721 = vpop.f32.mrb[0].mxu0
        %v722 = vadd.f32 %v531, %v721
        %v723 = vpop.f32.mrb[0].mxu0
        %724 = vmatprep.mubr.bf16.mxu0 0
        %725 = vmatmul.mubr.bf16.gmra.mrb[0].mxu0 %v634
        %v726 = vpop.f32.mrb[0].mxu0
        %v727 = vadd.f32 %v531, %v726
        %v728 = vpop.f32.mrb[0].mxu0
        %v729 = vpop.f32.mrb[0].mxu0
        %v730 = vadd.f32 %v531, %v729
        %v731 = vpop.f32.mrb[0].mxu0
        %732 = vmatprep.mubr.bf16.mxu0 0
        %733 = vmatmul.mubr.bf16.gmra.mrb[0].mxu0 %v637
        %v734 = vpop.f32.mrb[0].mxu0
        %v735 = vadd.f32 %v531, %v734
        %v736 = vpop.f32.mrb[0].mxu0
        %v737 = vpop.f32.mrb[0].mxu0
        %v738 = vadd.f32 %v531, %v737
        %v739 = vpop.f32.mrb[0].mxu0
        %740 = vmatprep.mubr.bf16.mxu0 0
        %741 = vmatmul.mubr.bf16.gmra.mrb[0].mxu0 %v640
        %v742 = vpop.f32.mrb[0].mxu0
        %v743 = vadd.f32 %v531, %v742
        %v744 = vpop.f32.mrb[0].mxu0
        %v745 = vpop.f32.mrb[0].mxu0
        %v746 = vadd.f32 %v531, %v745
        %v747 = vpop.f32.mrb[0].mxu0
        %748 = vmatprep.mubr.bf16.mxu0 0
        %749 = vmatmul.mubr.bf16.gmra.mrb[0].mxu0 %v643
        %v750 = vpop.f32.mrb[0].mxu0
        %v751 = vadd.f32 %v531, %v750
        %v752 = vpop.f32.mrb[0].mxu0
        %v753 = vpop.f32.mrb[0].mxu0
        %v754 = vadd.f32 %v531, %v753
        %v755 = vpop.f32.mrb[0].mxu0
        %756 = vmatprep.mubr.bf16.mxu0 0
        %757 = vmatmul.mubr.bf16.gmra.mrb[0].mxu0 %v646
        %v758 = vpop.f32.mrb[0].mxu0
        %v759 = vadd.f32 %v531, %v758
        %v760 = vpop.f32.mrb[0].mxu0
        %v761 = vpop.f32.mrb[0].mxu0
        %v762 = vadd.f32 %v531, %v761
        %v763 = vpop.f32.mrb[0].mxu0
        %764 = vmatprep.mubr.bf16.mxu0 0
        %765 = vmatmul.mubr.bf16.gmra.mrb[0].mxu0 %v649
        %v766 = vpop.f32.mrb[0].mxu0
        %v767 = vadd.f32 %v531, %v766
        %v768 = vpop.f32.mrb[0].mxu0
        %v769 = vpop.f32.mrb[0].mxu0
        %v770 = vadd.f32 %v531, %v769
        %v771 = vpop.f32.mrb[0].mxu0
        %772 = vmatprep.mubr.bf16.mxu0 0
        %773 = vmatmul.mubr.bf16.gmra.mrb[0].mxu0 %v652
        %v774 = vpop.f32.mrb[0].mxu0
        %v775 = vadd.f32 %v531, %v774
        %v776 = vpop.f32.mrb[0].mxu0
        %v777 = vpop.f32.mrb[0].mxu0
        %v778 = vadd.f32 %v531, %v777
        %v779 = vpop.f32.mrb[0].mxu0
        %780 = vmatprep.mubr.bf16.mxu0 0
        %781 = vmatmul.mubr.bf16.gmra.mrb[0].mxu0 %v655
        %v782 = vpop.f32.mrb[0].mxu0
        %v783 = vadd.f32 %v531, %v782
        %v784 = vpop.f32.mrb[0].mxu0
        %v785 = vpop.f32.mrb[0].mxu0
        %v786 = vadd.f32 %v531, %v785
        %v787 = vpop.f32.mrb[0].mxu0
        %788 = vmatprep.mubr.bf16.mxu0 0
        %789 = vmatmul.mubr.bf16.gmra.mrb[0].mxu0 %v658
        %v790 = vpop.f32.mrb[0].mxu0
        %v791 = vadd.f32 %v531, %v790
        %v792 = vpop.f32.mrb[0].mxu0
        %v793 = vpop.f32.mrb[0].mxu0
        %v794 = vpop.f32.mrb[0].mxu0
        %795 = vdwg.mxu0
        %v796 = vmax.f32 %v695, 0.0
        %v797 = vmax.f32 %v698, 0.0
        %v798 = vmax.f32 %v703, 0.0
        %v799 = vmax.f32 %v706, 0.0
        %v800 = vmax.f32 %v711, 0.0
        %v801 = vmax.f32 %v714, 0.0
        %v802 = vmax.f32 %v719, 0.0
        %v803 = vmax.f32 %v722, 0.0
        %v804 = vmax.f32 %v727, 0.0
        %v805 = vmax.f32 %v730, 0.0
        %v806 = vmax.f32 %v735, 0.0
        %v807 = vmax.f32 %v738, 0.0
        %v808 = vmax.f32 %v743, 0.0
        %v809 = vmax.f32 %v746, 0.0
        %v810 = vmax.f32 %v751, 0.0
        %v811 = vmax.f32 %v754, 0.0
        %v812 = vmax.f32 %v759, 0.0
        %v813 = vmax.f32 %v762, 0.0
        %v814 = vmax.f32 %v767, 0.0
        %v815 = vmax.f32 %v770, 0.0
        %v816 = vmax.f32 %v775, 0.0
        %v817 = vmax.f32 %v778, 0.0
        %v818 = vmax.f32 %v783, 0.0
        %v819 = vmax.f32 %v786, 0.0
        %v820 = vmax.f32 %v791, 0.0
        %v821 = vpack.c.bf16 %v797, %v796
        %v822 = vpack.c.bf16 %v799, %v798
        %v823 = vpack.c.bf16 %v801, %v800
        %v824 = vpack.c.bf16 %v803, %v802
        %v825 = vpack.c.bf16 %v805, %v804
        %v826 = vpack.c.bf16 %v807, %v806
        %v827 = vpack.c.bf16 %v809, %v808
        %v828 = vpack.c.bf16 %v811, %v810
        %v829 = vpack.c.bf16 %v813, %v812
        %v830 = vpack.c.bf16 %v815, %v814
        %v831 = vpack.c.bf16 %v817, %v816
        %v832 = vpack.c.bf16 %v819, %v818
        %v833 = vpack.c.bf16 %v820, %v820
        %v834 = vld [vmem:[%s3] sm:$0xff]
        %v835 = vld [vmem:[%s3 + $0x8] sm:$0xff]
        %v836 = vld [vmem:[%s3 + $0x10] sm:$0xff]
        %v837 = vld [vmem:[%s3 + $0x18] sm:$0xff]
        %v838 = vld [vmem:[%s3 + $0x20] sm:$0xff]
        %v839 = vld [vmem:[%s3 + $0x28] sm:$0xff]
        %v840 = vld [vmem:[%s3 + $0x30] sm:$0xff]
        %v841 = vld [vmem:[%s3 + $0x38] sm:$0xff]
        %v842 = vld [vmem:[%s3 + $0x40] sm:$0xff]
        %v843 = vld [vmem:[%s3 + $0x48] sm:$0xff]
        %v844 = vld [vmem:[%s3 + $0x50] sm:$0xff]
        %v845 = vld [vmem:[%s3 + $0x58] sm:$0xff]
        %v846 = vld [vmem:[%s3 + $0x60] sm:$0xff]
        %v847 = vld [vmem:[%s3 + $0x68] sm:$0xff]
        %v848 = vld [vmem:[%s3 + $0x70] sm:$0xff]
        %v849 = vld [vmem:[%s3 + $0x78] sm:$0xff]
        %v850 = vld [vmem:[%s3 + $0x80] sm:$0xff]
        %v851 = vld [vmem:[%s3 + $0x88] sm:$0xff]
        %v852 = vld [vmem:[%s3 + $0x90] sm:$0xff]
        %v853 = vld [vmem:[%s3 + $0x98] sm:$0xff]
        %v854 = vld [vmem:[%s3 + $0xa0] sm:$0xff]
        %v855 = vld [vmem:[%s3 + $0xa8] sm:$0xff]
        %v856 = vld [vmem:[%s3 + $0xb0] sm:$0xff]
        %v857 = vld [vmem:[%s3 + $0xb8] sm:$0xff]
        %v858 = vld [vmem:[%s3 + $0xc0] sm:$0xff]
        %v859 = vld [vmem:[%s3 + $0xc8] sm:$0xff]
        %v860 = vld [vmem:[%s3 + $0xd0] sm:$0xff]
        %v861 = vld [vmem:[%s3 + $0xd8] sm:$0xff]
        %v862 = vld [vmem:[%s3 + $0xe0] sm:$0xff]
        %v863 = vld [vmem:[%s3 + $0xe8] sm:$0xff]
        %v864 = vld [vmem:[%s3 + $0xf0] sm:$0xff]
        %v865 = vld [vmem:[%s3 + $0xf8] sm:$0xff]
        %v866 = vld [vmem:[%s3 + $0x100] sm:$0xff]
        %v867 = vld [vmem:[%s3 + $0x108] sm:$0xff]
        %v868 = vld [vmem:[%s3 + $0x110] sm:$0xff]
        %v869 = vld [vmem:[%s3 + $0x118] sm:$0xff]
        %v870 = vld [vmem:[%s3 + $0x120] sm:$0xff]
        %v871 = vld [vmem:[%s3 + $0x128] sm:$0xff]
        %v872 = vld [vmem:[%s3 + $0x130] sm:$0xff]
        %v873 = vld [vmem:[%s3 + $0x138] sm:$0xff]
        %v874 = vld [vmem:[%s3 + $0x140] sm:$0xff]
        %v875 = vld [vmem:[%s3 + $0x148] sm:$0xff]
        %v876 = vld [vmem:[%s3 + $0x150] sm:$0xff]
        %v877 = vld [vmem:[%s3 + $0x158] sm:$0xff]
        %v878 = vld [vmem:[%s3 + $0x160] sm:$0xff]
        %v879 = vld [vmem:[%s3 + $0x168] sm:$0xff]
        %v880 = vld [vmem:[%s3 + $0x170] sm:$0xff]
        %v881 = vld [vmem:[%s3 + $0x178] sm:$0xff]
        %v882 = vld [vmem:[%s3 + $0x180] sm:$0xff]
        %v883 = vld [vmem:[%s3 + $0x188] sm:$0xff]
        %v884 = vld [vmem:[%s3 + $0x190] sm:$0xff]
        %v885 = vld [vmem:[%s3 + $0x198] sm:$0xff]
        %v886 = vld [vmem:[%s3 + $0x1a0] sm:$0xff]
        %v887 = vld [vmem:[%s3 + $0x1a8] sm:$0xff]
        %v888 = vld [vmem:[%s3 + $0x1b0] sm:$0xff]
        %v889 = vld [vmem:[%s3 + $0x1b8] sm:$0xff]
        %v890 = vld [vmem:[%s3 + $0x1c0] sm:$0xff]
        %v891 = vld [vmem:[%s3 + $0x1c8] sm:$0xff]
        %v892 = vld [vmem:[%s3 + $0x1d0] sm:$0xff]
        %v893 = vld [vmem:[%s3 + $0x1d8] sm:$0xff]
        %v894 = vld [vmem:[%s3 + $0x1e0] sm:$0xff]
        %v895 = vld [vmem:[%s3 + $0x1e8] sm:$0xff]
        %v896 = vld [vmem:[%s3 + $0x1f0] sm:$0xff]
        %v897 = vld [vmem:[%s3 + $0x1f8] sm:$0xff]
        %v898 = vld [vmem:[%s3 + $0x200] sm:$0xff]
        %v899 = vld [vmem:[%s3 + $0x208] sm:$0xff]
        %v900 = vld [vmem:[%s3 + $0x210] sm:$0xff]
        %v901 = vld [vmem:[%s3 + $0x218] sm:$0xff]
        %v902 = vld [vmem:[%s3 + $0x220] sm:$0xff]
        %v903 = vld [vmem:[%s3 + $0x228] sm:$0xff]
        %v904 = vld [vmem:[%s3 + $0x230] sm:$0xff]
        %v905 = vld [vmem:[%s3 + $0x238] sm:$0xff]
        %v906 = vld [vmem:[%s3 + $0x240] sm:$0xff]
        %v907 = vld [vmem:[%s3 + $0x248] sm:$0xff]
        %v908 = vld [vmem:[%s3 + $0x250] sm:$0xff]
        %v909 = vld [vmem:[%s3 + $0x258] sm:$0xff]
        %v910 = vld [vmem:[%s3 + $0x260] sm:$0xff]
        %v911 = vld [vmem:[%s3 + $0x268] sm:$0xff]
        %v912 = vld [vmem:[%s3 + $0x270] sm:$0xff]
        %v913 = vld [vmem:[%s3 + $0x278] sm:$0xff]
        %v994 = vunpack.c.l.b16 %v834
        %v995 = vunpack.c.h.b16 %v834
        %v996 = vunpack.c.l.b16 %v835
        %v997 = vunpack.c.h.b16 %v835
        %v998 = vunpack.c.l.b16 %v836
        %v999 = vunpack.c.h.b16 %v836
        %v1000 = vunpack.c.l.b16 %v837
        %v1001 = vunpack.c.h.b16 %v837
        %v1002 = vunpack.c.l.b16 %v838
        %v1003 = vunpack.c.h.b16 %v838
        %v1004 = vunpack.c.l.b16 %v839
        %v1005 = vunpack.c.h.b16 %v839
        %v1006 = vunpack.c.l.b16 %v840
        %v1007 = vunpack.c.h.b16 %v840
        %v1008 = vunpack.c.l.b16 %v841
        %v1009 = vunpack.c.h.b16 %v841
        %v1010 = vunpack.c.l.b16 %v842
        %v1011 = vunpack.c.h.b16 %v842
        %v1012 = vunpack.c.l.b16 %v843
        %v1013 = vunpack.c.h.b16 %v843
        %v1014 = vunpack.c.l.b16 %v844
        %v1015 = vunpack.c.h.b16 %v844
        %v1016 = vunpack.c.l.b16 %v845
        %v1017 = vunpack.c.h.b16 %v845
        %v1018 = vunpack.c.l.b16 %v846
        %v1019 = vunpack.c.h.b16 %v846
        %v1020 = vunpack.c.l.b16 %v847
        %v1021 = vunpack.c.h.b16 %v847
        %v1022 = vunpack.c.l.b16 %v848
        %v1023 = vunpack.c.h.b16 %v848
        %v1024 = vunpack.c.l.b16 %v849
        %v1025 = vunpack.c.h.b16 %v849
        %v1026 = vunpack.c.l.b16 %v850
        %v1027 = vunpack.c.h.b16 %v850
        %v1028 = vunpack.c.l.b16 %v851
        %v1029 = vunpack.c.h.b16 %v851
        %v1030 = vunpack.c.l.b16 %v852
        %v1031 = vunpack.c.h.b16 %v852
        %v1032 = vunpack.c.l.b16 %v853
        %v1033 = vunpack.c.h.b16 %v853
        %v1034 = vunpack.c.l.b16 %v854
        %v1035 = vunpack.c.h.b16 %v854
        %v1036 = vunpack.c.l.b16 %v855
        %v1037 = vunpack.c.h.b16 %v855
        %v1038 = vunpack.c.l.b16 %v856
        %v1039 = vunpack.c.h.b16 %v856
        %v1040 = vunpack.c.l.b16 %v857
        %v1041 = vunpack.c.h.b16 %v857
        %v1042 = vunpack.c.l.b16 %v858
        %v1043 = vunpack.c.h.b16 %v858
        %v1044 = vunpack.c.l.b16 %v859
        %v1045 = vunpack.c.h.b16 %v859
        %v1046 = vunpack.c.l.b16 %v860
        %v1047 = vunpack.c.h.b16 %v860
        %v1048 = vunpack.c.l.b16 %v861
        %v1049 = vunpack.c.h.b16 %v861
        %v1050 = vunpack.c.l.b16 %v862
        %v1051 = vunpack.c.h.b16 %v862
        %v1052 = vunpack.c.l.b16 %v863
        %v1053 = vunpack.c.h.b16 %v863
        %v1054 = vunpack.c.l.b16 %v864
        %v1055 = vunpack.c.h.b16 %v864
        %v1056 = vunpack.c.l.b16 %v865
        %v1057 = vunpack.c.h.b16 %v865
        %v1058 = vunpack.c.l.b16 %v866
        %v1059 = vunpack.c.h.b16 %v866
        %v1060 = vunpack.c.l.b16 %v867
        %v1061 = vunpack.c.h.b16 %v867
        %v1062 = vunpack.c.l.b16 %v868
        %v1063 = vunpack.c.h.b16 %v868
        %v1064 = vunpack.c.l.b16 %v869
        %v1065 = vunpack.c.h.b16 %v869
        %v1066 = vunpack.c.l.b16 %v870
        %v1067 = vunpack.c.h.b16 %v870
        %v1068 = vunpack.c.l.b16 %v871
        %v1069 = vunpack.c.h.b16 %v871
        %v1070 = vunpack.c.l.b16 %v872
        %v1071 = vunpack.c.h.b16 %v872
        %v1072 = vunpack.c.l.b16 %v873
        %v1073 = vunpack.c.h.b16 %v873
        %v1074 = vunpack.c.l.b16 %v874
        %v1075 = vunpack.c.h.b16 %v874
        %v1076 = vunpack.c.l.b16 %v875
        %v1077 = vunpack.c.h.b16 %v875
        %v1078 = vunpack.c.l.b16 %v876
        %v1079 = vunpack.c.h.b16 %v876
        %v1080 = vunpack.c.l.b16 %v877
        %v1081 = vunpack.c.h.b16 %v877
        %v1082 = vunpack.c.l.b16 %v878
        %v1083 = vunpack.c.h.b16 %v878
        %v1084 = vunpack.c.l.b16 %v879
        %v1085 = vunpack.c.h.b16 %v879
        %v1086 = vunpack.c.l.b16 %v880
        %v1087 = vunpack.c.h.b16 %v880
        %v1088 = vunpack.c.l.b16 %v881
        %v1089 = vunpack.c.h.b16 %v881
        %v1090 = vunpack.c.l.b16 %v882
        %v1091 = vunpack.c.h.b16 %v882
        %v1092 = vunpack.c.l.b16 %v883
        %v1093 = vunpack.c.h.b16 %v883
        %v1094 = vunpack.c.l.b16 %v884
        %v1095 = vunpack.c.h.b16 %v884
        %v1096 = vunpack.c.l.b16 %v885
        %v1097 = vunpack.c.h.b16 %v885
        %v1098 = vunpack.c.l.b16 %v886
        %v1099 = vunpack.c.h.b16 %v886
        %v1100 = vunpack.c.l.b16 %v887
        %v1101 = vunpack.c.h.b16 %v887
        %v1102 = vunpack.c.l.b16 %v888
        %v1103 = vunpack.c.h.b16 %v888
        %v1104 = vunpack.c.l.b16 %v889
        %v1105 = vunpack.c.h.b16 %v889
        %v1106 = vunpack.c.l.b16 %v890
        %v1107 = vunpack.c.h.b16 %v890
        %v1108 = vunpack.c.l.b16 %v891
        %v1109 = vunpack.c.h.b16 %v891
        %v1110 = vunpack.c.l.b16 %v892
        %v1111 = vunpack.c.h.b16 %v892
        %v1112 = vunpack.c.l.b16 %v893
        %v1113 = vunpack.c.h.b16 %v893
        %v1114 = vunpack.c.l.b16 %v894
        %v1115 = vunpack.c.h.b16 %v894
        %v1116 = vunpack.c.l.b16 %v895
        %v1117 = vunpack.c.h.b16 %v895
        %v1118 = vunpack.c.l.b16 %v896
        %v1119 = vunpack.c.h.b16 %v896
        %v1120 = vunpack.c.l.b16 %v897
        %v1121 = vunpack.c.h.b16 %v897
        %v1122 = vunpack.c.l.b16 %v898
        %v1123 = vunpack.c.h.b16 %v898
        %v1124 = vunpack.c.l.b16 %v899
        %v1125 = vunpack.c.h.b16 %v899
        %v1126 = vunpack.c.l.b16 %v900
        %v1127 = vunpack.c.h.b16 %v900
        %v1128 = vunpack.c.l.b16 %v901
        %v1129 = vunpack.c.h.b16 %v901
        %v1130 = vunpack.c.l.b16 %v902
        %v1131 = vunpack.c.h.b16 %v902
        %v1132 = vunpack.c.l.b16 %v903
        %v1133 = vunpack.c.h.b16 %v903
        %v1134 = vunpack.c.l.b16 %v904
        %v1135 = vunpack.c.h.b16 %v904
        %v1136 = vunpack.c.l.b16 %v905
        %v1137 = vunpack.c.h.b16 %v905
        %v1138 = vunpack.c.l.b16 %v906
        %v1139 = vunpack.c.h.b16 %v906
        %v1140 = vunpack.c.l.b16 %v907
        %v1141 = vunpack.c.h.b16 %v907
        %v1142 = vunpack.c.l.b16 %v908
        %v1143 = vunpack.c.h.b16 %v908
        %v1144 = vunpack.c.l.b16 %v909
        %v1145 = vunpack.c.h.b16 %v909
        %v1146 = vunpack.c.l.b16 %v910
        %v1147 = vunpack.c.h.b16 %v910
        %v1148 = vunpack.c.l.b16 %v911
        %v1149 = vunpack.c.h.b16 %v911
        %v1150 = vunpack.c.l.b16 %v912
        %v1151 = vunpack.c.h.b16 %v912
        %v1152 = vunpack.c.l.b16 %v913
        %v1153 = vunpack.c.h.b16 %v913
        %v1154 = vpack.c.b16 %v996, %v994
        %v1155 = vpack.c.b16 %v997, %v995
        %v1156 = vpack.c.b16 %v1000, %v998
        %v1157 = vpack.c.b16 %v1001, %v999
        %v1158 = vpack.c.b16 %v1004, %v1002
        %v1159 = vpack.c.b16 %v1005, %v1003
        %v1160 = vpack.c.b16 %v1008, %v1006
        %v1161 = vpack.c.b16 %v1009, %v1007
        %v1162 = vpack.c.b16 %v1012, %v1010
        %v1163 = vpack.c.b16 %v1013, %v1011
        %v1164 = vpack.c.b16 %v1016, %v1014
        %v1165 = vpack.c.b16 %v1017, %v1015
        %v1166 = vpack.c.b16 %v1020, %v1018
        %v1167 = vpack.c.b16 %v1021, %v1019
        %v1168 = vpack.c.b16 %v1024, %v1022
        %v1169 = vpack.c.b16 %v1025, %v1023
        %v1170 = vpack.c.b16 %v1028, %v1026
        %v1171 = vpack.c.b16 %v1029, %v1027
        %v1172 = vpack.c.b16 %v1032, %v1030
        %v1173 = vpack.c.b16 %v1033, %v1031
        %v1174 = vpack.c.b16 %v1036, %v1034
        %v1175 = vpack.c.b16 %v1037, %v1035
        %v1176 = vpack.c.b16 %v1040, %v1038
        %v1177 = vpack.c.b16 %v1041, %v1039
        %v1178 = vpack.c.b16 %v1044, %v1042
        %v1179 = vpack.c.b16 %v1045, %v1043
        %v1180 = vpack.c.b16 %v1048, %v1046
        %v1181 = vpack.c.b16 %v1049, %v1047
        %v1182 = vpack.c.b16 %v1052, %v1050
        %v1183 = vpack.c.b16 %v1053, %v1051
        %v1184 = vpack.c.b16 %v1056, %v1054
        %v1185 = vpack.c.b16 %v1057, %v1055
        %v1186 = vpack.c.b16 %v1060, %v1058
        %v1187 = vpack.c.b16 %v1061, %v1059
        %v1188 = vpack.c.b16 %v1064, %v1062
        %v1189 = vpack.c.b16 %v1065, %v1063
        %v1190 = vpack.c.b16 %v1068, %v1066
        %v1191 = vpack.c.b16 %v1069, %v1067
        %v1192 = vpack.c.b16 %v1072, %v1070
        %v1193 = vpack.c.b16 %v1073, %v1071
        %v1194 = vpack.c.b16 %v1076, %v1074
        %v1195 = vpack.c.b16 %v1077, %v1075
        %v1196 = vpack.c.b16 %v1080, %v1078
        %v1197 = vpack.c.b16 %v1081, %v1079
        %v1198 = vpack.c.b16 %v1084, %v1082
        %v1199 = vpack.c.b16 %v1085, %v1083
        %v1200 = vpack.c.b16 %v1088, %v1086
        %v1201 = vpack.c.b16 %v1089, %v1087
        %v1202 = vpack.c.b16 %v1092, %v1090
        %v1203 = vpack.c.b16 %v1093, %v1091
        %v1204 = vpack.c.b16 %v1096, %v1094
        %v1205 = vpack.c.b16 %v1097, %v1095
        %v1206 = vpack.c.b16 %v1100, %v1098
        %v1207 = vpack.c.b16 %v1101, %v1099
        %v1208 = vpack.c.b16 %v1104, %v1102
        %v1209 = vpack.c.b16 %v1105, %v1103
        %v1210 = vpack.c.b16 %v1108, %v1106
        %v1211 = vpack.c.b16 %v1109, %v1107
        %v1212 = vpack.c.b16 %v1112, %v1110
        %v1213 = vpack.c.b16 %v1113, %v1111
        %v1214 = vpack.c.b16 %v1116, %v1114
        %v1215 = vpack.c.b16 %v1117, %v1115
        %v1216 = vpack.c.b16 %v1120, %v1118
        %v1217 = vpack.c.b16 %v1121, %v1119
        %v1218 = vpack.c.b16 %v1124, %v1122
        %v1219 = vpack.c.b16 %v1125, %v1123
        %v1220 = vpack.c.b16 %v1128, %v1126
        %v1221 = vpack.c.b16 %v1129, %v1127
        %v1222 = vpack.c.b16 %v1132, %v1130
        %v1223 = vpack.c.b16 %v1133, %v1131
        %v1224 = vpack.c.b16 %v1136, %v1134
        %v1225 = vpack.c.b16 %v1137, %v1135
        %v1226 = vpack.c.b16 %v1140, %v1138
        %v1227 = vpack.c.b16 %v1141, %v1139
        %v1228 = vpack.c.b16 %v1144, %v1142
        %v1229 = vpack.c.b16 %v1145, %v1143
        %v1230 = vpack.c.b16 %v1148, %v1146
        %v1231 = vpack.c.b16 %v1149, %v1147
        %v1232 = vpack.c.b16 %v1152, %v1150
        %v1233 = vpack.c.b16 %v1153, %v1151
        %vm1274 = vcmask 556032
        %v1276 = vsel %vm1274, %v1155, 0
        %v1279 = vsel %vm1274, %v1157, 0
        %v1282 = vsel %vm1274, %v1159, 0
        %v1285 = vsel %vm1274, %v1161, 0
        %v1288 = vsel %vm1274, %v1163, 0
        %v1291 = vsel %vm1274, %v1165, 0
        %v1294 = vsel %vm1274, %v1167, 0
        %v1297 = vsel %vm1274, %v1169, 0
        %v1300 = vsel %vm1274, %v1171, 0
        %v1303 = vsel %vm1274, %v1173, 0
        %v1306 = vsel %vm1274, %v1175, 0
        %v1309 = vsel %vm1274, %v1177, 0
        %v1312 = vsel %vm1274, %v1179, 0
        %v1315 = vsel %vm1274, %v1181, 0
        %v1318 = vsel %vm1274, %v1183, 0
        %v1321 = vsel %vm1274, %v1185, 0
        %v1324 = vsel %vm1274, %v1187, 0
        %v1327 = vsel %vm1274, %v1189, 0
        %v1330 = vsel %vm1274, %v1191, 0
        %v1333 = vsel %vm1274, %v1193, 0
        %v1336 = vsel %vm1274, %v1195, 0
        %v1339 = vsel %vm1274, %v1197, 0
        %v1342 = vsel %vm1274, %v1199, 0
        %v1345 = vsel %vm1274, %v1201, 0
        %v1348 = vsel %vm1274, %v1203, 0
        %v1351 = vsel %vm1274, %v1205, 0
        %v1354 = vsel %vm1274, %v1207, 0
        %v1357 = vsel %vm1274, %v1209, 0
        %v1360 = vsel %vm1274, %v1211, 0
        %v1363 = vsel %vm1274, %v1213, 0
        %v1366 = vsel %vm1274, %v1215, 0
        %v1369 = vsel %vm1274, %v1217, 0
        %v1372 = vsel %vm1274, %v1219, 0
        %v1375 = vsel %vm1274, %v1221, 0
        %v1378 = vsel %vm1274, %v1223, 0
        %v1381 = vsel %vm1274, %v1225, 0
        %v1384 = vsel %vm1274, %v1227, 0
        %v1387 = vsel %vm1274, %v1229, 0
        %v1390 = vsel %vm1274, %v1231, 0
        %v1393 = vsel %vm1274, %v1233, 0
        %vm1395 = vcmask 1041408
        %v1397 = vsel %vm1395, %v833, 0
        %1399 = vmatprep.subr.bf16.mxu0 0
        %1400 = vmatpush1.bf16.msra.mxu0 %v821
        %1401 = vmatprep.subr.bf16.mxu0 0
        %1402 = vmatpush1.bf16.msra.mxu0 %v822
        %1403 = vmatprep.subr.bf16.mxu0 0
        %1404 = vmatpush1.bf16.msra.mxu0 %v823
        %1405 = vmatprep.subr.bf16.mxu0 0
        %1406 = vmatpush1.bf16.msra.mxu0 %v824
        %1407 = vmatprep.subr.bf16.mxu0 0
        %1408 = vmatpush1.bf16.msra.mxu0 %v825
        %1409 = vmatprep.subr.bf16.mxu0 0
        %1410 = vmatpush1.bf16.msra.mxu0 %v826
        %1411 = vmatprep.subr.bf16.mxu0 0
        %1412 = vmatpush1.bf16.msra.mxu0 %v827
        %1413 = vmatprep.subr.bf16.mxu0 0
        %1414 = vmatpush1.bf16.msra.mxu0 %v828
        %1415 = vmatprep.subr.bf16.mxu0 0
        %1416 = vmatpush1.bf16.msra.mxu0 %v829
        %1417 = vmatprep.subr.bf16.mxu0 0
        %1418 = vmatpush1.bf16.msra.mxu0 %v830
        %1419 = vmatprep.subr.bf16.mxu0 0
        %1420 = vmatpush1.bf16.msra.mxu0 %v831
        %1421 = vmatprep.subr.bf16.mxu0 0
        %1422 = vmatpush1.bf16.msra.mxu0 %v832
        %1423 = vmatprep.subr.bf16.mxu0 0
        %1424 = vmatpush1.bf16.msra.mxu0 %v1397
        %1425 = vmatprep.subr.bf16.mxu0 0
        %1426 = vmatpush1.bf16.msra.mxu0 0
        %1427 = vmatprep.subr.bf16.mxu0 0
        %1428 = vmatpush1.bf16.msra.mxu0 0
        %1429 = vmatprep.subr.bf16.mxu0 0
        %1430 = vmatpush1.bf16.msra.mxu0 0
        %1431 = vmatprep.mubr.bf16.mxu0 %v1276
        %1432 = vmatmul.mubr.bf16.gmra.mrb[0].mxu0 %v1154
        %v1433 = vpop.f32.mrb[0].mxu0
        %v1434 = vadd.f32 0.0, %v1433
        %v1435 = vpop.f32.mrb[0].mxu0
        %v1436 = vpop.f32.mrb[0].mxu0
        %v1437 = vadd.f32 0.0, %v1436
        %v1438 = vpop.f32.mrb[0].mxu0
        %1439 = vmatprep.mubr.bf16.mxu0 %v1279
        %1440 = vmatmul.mubr.bf16.gmra.mrb[0].mxu0 %v1156
        %v1441 = vpop.f32.mrb[0].mxu0
        %v1442 = vadd.f32 0.0, %v1441
        %v1443 = vpop.f32.mrb[0].mxu0
        %v1444 = vpop.f32.mrb[0].mxu0
        %v1445 = vadd.f32 0.0, %v1444
        %v1446 = vpop.f32.mrb[0].mxu0
        %1447 = vmatprep.mubr.bf16.mxu0 %v1282
        %1448 = vmatmul.mubr.bf16.gmra.mrb[0].mxu0 %v1158
        %v1449 = vpop.f32.mrb[0].mxu0
        %v1450 = vadd.f32 0.0, %v1449
        %v1451 = vpop.f32.mrb[0].mxu0
        %v1452 = vpop.f32.mrb[0].mxu0
        %v1453 = vadd.f32 0.0, %v1452
        %v1454 = vpop.f32.mrb[0].mxu0
        %1455 = vmatprep.mubr.bf16.mxu0 %v1285
        %1456 = vmatmul.mubr.bf16.gmra.mrb[0].mxu0 %v1160
        %v1457 = vpop.f32.mrb[0].mxu0
        %v1458 = vadd.f32 0.0, %v1457
        %v1459 = vpop.f32.mrb[0].mxu0
        %v1460 = vpop.f32.mrb[0].mxu0
        %v1461 = vadd.f32 0.0, %v1460
        %v1462 = vpop.f32.mrb[0].mxu0
        %1463 = vmatprep.mubr.bf16.mxu0 %v1288
        %1464 = vmatmul.mubr.bf16.gmra.mrb[0].mxu0 %v1162
        %v1465 = vpop.f32.mrb[0].mxu0
        %v1466 = vadd.f32 0.0, %v1465
        %v1467 = vpop.f32.mrb[0].mxu0
        %v1468 = vpop.f32.mrb[0].mxu0
        %v1469 = vadd.f32 0.0, %v1468
        %v1470 = vpop.f32.mrb[0].mxu0
        %1471 = vmatprep.mubr.bf16.mxu0 %v1291
        %1472 = vmatmul.mubr.bf16.gmra.mrb[0].mxu0 %v1164
        %v1473 = vpop.f32.mrb[0].mxu0
        %v1474 = vadd.f32 0.0, %v1473
        %v1475 = vpop.f32.mrb[0].mxu0
        %v1476 = vpop.f32.mrb[0].mxu0
        %v1477 = vadd.f32 0.0, %v1476
        %v1478 = vpop.f32.mrb[0].mxu0
        %1479 = vmatprep.mubr.bf16.mxu0 %v1294
        %1480 = vmatmul.mubr.bf16.gmra.mrb[0].mxu0 %v1166
        %v1481 = vpop.f32.mrb[0].mxu0
        %v1482 = vadd.f32 0.0, %v1481
        %v1483 = vpop.f32.mrb[0].mxu0
        %v1484 = vpop.f32.mrb[0].mxu0
        %v1485 = vadd.f32 0.0, %v1484
        %v1486 = vpop.f32.mrb[0].mxu0
        %1487 = vmatprep.mubr.bf16.mxu0 %v1297
        %1488 = vmatmul.mubr.bf16.gmra.mrb[0].mxu0 %v1168
        %v1489 = vpop.f32.mrb[0].mxu0
        %v1490 = vadd.f32 0.0, %v1489
        %v1491 = vpop.f32.mrb[0].mxu0
        %v1492 = vpop.f32.mrb[0].mxu0
        %v1493 = vadd.f32 0.0, %v1492
        %v1494 = vpop.f32.mrb[0].mxu0
        %1495 = vmatprep.mubr.bf16.mxu0 %v1300
        %1496 = vmatmul.mubr.bf16.gmra.mrb[0].mxu0 %v1170
        %v1497 = vpop.f32.mrb[0].mxu0
        %v1498 = vadd.f32 0.0, %v1497
        %v1499 = vpop.f32.mrb[0].mxu0
        %v1500 = vpop.f32.mrb[0].mxu0
        %v1501 = vadd.f32 0.0, %v1500
        %v1502 = vpop.f32.mrb[0].mxu0
        %1503 = vmatprep.mubr.bf16.mxu0 %v1303
        %1504 = vmatmul.mubr.bf16.gmra.mrb[0].mxu0 %v1172
        %v1505 = vpop.f32.mrb[0].mxu0
        %v1506 = vadd.f32 0.0, %v1505
        %v1507 = vpop.f32.mrb[0].mxu0
        %v1508 = vpop.f32.mrb[0].mxu0
        %v1509 = vadd.f32 0.0, %v1508
        %v1510 = vpop.f32.mrb[0].mxu0
        %1511 = vmatprep.mubr.bf16.mxu0 %v1306
        %1512 = vmatmul.mubr.bf16.gmra.mrb[0].mxu0 %v1174
        %v1513 = vpop.f32.mrb[0].mxu0
        %v1514 = vadd.f32 0.0, %v1513
        %v1515 = vpop.f32.mrb[0].mxu0
        %v1516 = vpop.f32.mrb[0].mxu0
        %v1517 = vadd.f32 0.0, %v1516
        %v1518 = vpop.f32.mrb[0].mxu0
        %1519 = vmatprep.mubr.bf16.mxu0 %v1309
        %1520 = vmatmul.mubr.bf16.gmra.mrb[0].mxu0 %v1176
        %v1521 = vpop.f32.mrb[0].mxu0
        %v1522 = vadd.f32 0.0, %v1521
        %v1523 = vpop.f32.mrb[0].mxu0
        %v1524 = vpop.f32.mrb[0].mxu0
        %v1525 = vadd.f32 0.0, %v1524
        %v1526 = vpop.f32.mrb[0].mxu0
        %1527 = vmatprep.mubr.bf16.mxu0 %v1312
        %1528 = vmatmul.mubr.bf16.gmra.mrb[0].mxu0 %v1178
        %v1529 = vpop.f32.mrb[0].mxu0
        %v1530 = vadd.f32 0.0, %v1529
        %v1531 = vpop.f32.mrb[0].mxu0
        %v1532 = vpop.f32.mrb[0].mxu0
        %v1533 = vadd.f32 0.0, %v1532
        %v1534 = vpop.f32.mrb[0].mxu0
        %1535 = vmatprep.mubr.bf16.mxu0 %v1315
        %1536 = vmatmul.mubr.bf16.gmra.mrb[0].mxu0 %v1180
        %v1537 = vpop.f32.mrb[0].mxu0
        %v1538 = vadd.f32 0.0, %v1537
        %v1539 = vpop.f32.mrb[0].mxu0
        %v1540 = vpop.f32.mrb[0].mxu0
        %v1541 = vadd.f32 0.0, %v1540
        %v1542 = vpop.f32.mrb[0].mxu0
        %1543 = vmatprep.mubr.bf16.mxu0 %v1318
        %1544 = vmatmul.mubr.bf16.gmra.mrb[0].mxu0 %v1182
        %v1545 = vpop.f32.mrb[0].mxu0
        %v1546 = vadd.f32 0.0, %v1545
        %v1547 = vpop.f32.mrb[0].mxu0
        %v1548 = vpop.f32.mrb[0].mxu0
        %v1549 = vadd.f32 0.0, %v1548
        %v1550 = vpop.f32.mrb[0].mxu0
        %1551 = vmatprep.mubr.bf16.mxu0 %v1321
        %1552 = vmatmul.mubr.bf16.gmra.mrb[0].mxu0 %v1184
        %v1553 = vpop.f32.mrb[0].mxu0
        %v1554 = vadd.f32 0.0, %v1553
        %v1555 = vpop.f32.mrb[0].mxu0
        %v1556 = vpop.f32.mrb[0].mxu0
        %v1557 = vadd.f32 0.0, %v1556
        %v1558 = vpop.f32.mrb[0].mxu0
        %1559 = vmatprep.mubr.bf16.mxu0 %v1324
        %1560 = vmatmul.mubr.bf16.gmra.mrb[0].mxu0 %v1186
        %v1561 = vpop.f32.mrb[0].mxu0
        %v1562 = vadd.f32 0.0, %v1561
        %v1563 = vpop.f32.mrb[0].mxu0
        %v1564 = vpop.f32.mrb[0].mxu0
        %v1565 = vadd.f32 0.0, %v1564
        %v1566 = vpop.f32.mrb[0].mxu0
        %1567 = vmatprep.mubr.bf16.mxu0 %v1327
        %1568 = vmatmul.mubr.bf16.gmra.mrb[0].mxu0 %v1188
        %v1569 = vpop.f32.mrb[0].mxu0
        %v1570 = vadd.f32 0.0, %v1569
        %v1571 = vpop.f32.mrb[0].mxu0
        %v1572 = vpop.f32.mrb[0].mxu0
        %v1573 = vadd.f32 0.0, %v1572
        %v1574 = vpop.f32.mrb[0].mxu0
        %1575 = vmatprep.mubr.bf16.mxu0 %v1330
        %1576 = vmatmul.mubr.bf16.gmra.mrb[0].mxu0 %v1190
        %v1577 = vpop.f32.mrb[0].mxu0
        %v1578 = vadd.f32 0.0, %v1577
        %v1579 = vpop.f32.mrb[0].mxu0
        %v1580 = vpop.f32.mrb[0].mxu0
        %v1581 = vadd.f32 0.0, %v1580
        %v1582 = vpop.f32.mrb[0].mxu0
        %1583 = vmatprep.mubr.bf16.mxu0 %v1333
        %1584 = vmatmul.mubr.bf16.gmra.mrb[0].mxu0 %v1192
        %v1585 = vpop.f32.mrb[0].mxu0
        %v1586 = vadd.f32 0.0, %v1585
        %v1587 = vpop.f32.mrb[0].mxu0
        %v1588 = vpop.f32.mrb[0].mxu0
        %v1589 = vadd.f32 0.0, %v1588
        %v1590 = vpop.f32.mrb[0].mxu0
        %1591 = vmatprep.mubr.bf16.mxu0 %v1336
        %1592 = vmatmul.mubr.bf16.gmra.mrb[0].mxu0 %v1194
        %v1593 = vpop.f32.mrb[0].mxu0
        %v1594 = vadd.f32 0.0, %v1593
        %v1595 = vpop.f32.mrb[0].mxu0
        %v1596 = vpop.f32.mrb[0].mxu0
        %v1597 = vadd.f32 0.0, %v1596
        %v1598 = vpop.f32.mrb[0].mxu0
        %1599 = vmatprep.mubr.bf16.mxu0 %v1339
        %1600 = vmatmul.mubr.bf16.gmra.mrb[0].mxu0 %v1196
        %v1601 = vpop.f32.mrb[0].mxu0
        %v1602 = vadd.f32 0.0, %v1601
        %v1603 = vpop.f32.mrb[0].mxu0
        %v1604 = vpop.f32.mrb[0].mxu0
        %v1605 = vadd.f32 0.0, %v1604
        %v1606 = vpop.f32.mrb[0].mxu0
        %1607 = vmatprep.mubr.bf16.mxu0 %v1342
        %1608 = vmatmul.mubr.bf16.gmra.mrb[0].mxu0 %v1198
        %v1609 = vpop.f32.mrb[0].mxu0
        %v1610 = vadd.f32 0.0, %v1609
        %v1611 = vpop.f32.mrb[0].mxu0
        %v1612 = vpop.f32.mrb[0].mxu0
        %v1613 = vadd.f32 0.0, %v1612
        %v1614 = vpop.f32.mrb[0].mxu0
        %1615 = vmatprep.mubr.bf16.mxu0 %v1345
        %1616 = vmatmul.mubr.bf16.gmra.mrb[0].mxu0 %v1200
        %v1617 = vpop.f32.mrb[0].mxu0
        %v1618 = vadd.f32 0.0, %v1617
        %v1619 = vpop.f32.mrb[0].mxu0
        %v1620 = vpop.f32.mrb[0].mxu0
        %v1621 = vadd.f32 0.0, %v1620
        %v1622 = vpop.f32.mrb[0].mxu0
        %1623 = vmatprep.mubr.bf16.mxu0 %v1348
        %1624 = vmatmul.mubr.bf16.gmra.mrb[0].mxu0 %v1202
        %v1625 = vpop.f32.mrb[0].mxu0
        %v1626 = vadd.f32 0.0, %v1625
        %v1627 = vpop.f32.mrb[0].mxu0
        %v1628 = vpop.f32.mrb[0].mxu0
        %v1629 = vadd.f32 0.0, %v1628
        %v1630 = vpop.f32.mrb[0].mxu0
        %1631 = vmatprep.mubr.bf16.mxu0 %v1351
        %1632 = vmatmul.mubr.bf16.gmra.mrb[0].mxu0 %v1204
        %v1633 = vpop.f32.mrb[0].mxu0
        %v1634 = vadd.f32 0.0, %v1633
        %v1635 = vpop.f32.mrb[0].mxu0
        %v1636 = vpop.f32.mrb[0].mxu0
        %v1637 = vadd.f32 0.0, %v1636
        %v1638 = vpop.f32.mrb[0].mxu0
        %1639 = vmatprep.mubr.bf16.mxu0 %v1354
        %1640 = vmatmul.mubr.bf16.gmra.mrb[0].mxu0 %v1206
        %v1641 = vpop.f32.mrb[0].mxu0
        %v1642 = vadd.f32 0.0, %v1641
        %v1643 = vpop.f32.mrb[0].mxu0
        %v1644 = vpop.f32.mrb[0].mxu0
        %v1645 = vadd.f32 0.0, %v1644
        %v1646 = vpop.f32.mrb[0].mxu0
        %1647 = vmatprep.mubr.bf16.mxu0 %v1357
        %1648 = vmatmul.mubr.bf16.gmra.mrb[0].mxu0 %v1208
        %v1649 = vpop.f32.mrb[0].mxu0
        %v1650 = vadd.f32 0.0, %v1649
        %v1651 = vpop.f32.mrb[0].mxu0
        %v1652 = vpop.f32.mrb[0].mxu0
        %v1653 = vadd.f32 0.0, %v1652
        %v1654 = vpop.f32.mrb[0].mxu0
        %1655 = vmatprep.mubr.bf16.mxu0 %v1360
        %1656 = vmatmul.mubr.bf16.gmra.mrb[0].mxu0 %v1210
        %v1657 = vpop.f32.mrb[0].mxu0
        %v1658 = vadd.f32 0.0, %v1657
        %v1659 = vpop.f32.mrb[0].mxu0
        %v1660 = vpop.f32.mrb[0].mxu0
        %v1661 = vadd.f32 0.0, %v1660
        %v1662 = vpop.f32.mrb[0].mxu0
        %1663 = vmatprep.mubr.bf16.mxu0 %v1363
        %1664 = vmatmul.mubr.bf16.gmra.mrb[0].mxu0 %v1212
        %v1665 = vpop.f32.mrb[0].mxu0
        %v1666 = vadd.f32 0.0, %v1665
        %v1667 = vpop.f32.mrb[0].mxu0
        %v1668 = vpop.f32.mrb[0].mxu0
        %v1669 = vadd.f32 0.0, %v1668
        %v1670 = vpop.f32.mrb[0].mxu0
        %1671 = vmatprep.mubr.bf16.mxu0 %v1366
        %1672 = vmatmul.mubr.bf16.gmra.mrb[0].mxu0 %v1214
        %v1673 = vpop.f32.mrb[0].mxu0
        %v1674 = vadd.f32 0.0, %v1673
        %v1675 = vpop.f32.mrb[0].mxu0
        %v1676 = vpop.f32.mrb[0].mxu0
        %v1677 = vadd.f32 0.0, %v1676
        %v1678 = vpop.f32.mrb[0].mxu0
        %1679 = vmatprep.mubr.bf16.mxu0 %v1369
        %1680 = vmatmul.mubr.bf16.gmra.mrb[0].mxu0 %v1216
        %v1681 = vpop.f32.mrb[0].mxu0
        %v1682 = vadd.f32 0.0, %v1681
        %v1683 = vpop.f32.mrb[0].mxu0
        %v1684 = vpop.f32.mrb[0].mxu0
        %v1685 = vadd.f32 0.0, %v1684
        %v1686 = vpop.f32.mrb[0].mxu0
        %1687 = vmatprep.mubr.bf16.mxu0 %v1372
        %1688 = vmatmul.mubr.bf16.gmra.mrb[0].mxu0 %v1218
        %v1689 = vpop.f32.mrb[0].mxu0
        %v1690 = vadd.f32 0.0, %v1689
        %v1691 = vpop.f32.mrb[0].mxu0
        %v1692 = vpop.f32.mrb[0].mxu0
        %v1693 = vadd.f32 0.0, %v1692
        %v1694 = vpop.f32.mrb[0].mxu0
        %1695 = vmatprep.mubr.bf16.mxu0 %v1375
        %1696 = vmatmul.mubr.bf16.gmra.mrb[0].mxu0 %v1220
        %v1697 = vpop.f32.mrb[0].mxu0
        %v1698 = vadd.f32 0.0, %v1697
        %v1699 = vpop.f32.mrb[0].mxu0
        %v1700 = vpop.f32.mrb[0].mxu0
        %v1701 = vadd.f32 0.0, %v1700
        %v1702 = vpop.f32.mrb[0].mxu0
        %1703 = vmatprep.mubr.bf16.mxu0 %v1378
        %1704 = vmatmul.mubr.bf16.gmra.mrb[0].mxu0 %v1222
        %v1705 = vpop.f32.mrb[0].mxu0
        %v1706 = vadd.f32 0.0, %v1705
        %v1707 = vpop.f32.mrb[0].mxu0
        %v1708 = vpop.f32.mrb[0].mxu0
        %v1709 = vadd.f32 0.0, %v1708
        %v1710 = vpop.f32.mrb[0].mxu0
        %1711 = vmatprep.mubr.bf16.mxu0 %v1381
        %1712 = vmatmul.mubr.bf16.gmra.mrb[0].mxu0 %v1224
        %v1713 = vpop.f32.mrb[0].mxu0
        %v1714 = vadd.f32 0.0, %v1713
        %v1715 = vpop.f32.mrb[0].mxu0
        %v1716 = vpop.f32.mrb[0].mxu0
        %v1717 = vadd.f32 0.0, %v1716
        %v1718 = vpop.f32.mrb[0].mxu0
        %1719 = vmatprep.mubr.bf16.mxu0 %v1384
        %1720 = vmatmul.mubr.bf16.gmra.mrb[0].mxu0 %v1226
        %v1721 = vpop.f32.mrb[0].mxu0
        %v1722 = vadd.f32 0.0, %v1721
        %v1723 = vpop.f32.mrb[0].mxu0
        %v1724 = vpop.f32.mrb[0].mxu0
        %v1725 = vadd.f32 0.0, %v1724
        %v1726 = vpop.f32.mrb[0].mxu0
        %1727 = vmatprep.mubr.bf16.mxu0 %v1387
        %1728 = vmatmul.mubr.bf16.gmra.mrb[0].mxu0 %v1228
        %v1729 = vpop.f32.mrb[0].mxu0
        %v1730 = vadd.f32 0.0, %v1729
        %v1731 = vpop.f32.mrb[0].mxu0
        %v1732 = vpop.f32.mrb[0].mxu0
        %v1733 = vadd.f32 0.0, %v1732
        %v1734 = vpop.f32.mrb[0].mxu0
        %1735 = vmatprep.mubr.bf16.mxu0 %v1390
        %1736 = vmatmul.mubr.bf16.gmra.mrb[0].mxu0 %v1230
        %v1737 = vpop.f32.mrb[0].mxu0
        %v1738 = vadd.f32 0.0, %v1737
        %v1739 = vpop.f32.mrb[0].mxu0
        %v1740 = vpop.f32.mrb[0].mxu0
        %v1741 = vadd.f32 0.0, %v1740
        %v1742 = vpop.f32.mrb[0].mxu0
        %1743 = vmatprep.mubr.bf16.mxu0 %v1393
        %1744 = vmatmul.mubr.bf16.gmra.mrb[0].mxu0 %v1232
        %v1745 = vpop.f32.mrb[0].mxu0
        %v1746 = vadd.f32 0.0, %v1745
        %v1747 = vpop.f32.mrb[0].mxu0
        %v1748 = vpop.f32.mrb[0].mxu0
        %v1749 = vadd.f32 0.0, %v1748
        %v1750 = vpop.f32.mrb[0].mxu0
        %1751 = vdwg.mxu0
        %v1752 = vpack.c.bf16 %v1437, %v1434
        %v1753 = vpack.c.bf16 %v1445, %v1442
        %v1754 = vpack.c.bf16 %v1453, %v1450
        %v1755 = vpack.c.bf16 %v1461, %v1458
        %v1756 = vpack.c.bf16 %v1469, %v1466
        %v1757 = vpack.c.bf16 %v1477, %v1474
        %v1758 = vpack.c.bf16 %v1485, %v1482
        %v1759 = vpack.c.bf16 %v1493, %v1490
        %v1760 = vpack.c.bf16 %v1501, %v1498
        %v1761 = vpack.c.bf16 %v1509, %v1506
        %v1762 = vpack.c.bf16 %v1517, %v1514
        %v1763 = vpack.c.bf16 %v1525, %v1522
        %v1764 = vpack.c.bf16 %v1533, %v1530
        %v1765 = vpack.c.bf16 %v1541, %v1538
        %v1766 = vpack.c.bf16 %v1549, %v1546
        %v1767 = vpack.c.bf16 %v1557, %v1554
        %v1768 = vpack.c.bf16 %v1565, %v1562
        %v1769 = vpack.c.bf16 %v1573, %v1570
        %v1770 = vpack.c.bf16 %v1581, %v1578
        %v1771 = vpack.c.bf16 %v1589, %v1586
        %v1772 = vpack.c.bf16 %v1597, %v1594
        %v1773 = vpack.c.bf16 %v1605, %v1602
        %v1774 = vpack.c.bf16 %v1613, %v1610
        %v1775 = vpack.c.bf16 %v1621, %v1618
        %v1776 = vpack.c.bf16 %v1629, %v1626
        %v1777 = vpack.c.bf16 %v1637, %v1634
        %v1778 = vpack.c.bf16 %v1645, %v1642
        %v1779 = vpack.c.bf16 %v1653, %v1650
        %v1780 = vpack.c.bf16 %v1661, %v1658
        %v1781 = vpack.c.bf16 %v1669, %v1666
        %v1782 = vpack.c.bf16 %v1677, %v1674
        %v1783 = vpack.c.bf16 %v1685, %v1682
        %v1784 = vpack.c.bf16 %v1693, %v1690
        %v1785 = vpack.c.bf16 %v1701, %v1698
        %v1786 = vpack.c.bf16 %v1709, %v1706
        %v1787 = vpack.c.bf16 %v1717, %v1714
        %v1788 = vpack.c.bf16 %v1725, %v1722
        %v1789 = vpack.c.bf16 %v1733, %v1730
        %v1790 = vpack.c.bf16 %v1741, %v1738
        %v1791 = vpack.c.bf16 %v1749, %v1746
        %vm1795 = vcmask 1043456
        %v1796 = vrot.slane %v1754, 4
        %v1797 = vrot.slane %v1755, 4
        %v1798 = vsel %vm1795, %v1796, %v1797
        %v1799 = vrot.slane %v1756, 4
        %v1800 = vsel %vm1795, %v1797, %v1799
        %1801 = vrot.lane.b32.xlu0 %v1798, 16
        %v1802 = vpop.permute.xlu0 %1801
        %1803 = vrot.lane.b32.xlu0 %v1800, 16
        %v1804 = vpop.permute.xlu0 %1803
        %1805 = vrot.lane.b32.xlu0 %v1799, 16
        %v1806 = vpop.permute.xlu0 %1805
        %1810 = vrot.lane.b32.xlu0 %v1757, 32
        %v1811 = vpop.permute.xlu0 %1810
        %1812 = vrot.lane.b32.xlu0 %v1758, 32
        %v1813 = vpop.permute.xlu0 %1812
        %1814 = vrot.lane.b32.xlu0 %v1759, 32
        %v1815 = vpop.permute.xlu0 %1814
        %v1818 = vrot.slane %v1759, 4
        %v1819 = vrot.slane %v1760, 4
        %v1820 = vsel %vm1795, %v1818, %v1819
        %v1821 = vrot.slane %v1761, 4
        %v1822 = vsel %vm1795, %v1819, %v1821
        %1823 = vrot.lane.b32.xlu0 %v1820, 48
        %v1824 = vpop.permute.xlu0 %1823
        %1825 = vrot.lane.b32.xlu0 %v1822, 48
        %v1826 = vpop.permute.xlu0 %1825
        %1827 = vrot.lane.b32.xlu0 %v1821, 48
        %v1828 = vpop.permute.xlu0 %1827
        %1832 = vrot.lane.b32.xlu0 %v1762, 64
        %v1833 = vpop.permute.xlu0 %1832
        %1834 = vrot.lane.b32.xlu0 %v1763, 64
        %v1835 = vpop.permute.xlu0 %1834
        %1836 = vrot.lane.b32.xlu0 %v1764, 64
        %v1837 = vpop.permute.xlu0 %1836
        %v1840 = vrot.slane %v1764, 4
        %v1841 = vrot.slane %v1765, 4
        %v1842 = vsel %vm1795, %v1840, %v1841
        %v1843 = vrot.slane %v1766, 4
        %v1844 = vsel %vm1795, %v1841, %v1843
        %1845 = vrot.lane.b32.xlu0 %v1842, 80
        %v1846 = vpop.permute.xlu0 %1845
        %1847 = vrot.lane.b32.xlu0 %v1844, 80
        %v1848 = vpop.permute.xlu0 %1847
        %1849 = vrot.lane.b32.xlu0 %v1843, 80
        %v1850 = vpop.permute.xlu0 %1849
        %1854 = vrot.lane.b32.xlu0 %v1767, 96
        %v1855 = vpop.permute.xlu0 %1854
        %1856 = vrot.lane.b32.xlu0 %v1768, 96
        %v1857 = vpop.permute.xlu0 %1856
        %1858 = vrot.lane.b32.xlu0 %v1769, 96
        %v1859 = vpop.permute.xlu0 %1858
        %v1862 = vrot.slane %v1769, 4
        %v1863 = vrot.slane %v1770, 4
        %v1864 = vsel %vm1795, %v1862, %v1863
        %v1865 = vrot.slane %v1771, 4
        %v1866 = vsel %vm1795, %v1863, %v1865
        %1867 = vrot.lane.b32.xlu0 %v1864, 112
        %v1868 = vpop.permute.xlu0 %1867
        %1869 = vrot.lane.b32.xlu0 %v1866, 112
        %v1870 = vpop.permute.xlu0 %1869
        %1871 = vrot.lane.b32.xlu0 %v1865, 112
        %v1872 = vpop.permute.xlu0 %1871
        %v1876 = vrot.slane %v1774, 4
        %v1877 = vrot.slane %v1775, 4
        %v1878 = vsel %vm1795, %v1876, %v1877
        %v1879 = vrot.slane %v1776, 4
        %v1880 = vsel %vm1795, %v1877, %v1879
        %1881 = vrot.lane.b32.xlu0 %v1878, 16
        %v1882 = vpop.permute.xlu0 %1881
        %1883 = vrot.lane.b32.xlu0 %v1880, 16
        %v1884 = vpop.permute.xlu0 %1883
        %1885 = vrot.lane.b32.xlu0 %v1879, 16
        %v1886 = vpop.permute.xlu0 %1885
        %1890 = vrot.lane.b32.xlu0 %v1777, 32
        %v1891 = vpop.permute.xlu0 %1890
        %1892 = vrot.lane.b32.xlu0 %v1778, 32
        %v1893 = vpop.permute.xlu0 %1892
        %1894 = vrot.lane.b32.xlu0 %v1779, 32
        %v1895 = vpop.permute.xlu0 %1894
        %v1898 = vrot.slane %v1779, 4
        %v1899 = vrot.slane %v1780, 4
        %v1900 = vsel %vm1795, %v1898, %v1899
        %v1901 = vrot.slane %v1781, 4
        %v1902 = vsel %vm1795, %v1899, %v1901
        %1903 = vrot.lane.b32.xlu0 %v1900, 48
        %v1904 = vpop.permute.xlu0 %1903
        %1905 = vrot.lane.b32.xlu0 %v1902, 48
        %v1906 = vpop.permute.xlu0 %1905
        %1907 = vrot.lane.b32.xlu0 %v1901, 48
        %v1908 = vpop.permute.xlu0 %1907
        %1912 = vrot.lane.b32.xlu0 %v1782, 64
        %v1913 = vpop.permute.xlu0 %1912
        %1914 = vrot.lane.b32.xlu0 %v1783, 64
        %v1915 = vpop.permute.xlu0 %1914
        %1916 = vrot.lane.b32.xlu0 %v1784, 64
        %v1917 = vpop.permute.xlu0 %1916
        %v1920 = vrot.slane %v1784, 4
        %v1921 = vrot.slane %v1785, 4
        %v1922 = vsel %vm1795, %v1920, %v1921
        %v1923 = vrot.slane %v1786, 4
        %v1924 = vsel %vm1795, %v1921, %v1923
        %1925 = vrot.lane.b32.xlu0 %v1922, 80
        %v1926 = vpop.permute.xlu0 %1925
        %1927 = vrot.lane.b32.xlu0 %v1924, 80
        %v1928 = vpop.permute.xlu0 %1927
        %1929 = vrot.lane.b32.xlu0 %v1923, 80
        %v1930 = vpop.permute.xlu0 %1929
        %1934 = vrot.lane.b32.xlu0 %v1787, 96
        %v1935 = vpop.permute.xlu0 %1934
        %1936 = vrot.lane.b32.xlu0 %v1788, 96
        %v1937 = vpop.permute.xlu0 %1936
        %1938 = vrot.lane.b32.xlu0 %v1789, 96
        %v1939 = vpop.permute.xlu0 %1938
        %v1942 = vrot.slane %v1789, 4
        %v1943 = vrot.slane %v1790, 4
        %v1944 = vsel %vm1795, %v1942, %v1943
        %v1945 = vrot.slane %v1791, 4
        %v1946 = vsel %vm1795, %v1943, %v1945
        %1947 = vrot.lane.b32.xlu0 %v1944, 112
        %v1948 = vpop.permute.xlu0 %1947
        %1949 = vrot.lane.b32.xlu0 %v1946, 112
        %v1950 = vpop.permute.xlu0 %1949
        %1951 = vrot.lane.b32.xlu0 %v1945, 112
        %v1952 = vpop.permute.xlu0 %1951
        %vm1953 = vcmask 130048
        %v1956 = vsel %vm1953, %v1752, %v1802
        %v1959 = vsel %vm1953, %v1753, %v1804
        %v1962 = vsel %vm1953, %v1754, %v1806
        %vm1963 = vcmask 261120
        %v1965 = vsel %vm1963, %v1956, %v1811
        %v1967 = vsel %vm1963, %v1959, %v1813
        %v1969 = vsel %vm1963, %v1962, %v1815
        %vm1970 = vcmask 392192
        %v1972 = vsel %vm1970, %v1965, %v1824
        %v1974 = vsel %vm1970, %v1967, %v1826
        %v1976 = vsel %vm1970, %v1969, %v1828
        %v1978 = vsel %vm620, %v1972, %v1833
        %v1980 = vsel %vm620, %v1974, %v1835
        %v1982 = vsel %vm620, %v1976, %v1837
        %vm1983 = vcmask 654336
        %v1985 = vsel %vm1983, %v1978, %v1846
        %v1987 = vsel %vm1983, %v1980, %v1848
        %v1989 = vsel %vm1983, %v1982, %v1850
        %vm1990 = vcmask 785408
        %v1992 = vsel %vm1990, %v1985, %v1855
        %v1994 = vsel %vm1990, %v1987, %v1857
        %v1996 = vsel %vm1990, %v1989, %v1859
        %vm1997 = vcmask 916480
        %v1999 = vsel %vm1997, %v1992, %v1868
        %v2002 = vsel %vm1997, %v1994, %v1870
        %v2005 = vsel %vm1997, %v1996, %v1872
        %v2009 = vsel %vm1953, %v1772, %v1882
        %v2012 = vsel %vm1953, %v1773, %v1884
        %v2015 = vsel %vm1953, %v1774, %v1886
        %v2017 = vsel %vm1963, %v2009, %v1891
        %v2019 = vsel %vm1963, %v2012, %v1893
        %v2021 = vsel %vm1963, %v2015, %v1895
        %v2023 = vsel %vm1970, %v2017, %v1904
        %v2025 = vsel %vm1970, %v2019, %v1906
        %v2027 = vsel %vm1970, %v2021, %v1908
        %v2029 = vsel %vm620, %v2023, %v1913
        %v2031 = vsel %vm620, %v2025, %v1915
        %v2033 = vsel %vm620, %v2027, %v1917
        %v2035 = vsel %vm1983, %v2029, %v1926
        %v2037 = vsel %vm1983, %v2031, %v1928
        %v2039 = vsel %vm1983, %v2033, %v1930
        %v2041 = vsel %vm1990, %v2035, %v1935
        %v2043 = vsel %vm1990, %v2037, %v1937
        %v2045 = vsel %vm1990, %v2039, %v1939
        %v2047 = vsel %vm1997, %v2041, %v1948
        %v2050 = vsel %vm1997, %v2043, %v1950
        %v2053 = vsel %vm1997, %v2045, %v1952
        %v2055 = vld [vmem:[%s4] sm:$0xf]
        %v2056 = vld [vmem:[%s4 + $0x4] sm:$0xf]
        %v2057 = vld [vmem:[%s4 + $0x8] sm:$0xf]
        %v2058 = vld [vmem:[%s4 + $0xc] sm:$0xf]
        %v2059 = vld [vmem:[%s4 + $0x10] sm:$0xf]
        %v2060 = vld [vmem:[%s4 + $0x14] sm:$0xf]
        %v2061 = vld [vmem:[%s4 + $0x18] sm:$0xf]
        %v2062 = vld [vmem:[%s4 + $0x1c] sm:$0xf]
        %v2063 = vld [vmem:[%s4 + $0x20] sm:$0xf]
        %v2064 = vld [vmem:[%s4 + $0x24] sm:$0xf]
        %v2065 = vld [vmem:[%s4 + $0x28] sm:$0xf]
        %v2066 = vld [vmem:[%s4 + $0x2c] sm:$0xf]
        %v2067 = vld [vmem:[%s4 + $0x30] sm:$0xf]
        %v2068 = vld [vmem:[%s4 + $0x34] sm:$0xf]
        %v2069 = vld [vmem:[%s4 + $0x38] sm:$0xf]
        %v2070 = vld [vmem:[%s4 + $0x3c] sm:$0xf]
        %v2071 = vld [vmem:[%s4 + $0x40] sm:$0xf]
        %v2072 = vld [vmem:[%s4 + $0x44] sm:$0xf]
        %v2073 = vld [vmem:[%s4 + $0x48] sm:$0xf]
        %v2074 = vld [vmem:[%s4 + $0x4c] sm:$0xf]
        %v2075 = vld [vmem:[%s4 + $0x50] sm:$0xf]
        %v2076 = vld [vmem:[%s4 + $0x54] sm:$0xf]
        %v2077 = vld [vmem:[%s4 + $0x58] sm:$0xf]
        %v2078 = vld [vmem:[%s4 + $0x5c] sm:$0xf]
        %v2079 = vld [vmem:[%s4 + $0x60] sm:$0xf]
        %v2080 = vld [vmem:[%s4 + $0x64] sm:$0xf]
        %v2081 = vld [vmem:[%s4 + $0x68] sm:$0xf]
        %v2082 = vld [vmem:[%s4 + $0x6c] sm:$0xf]
        %v2083 = vld [vmem:[%s4 + $0x70] sm:$0xf]
        %v2084 = vld [vmem:[%s4 + $0x74] sm:$0xf]
        %v2085 = vld [vmem:[%s4 + $0x78] sm:$0xf]
        %v2086 = vld [vmem:[%s4 + $0x7c] sm:$0xf]
        %v2087 = vld [vmem:[%s5] sm:$0x1]
        %v2089 = vlaneseq
        %v2090 = vshrl.u32 %v2089, 7
        %v2091 = vsub.s32 0, %v2090
        %v2092 = vrot.slane %v2087, %v2091
        %v2126 = vunpack.c.l.b16 %v2055
        %v2127 = vunpack.c.l.b16 %v2056
        %v2128 = vunpack.c.l.b16 %v2057
        %v2129 = vunpack.c.l.b16 %v2058
        %v2130 = vunpack.c.l.b16 %v2059
        %v2131 = vunpack.c.l.b16 %v2060
        %v2132 = vunpack.c.l.b16 %v2061
        %v2133 = vunpack.c.l.b16 %v2062
        %v2134 = vunpack.c.l.b16 %v2063
        %v2135 = vunpack.c.l.b16 %v2064
        %v2136 = vunpack.c.l.b16 %v2065
        %v2137 = vunpack.c.l.b16 %v2066
        %v2138 = vunpack.c.l.b16 %v2067
        %v2139 = vunpack.c.l.b16 %v2068
        %v2140 = vunpack.c.l.b16 %v2069
        %v2141 = vunpack.c.l.b16 %v2070
        %v2142 = vunpack.c.l.b16 %v2071
        %v2143 = vunpack.c.l.b16 %v2072
        %v2144 = vunpack.c.l.b16 %v2073
        %v2145 = vunpack.c.l.b16 %v2074
        %v2146 = vunpack.c.l.b16 %v2075
        %v2147 = vunpack.c.l.b16 %v2076
        %v2148 = vunpack.c.l.b16 %v2077
        %v2149 = vunpack.c.l.b16 %v2078
        %v2150 = vunpack.c.l.b16 %v2079
        %v2151 = vunpack.c.l.b16 %v2080
        %v2152 = vunpack.c.l.b16 %v2081
        %v2153 = vunpack.c.l.b16 %v2082
        %v2154 = vunpack.c.l.b16 %v2083
        %v2155 = vunpack.c.l.b16 %v2084
        %v2156 = vunpack.c.l.b16 %v2085
        %v2157 = vunpack.c.l.b16 %v2086
        %v2158 = vpack.c.b16 %v2127, %v2126
        %v2159 = vpack.c.b16 %v2129, %v2128
        %v2160 = vpack.c.b16 %v2131, %v2130
        %v2161 = vpack.c.b16 %v2133, %v2132
        %v2162 = vpack.c.b16 %v2135, %v2134
        %v2163 = vpack.c.b16 %v2137, %v2136
        %v2164 = vpack.c.b16 %v2139, %v2138
        %v2165 = vpack.c.b16 %v2141, %v2140
        %v2166 = vpack.c.b16 %v2143, %v2142
        %v2167 = vpack.c.b16 %v2145, %v2144
        %v2168 = vpack.c.b16 %v2147, %v2146
        %v2169 = vpack.c.b16 %v2149, %v2148
        %v2170 = vpack.c.b16 %v2151, %v2150
        %v2171 = vpack.c.b16 %v2153, %v2152
        %v2172 = vpack.c.b16 %v2155, %v2154
        %v2173 = vpack.c.b16 %v2157, %v2156
        %2190 = vmatprep.subr.bf16.mxu0 0
        %2191 = vmatpush1.bf16.msra.mxu0 %v2158
        %2192 = vmatprep.subr.bf16.mxu0 0
        %2193 = vmatpush1.bf16.msra.mxu0 %v2159
        %2194 = vmatprep.subr.bf16.mxu0 0
        %2195 = vmatpush1.bf16.msra.mxu0 %v2160
        %2196 = vmatprep.subr.bf16.mxu0 0
        %2197 = vmatpush1.bf16.msra.mxu0 %v2161
        %2198 = vmatprep.subr.bf16.mxu0 0
        %2199 = vmatpush1.bf16.msra.mxu0 %v2162
        %2200 = vmatprep.subr.bf16.mxu0 0
        %2201 = vmatpush1.bf16.msra.mxu0 %v2163
        %2202 = vmatprep.subr.bf16.mxu0 0
        %2203 = vmatpush1.bf16.msra.mxu0 %v2164
        %2204 = vmatprep.subr.bf16.mxu0 0
        %2205 = vmatpush1.bf16.msra.mxu0 %v2165
        %2206 = vmatprep.subr.bf16.mxu0 0
        %2207 = vmatpush1.bf16.msra.mxu0 %v2166
        %2208 = vmatprep.subr.bf16.mxu0 0
        %2209 = vmatpush1.bf16.msra.mxu0 %v2167
        %2210 = vmatprep.subr.bf16.mxu0 0
        %2211 = vmatpush1.bf16.msra.mxu0 %v2168
        %2212 = vmatprep.subr.bf16.mxu0 0
        %2213 = vmatpush1.bf16.msra.mxu0 %v2169
        %2214 = vmatprep.subr.bf16.mxu0 0
        %2215 = vmatpush1.bf16.msra.mxu0 %v2170
        %2216 = vmatprep.subr.bf16.mxu0 0
        %2217 = vmatpush1.bf16.msra.mxu0 %v2171
        %2218 = vmatprep.subr.bf16.mxu0 0
        %2219 = vmatpush1.bf16.msra.mxu0 %v2172
        %2220 = vmatprep.subr.bf16.mxu0 0
        %2221 = vmatpush1.bf16.msra.mxu0 %v2173
        %2222 = vmatprep.mubr.bf16.mxu0 %v2047
        %2223 = vmatmul.mubr.bf16.gmra.mrb[0].mxu0 %v1999
        %v2224 = vpop.f32.mrb[0].mxu0
        %v2225 = vadd.f32 %v2092, %v2224
        %v2226 = vpop.f32.mrb[0].mxu0
        %v2227 = vpop.f32.mrb[0].mxu0
        %v2228 = vadd.f32 %v2092, %v2227
        %v2229 = vpop.f32.mrb[0].mxu0
        %2230 = vmatprep.mubr.bf16.mxu0 %v2050
        %2231 = vmatmul.mubr.bf16.gmra.mrb[0].mxu0 %v2002
        %v2232 = vpop.f32.mrb[0].mxu0
        %v2233 = vadd.f32 %v2092, %v2232
        %v2234 = vpop.f32.mrb[0].mxu0
        %v2235 = vpop.f32.mrb[0].mxu0
        %v2236 = vadd.f32 %v2092, %v2235
        %v2237 = vpop.f32.mrb[0].mxu0
        %2238 = vmatprep.mubr.bf16.mxu0 %v2053
        %2239 = vmatmul.mubr.bf16.gmra.mrb[0].mxu0 %v2005
        %v2240 = vpop.f32.mrb[0].mxu0
        %v2241 = vadd.f32 %v2092, %v2240
        %v2242 = vpop.f32.mrb[0].mxu0
        %v2243 = vpop.f32.mrb[0].mxu0
        %v2244 = vpop.f32.mrb[0].mxu0
        %2245 = vdwg.mxu0
        %v2246 = vmax.f32 %v2225, 0.0
        %v2247 = vmax.f32 %v2228, 0.0
        %v2248 = vmax.f32 %v2233, 0.0
        %v2249 = vmax.f32 %v2236, 0.0
        %v2250 = vmax.f32 %v2241, 0.0
        %v2251 = vpack.c.bf16 %v2247, %v2246
        %v2252 = vpack.c.bf16 %v2249, %v2248
        %v2253 = vpack.c.bf16 %v2250, %v2250
        %v2254 = vld [vmem:[%s6] sm:$0xf]
        %v2255 = vld [vmem:[%s6 + $0x4] sm:$0xf]
        %v2256 = vld [vmem:[%s6 + $0x8] sm:$0xf]
        %v2257 = vld [vmem:[%s6 + $0xc] sm:$0xf]
        %v2258 = vld [vmem:[%s6 + $0x10] sm:$0xf]
        %v2259 = vld [vmem:[%s6 + $0x14] sm:$0xf]
        %v2260 = vld [vmem:[%s6 + $0x18] sm:$0xf]
        %v2261 = vld [vmem:[%s6 + $0x1c] sm:$0xf]
        %v2262 = vld [vmem:[%s6 + $0x20] sm:$0xf]
        %v2263 = vld [vmem:[%s6 + $0x24] sm:$0xf]
        %v2264 = vld [vmem:[%s6 + $0x28] sm:$0xf]
        %v2265 = vld [vmem:[%s6 + $0x2c] sm:$0xf]
        %v2266 = vld [vmem:[%s6 + $0x30] sm:$0xf]
        %v2267 = vld [vmem:[%s6 + $0x34] sm:$0xf]
        %v2268 = vld [vmem:[%s6 + $0x38] sm:$0xf]
        %v2269 = vld [vmem:[%s6 + $0x3c] sm:$0xf]
        %v2270 = vld [vmem:[%s6 + $0x40] sm:$0xf]
        %v2271 = vld [vmem:[%s6 + $0x44] sm:$0xf]
        %v2290 = vunpack.c.l.b16 %v2254
        %v2291 = vunpack.c.l.b16 %v2255
        %v2292 = vunpack.c.l.b16 %v2256
        %v2293 = vunpack.c.l.b16 %v2257
        %v2294 = vunpack.c.l.b16 %v2258
        %v2295 = vunpack.c.l.b16 %v2259
        %v2296 = vunpack.c.l.b16 %v2260
        %v2297 = vunpack.c.l.b16 %v2261
        %v2298 = vunpack.c.l.b16 %v2262
        %v2299 = vunpack.c.l.b16 %v2263
        %v2300 = vunpack.c.l.b16 %v2264
        %v2301 = vunpack.c.l.b16 %v2265
        %v2302 = vunpack.c.l.b16 %v2266
        %v2303 = vunpack.c.l.b16 %v2267
        %v2304 = vunpack.c.l.b16 %v2268
        %v2305 = vunpack.c.l.b16 %v2269
        %v2306 = vunpack.c.l.b16 %v2270
        %v2307 = vunpack.c.l.b16 %v2271
        %v2308 = vpack.c.b16 %v2291, %v2290
        %v2309 = vpack.c.b16 %v2293, %v2292
        %v2310 = vpack.c.b16 %v2295, %v2294
        %v2311 = vpack.c.b16 %v2297, %v2296
        %v2312 = vpack.c.b16 %v2299, %v2298
        %v2313 = vpack.c.b16 %v2301, %v2300
        %v2314 = vpack.c.b16 %v2303, %v2302
        %v2315 = vpack.c.b16 %v2305, %v2304
        %v2316 = vpack.c.b16 %v2307, %v2306
        %vm2317 = vcmask 326656
        %v2319 = vsel %vm2317, %v2308, 0
        %v2322 = vsel %vm2317, %v2309, 0
        %v2325 = vsel %vm2317, %v2310, 0
        %v2328 = vsel %vm2317, %v2311, 0
        %v2331 = vsel %vm2317, %v2312, 0
        %v2334 = vsel %vm2317, %v2313, 0
        %v2337 = vsel %vm2317, %v2314, 0
        %v2340 = vsel %vm2317, %v2315, 0
        %v2343 = vsel %vm2317, %v2316, 0
        %vm2345 = vcmask 1043456
        %v2347 = vsel %vm2345, %v2253, 0
        %2349 = vmatprep.subr.bf16.mxu0 0
        %2350 = vmatpush1.bf16.msra.mxu0 %v2251
        %2351 = vmatprep.subr.bf16.mxu0 0
        %2352 = vmatpush1.bf16.msra.mxu0 %v2252
        %2353 = vmatprep.subr.bf16.mxu0 0
        %2354 = vmatpush1.bf16.msra.mxu0 %v2347
        %2355 = vmatprep.subr.bf16.mxu0 0
        %2356 = vmatpush1.bf16.msra.mxu0 0
        %2357 = vmatprep.subr.bf16.mxu0 0
        %2358 = vmatpush1.bf16.msra.mxu0 0
        %2359 = vmatprep.subr.bf16.mxu0 0
        %2360 = vmatpush1.bf16.msra.mxu0 0
        %2361 = vmatprep.subr.bf16.mxu0 0
        %2362 = vmatpush1.bf16.msra.mxu0 0
        %2363 = vmatprep.subr.bf16.mxu0 0
        %2364 = vmatpush1.bf16.msra.mxu0 0
        %2365 = vmatprep.subr.bf16.mxu0 0
        %2366 = vmatpush1.bf16.msra.mxu0 0
        %2367 = vmatprep.subr.bf16.mxu0 0
        %2368 = vmatpush1.bf16.msra.mxu0 0
        %2369 = vmatprep.subr.bf16.mxu0 0
        %2370 = vmatpush1.bf16.msra.mxu0 0
        %2371 = vmatprep.subr.bf16.mxu0 0
        %2372 = vmatpush1.bf16.msra.mxu0 0
        %2373 = vmatprep.subr.bf16.mxu0 0
        %2374 = vmatpush1.bf16.msra.mxu0 0
        %2375 = vmatprep.subr.bf16.mxu0 0
        %2376 = vmatpush1.bf16.msra.mxu0 0
        %2377 = vmatprep.subr.bf16.mxu0 0
        %2378 = vmatpush1.bf16.msra.mxu0 0
        %2379 = vmatprep.subr.bf16.mxu0 0
        %2380 = vmatpush1.bf16.msra.mxu0 0
        %2381 = vmatprep.mubr.bf16.mxu0 0
        %2382 = vmatmul.mubr.bf16.gmra.mrb[0].mxu0 %v2319
        %v2383 = vpop.f32.mrb[0].mxu0
        %v2384 = vadd.f32 0.0, %v2383
        %v2385 = vpop.f32.mrb[0].mxu0
        %v2386 = vpop.f32.mrb[0].mxu0
        %v2387 = vadd.f32 0.0, %v2386
        %v2388 = vpop.f32.mrb[0].mxu0
        %2389 = vmatprep.mubr.bf16.mxu0 0
        %2390 = vmatmul.mubr.bf16.gmra.mrb[0].mxu0 %v2322
        %v2391 = vpop.f32.mrb[0].mxu0
        %v2392 = vadd.f32 0.0, %v2391
        %v2393 = vpop.f32.mrb[0].mxu0
        %v2394 = vpop.f32.mrb[0].mxu0
        %v2395 = vadd.f32 0.0, %v2394
        %v2396 = vpop.f32.mrb[0].mxu0
        %2397 = vmatprep.mubr.bf16.mxu0 0
        %2398 = vmatmul.mubr.bf16.gmra.mrb[0].mxu0 %v2325
        %v2399 = vpop.f32.mrb[0].mxu0
        %v2400 = vadd.f32 0.0, %v2399
        %v2401 = vpop.f32.mrb[0].mxu0
        %v2402 = vpop.f32.mrb[0].mxu0
        %v2403 = vadd.f32 0.0, %v2402
        %v2404 = vpop.f32.mrb[0].mxu0
        %2405 = vmatprep.mubr.bf16.mxu0 0
        %2406 = vmatmul.mubr.bf16.gmra.mrb[0].mxu0 %v2328
        %v2407 = vpop.f32.mrb[0].mxu0
        %v2408 = vadd.f32 0.0, %v2407
        %v2409 = vpop.f32.mrb[0].mxu0
        %v2410 = vpop.f32.mrb[0].mxu0
        %v2411 = vadd.f32 0.0, %v2410
        %v2412 = vpop.f32.mrb[0].mxu0
        %2413 = vmatprep.mubr.bf16.mxu0 0
        %2414 = vmatmul.mubr.bf16.gmra.mrb[0].mxu0 %v2331
        %v2415 = vpop.f32.mrb[0].mxu0
        %v2416 = vadd.f32 0.0, %v2415
        %v2417 = vpop.f32.mrb[0].mxu0
        %v2418 = vpop.f32.mrb[0].mxu0
        %v2419 = vadd.f32 0.0, %v2418
        %v2420 = vpop.f32.mrb[0].mxu0
        %2421 = vmatprep.mubr.bf16.mxu0 0
        %2422 = vmatmul.mubr.bf16.gmra.mrb[0].mxu0 %v2334
        %v2423 = vpop.f32.mrb[0].mxu0
        %v2424 = vadd.f32 0.0, %v2423
        %v2425 = vpop.f32.mrb[0].mxu0
        %v2426 = vpop.f32.mrb[0].mxu0
        %v2427 = vadd.f32 0.0, %v2426
        %v2428 = vpop.f32.mrb[0].mxu0
        %2429 = vmatprep.mubr.bf16.mxu0 0
        %2430 = vmatmul.mubr.bf16.gmra.mrb[0].mxu0 %v2337
        %v2431 = vpop.f32.mrb[0].mxu0
        %v2432 = vadd.f32 0.0, %v2431
        %v2433 = vpop.f32.mrb[0].mxu0
        %v2434 = vpop.f32.mrb[0].mxu0
        %v2435 = vadd.f32 0.0, %v2434
        %v2436 = vpop.f32.mrb[0].mxu0
        %2437 = vmatprep.mubr.bf16.mxu0 0
        %2438 = vmatmul.mubr.bf16.gmra.mrb[0].mxu0 %v2340
        %v2439 = vpop.f32.mrb[0].mxu0
        %v2440 = vadd.f32 0.0, %v2439
        %v2441 = vpop.f32.mrb[0].mxu0
        %v2442 = vpop.f32.mrb[0].mxu0
        %v2443 = vadd.f32 0.0, %v2442
        %v2444 = vpop.f32.mrb[0].mxu0
        %2445 = vmatprep.mubr.bf16.mxu0 0
        %2446 = vmatmul.mubr.bf16.gmra.mrb[0].mxu0 %v2343
        %v2447 = vpop.f32.mrb[0].mxu0
        %v2448 = vadd.f32 0.0, %v2447
        %v2449 = vpop.f32.mrb[0].mxu0
        %v2450 = vpop.f32.mrb[0].mxu0
        %v2451 = vadd.f32 0.0, %v2450
        %v2452 = vpop.f32.mrb[0].mxu0
        %2453 = vdwg.mxu0
        %v2454 = vpack.c.bf16 %v2387, %v2384
        %v2455 = vpack.c.bf16 %v2395, %v2392
        %v2456 = vpack.c.bf16 %v2403, %v2400
        %v2457 = vpack.c.bf16 %v2411, %v2408
        %v2458 = vpack.c.bf16 %v2419, %v2416
        %v2459 = vpack.c.bf16 %v2427, %v2424
        %v2460 = vpack.c.bf16 %v2435, %v2432
        %v2461 = vpack.c.bf16 %v2443, %v2440
        %v2462 = vpack.c.bf16 %v2451, %v2448
        %2464 = vrot.lane.b32.xlu0 %v2455, 32
        %v2465 = vpop.permute.xlu0 %2464
        %2467 = vrot.lane.b32.xlu0 %v2456, 64
        %v2468 = vpop.permute.xlu0 %2467
        %2470 = vrot.lane.b32.xlu0 %v2457, 96
        %v2471 = vpop.permute.xlu0 %2470
        %2473 = vrot.lane.b32.xlu0 %v2459, 32
        %v2474 = vpop.permute.xlu0 %2473
        %2476 = vrot.lane.b32.xlu0 %v2460, 64
        %v2477 = vpop.permute.xlu0 %2476
        %2479 = vrot.lane.b32.xlu0 %v2461, 96
        %v2480 = vpop.permute.xlu0 %2479
        %v2483 = vsel %vm1963, %v2454, %v2465
        %v2485 = vsel %vm620, %v2483, %v2468
        %v2487 = vsel %vm1990, %v2485, %v2471
        %v2491 = vsel %vm1963, %v2458, %v2474
        %v2493 = vsel %vm620, %v2491, %v2477
        %v2495 = vsel %vm1990, %v2493, %v2480
        %v2497 = vld [vmem:[%s7] sm:$0xf]
        %v2498 = vld [vmem:[%s7 + $0x4] sm:$0xf]
        %v2499 = vld [vmem:[%s7 + $0x8] sm:$0xf]
        %v2500 = vld [vmem:[%s7 + $0xc] sm:$0xf]
        %v2501 = vld [vmem:[%s7 + $0x10] sm:$0xf]
        %v2502 = vld [vmem:[%s7 + $0x14] sm:$0xf]
        %v2503 = vld [vmem:[%s7 + $0x18] sm:$0xf]
        %v2504 = vld [vmem:[%s7 + $0x1c] sm:$0xf]
        %v2505 = vld [vmem:[%s7 + $0x20] sm:$0xf]
        %v2506 = vld [vmem:[%s7 + $0x24] sm:$0xf]
        %v2507 = vld [vmem:[%s7 + $0x28] sm:$0xf]
        %v2508 = vld [vmem:[%s7 + $0x2c] sm:$0xf]
        %v2509 = vld [vmem:[%s7 + $0x30] sm:$0xf]
        %v2510 = vld [vmem:[%s7 + $0x34] sm:$0xf]
        %v2511 = vld [vmem:[%s7 + $0x38] sm:$0xf]
        %v2512 = vld [vmem:[%s7 + $0x3c] sm:$0xf]
        %v2513 = vld [vmem:[%s7 + $0x40] sm:$0xf]
        %v2514 = vld [vmem:[%s7 + $0x44] sm:$0xf]
        %v2515 = vld [vmem:[%s7 + $0x48] sm:$0xf]
        %v2516 = vld [vmem:[%s7 + $0x4c] sm:$0xf]
        %v2517 = vld [vmem:[%s7 + $0x50] sm:$0xf]
        %v2518 = vld [vmem:[%s7 + $0x54] sm:$0xf]
        %v2519 = vld [vmem:[%s7 + $0x58] sm:$0xf]
        %v2520 = vld [vmem:[%s7 + $0x5c] sm:$0xf]
        %v2521 = vld [vmem:[%s7 + $0x60] sm:$0xf]
        %v2522 = vld [vmem:[%s7 + $0x64] sm:$0xf]
        %v2523 = vld [vmem:[%s7 + $0x68] sm:$0xf]
        %v2524 = vld [vmem:[%s7 + $0x6c] sm:$0xf]
        %v2525 = vld [vmem:[%s7 + $0x70] sm:$0xf]
        %v2526 = vld [vmem:[%s7 + $0x74] sm:$0xf]
        %v2527 = vld [vmem:[%s7 + $0x78] sm:$0xf]
        %v2528 = vld [vmem:[%s7 + $0x7c] sm:$0xf]
        %v2529 = vld [vmem:[%s7 + $0x80] sm:$0xf]
        %v2530 = vld [vmem:[%s7 + $0x84] sm:$0xf]
        %v2531 = vld [vmem:[%s7 + $0x88] sm:$0xf]
        %v2532 = vld [vmem:[%s7 + $0x8c] sm:$0xf]
        %v2533 = vld [vmem:[%s8] sm:$0x1]
        %v2535 = vlaneseq
        %v2536 = vshrl.u32 %v2535, 7
        %v2537 = vsub.s32 0, %v2536
        %v2538 = vrot.slane %v2533, %v2537
        %v2576 = vunpack.c.l.b16 %v2497
        %v2577 = vunpack.c.l.b16 %v2498
        %v2578 = vunpack.c.l.b16 %v2499
        %v2579 = vunpack.c.l.b16 %v2500
        %v2580 = vunpack.c.l.b16 %v2501
        %v2581 = vunpack.c.l.b16 %v2502
        %v2582 = vunpack.c.l.b16 %v2503
        %v2583 = vunpack.c.l.b16 %v2504
        %v2584 = vunpack.c.l.b16 %v2505
        %v2585 = vunpack.c.l.b16 %v2506
        %v2586 = vunpack.c.l.b16 %v2507
        %v2587 = vunpack.c.l.b16 %v2508
        %v2588 = vunpack.c.l.b16 %v2509
        %v2589 = vunpack.c.l.b16 %v2510
        %v2590 = vunpack.c.l.b16 %v2511
        %v2591 = vunpack.c.l.b16 %v2512
        %v2592 = vunpack.c.l.b16 %v2513
        %v2593 = vunpack.c.l.b16 %v2514
        %v2594 = vunpack.c.l.b16 %v2515
        %v2595 = vunpack.c.l.b16 %v2516
        %v2596 = vunpack.c.l.b16 %v2517
        %v2597 = vunpack.c.l.b16 %v2518
        %v2598 = vunpack.c.l.b16 %v2519
        %v2599 = vunpack.c.l.b16 %v2520
        %v2600 = vunpack.c.l.b16 %v2521
        %v2601 = vunpack.c.l.b16 %v2522
        %v2602 = vunpack.c.l.b16 %v2523
        %v2603 = vunpack.c.l.b16 %v2524
        %v2604 = vunpack.c.l.b16 %v2525
        %v2605 = vunpack.c.l.b16 %v2526
        %v2606 = vunpack.c.l.b16 %v2527
        %v2607 = vunpack.c.l.b16 %v2528
        %v2608 = vunpack.c.l.b16 %v2529
        %v2609 = vunpack.c.l.b16 %v2530
        %v2610 = vunpack.c.l.b16 %v2531
        %v2611 = vunpack.c.l.b16 %v2532
        %v2612 = vpack.c.b16 %v2577, %v2576
        %v2613 = vpack.c.b16 %v2579, %v2578
        %v2614 = vpack.c.b16 %v2581, %v2580
        %v2615 = vpack.c.b16 %v2583, %v2582
        %v2616 = vpack.c.b16 %v2585, %v2584
        %v2617 = vpack.c.b16 %v2587, %v2586
        %v2618 = vpack.c.b16 %v2589, %v2588
        %v2619 = vpack.c.b16 %v2591, %v2590
        %v2620 = vpack.c.b16 %v2593, %v2592
        %v2621 = vpack.c.b16 %v2595, %v2594
        %v2622 = vpack.c.b16 %v2597, %v2596
        %v2623 = vpack.c.b16 %v2599, %v2598
        %v2624 = vpack.c.b16 %v2601, %v2600
        %v2625 = vpack.c.b16 %v2603, %v2602
        %v2626 = vpack.c.b16 %v2605, %v2604
        %v2627 = vpack.c.b16 %v2607, %v2606
        %v2628 = vpack.c.b16 %v2609, %v2608
        %v2629 = vpack.c.b16 %v2611, %v2610
        %v2649 = vsel %vm1963, %v2462, 0
        %2651 = vmatprep.subr.bf16.mxu0 0
        %2652 = vmatpush1.bf16.msra.mxu0 %v2612
        %2653 = vmatprep.subr.bf16.mxu0 0
        %2654 = vmatpush1.bf16.msra.mxu0 %v2613
        %2655 = vmatprep.subr.bf16.mxu0 0
        %2656 = vmatpush1.bf16.msra.mxu0 %v2614
        %2657 = vmatprep.subr.bf16.mxu0 0
        %2658 = vmatpush1.bf16.msra.mxu0 %v2615
        %2659 = vmatprep.subr.bf16.mxu0 0
        %2660 = vmatpush1.bf16.msra.mxu0 %v2616
        %2661 = vmatprep.subr.bf16.mxu0 0
        %2662 = vmatpush1.bf16.msra.mxu0 %v2617
        %2663 = vmatprep.subr.bf16.mxu0 0
        %2664 = vmatpush1.bf16.msra.mxu0 %v2618
        %2665 = vmatprep.subr.bf16.mxu0 0
        %2666 = vmatpush1.bf16.msra.mxu0 %v2619
        %2667 = vmatprep.subr.bf16.mxu0 0
        %2668 = vmatpush1.bf16.msra.mxu0 %v2620
        %2669 = vmatprep.subr.bf16.mxu0 0
        %2670 = vmatpush1.bf16.msra.mxu0 %v2621
        %2671 = vmatprep.subr.bf16.mxu0 0
        %2672 = vmatpush1.bf16.msra.mxu0 %v2622
        %2673 = vmatprep.subr.bf16.mxu0 0
        %2674 = vmatpush1.bf16.msra.mxu0 %v2623
        %2675 = vmatprep.subr.bf16.mxu0 0
        %2676 = vmatpush1.bf16.msra.mxu0 %v2624
        %2677 = vmatprep.subr.bf16.mxu0 0
        %2678 = vmatpush1.bf16.msra.mxu0 %v2625
        %2679 = vmatprep.subr.bf16.mxu0 0
        %2680 = vmatpush1.bf16.msra.mxu0 %v2626
        %2681 = vmatprep.subr.bf16.mxu0 0
        %2682 = vmatpush1.bf16.msra.mxu0 %v2627
        %2683 = vmatprep.mubr.bf16.mxu0 %v2495
        %2684 = vmatmul.mubr.bf16.gmra.mrb[0].mxu0 %v2487
        %v2685 = vpop.f32.mrb[0].mxu0
        %v2686 = vadd.f32 %v2538, %v2685
        %v2687 = vpop.f32.mrb[0].mxu0
        %v2688 = vpop.f32.mrb[0].mxu0
        %v2689 = vadd.f32 %v2538, %v2688
        %v2690 = vpop.f32.mrb[0].mxu0
        %2691 = vdwg.mxu0
        %2692 = vmatprep.subr.bf16.mxu0 0
        %2693 = vmatpush1.bf16.msra.mxu0 %v2628
        %2694 = vmatprep.subr.bf16.mxu0 0
        %2695 = vmatpush1.bf16.msra.mxu0 %v2629
        %2696 = vmatprep.subr.bf16.mxu0 0
        %2697 = vmatpush1.bf16.msra.mxu0 0
        %2698 = vmatprep.subr.bf16.mxu0 0
        %2699 = vmatpush1.bf16.msra.mxu0 0
        %2700 = vmatprep.subr.bf16.mxu0 0
        %2701 = vmatpush1.bf16.msra.mxu0 0
        %2702 = vmatprep.subr.bf16.mxu0 0
        %2703 = vmatpush1.bf16.msra.mxu0 0
        %2704 = vmatprep.subr.bf16.mxu0 0
        %2705 = vmatpush1.bf16.msra.mxu0 0
        %2706 = vmatprep.subr.bf16.mxu0 0
        %2707 = vmatpush1.bf16.msra.mxu0 0
        %2708 = vmatprep.subr.bf16.mxu0 0
        %2709 = vmatpush1.bf16.msra.mxu0 0
        %2710 = vmatprep.subr.bf16.mxu0 0
        %2711 = vmatpush1.bf16.msra.mxu0 0
        %2712 = vmatprep.subr.bf16.mxu0 0
        %2713 = vmatpush1.bf16.msra.mxu0 0
        %2714 = vmatprep.subr.bf16.mxu0 0
        %2715 = vmatpush1.bf16.msra.mxu0 0
        %2716 = vmatprep.subr.bf16.mxu0 0
        %2717 = vmatpush1.bf16.msra.mxu0 0
        %2718 = vmatprep.subr.bf16.mxu0 0
        %2719 = vmatpush1.bf16.msra.mxu0 0
        %2720 = vmatprep.subr.bf16.mxu0 0
        %2721 = vmatpush1.bf16.msra.mxu0 0
        %2722 = vmatprep.subr.bf16.mxu0 0
        %2723 = vmatpush1.bf16.msra.mxu0 0
        %2724 = vmatprep.mubr.bf16.mxu0 0
        %2725 = vmatmul.mubr.bf16.gmra.mrb[0].mxu0 %v2649
        %v2726 = vpop.f32.mrb[0].mxu0
        %v2727 = vadd.f32 %v2686, %v2726
        %v2728 = vpop.f32.mrb[0].mxu0
        %v2729 = vpop.f32.mrb[0].mxu0
        %v2730 = vadd.f32 %v2689, %v2729
        %v2731 = vpop.f32.mrb[0].mxu0
        %2732 = vdwg.mxu0
        %v2733 = vmax.f32 %v2727, 0.0
        %v2734 = vmax.f32 %v2730, 0.0
        %v2735 = vpack.c.bf16 %v2734, %v2733
        %v2737 = vshrl.u32 %v2735, 16
        %2739 = vrot.lane.b32.xlu0 %v2737, 32
        %v2740 = vpop.permute.xlu0 %2739
        %v2742 = vrot.slane %v2735, 1
        %2743 = vrot.lane.b32.xlu0 %v2742, 64
        %v2744 = vpop.permute.xlu0 %2743
        %v2745 = vrot.slane %v2737, 1
        %2746 = vrot.lane.b32.xlu0 %v2745, 96
        %v2747 = vpop.permute.xlu0 %2746
        %v2748 = vrot.slane %v2735, 2
        %v2749 = vrot.slane %v2737, 2
        %2750 = vrot.lane.b32.xlu0 %v2749, 32
        %v2751 = vpop.permute.xlu0 %2750
        %v2752 = vrot.slane %v2735, 3
        %2753 = vrot.lane.b32.xlu0 %v2752, 64
        %v2754 = vpop.permute.xlu0 %2753
        %v2755 = vrot.slane %v2737, 3
        %2756 = vrot.lane.b32.xlu0 %v2755, 96
        %v2757 = vpop.permute.xlu0 %2756
        %v2758 = vrot.slane %v2735, 4
        %v2759 = vrot.slane %v2737, 4
        %2760 = vrot.lane.b32.xlu0 %v2759, 32
        %v2761 = vpop.permute.xlu0 %2760
        %v2762 = vrot.slane %v2735, 5
        %2763 = vrot.lane.b32.xlu0 %v2762, 64
        %v2764 = vpop.permute.xlu0 %2763
        %v2765 = vrot.slane %v2737, 5
        %2766 = vrot.lane.b32.xlu0 %v2765, 96
        %v2767 = vpop.permute.xlu0 %2766
        %v2768 = vrot.slane %v2735, 6
        %v2769 = vrot.slane %v2737, 6
        %2770 = vrot.lane.b32.xlu0 %v2769, 32
        %v2771 = vpop.permute.xlu0 %2770
        %v2772 = vrot.slane %v2735, 7
        %2773 = vrot.lane.b32.xlu0 %v2772, 64
        %v2774 = vpop.permute.xlu0 %2773
        %v2775 = vrot.slane %v2737, 7
        %2776 = vrot.lane.b32.xlu0 %v2775, 96
        %v2777 = vpop.permute.xlu0 %2776
        %v2779 = vsel %vm1963, %v2735, %v2740
        %v2781 = vsel %vm620, %v2779, %v2744
        %v2783 = vsel %vm1990, %v2781, %v2747
        %v2787 = vsel %vm1963, %v2748, %v2751
        %v2789 = vsel %vm620, %v2787, %v2754
        %v2791 = vsel %vm1990, %v2789, %v2757
        %v2795 = vsel %vm1963, %v2758, %v2761
        %v2797 = vsel %vm620, %v2795, %v2764
        %v2799 = vsel %vm1990, %v2797, %v2767
        %v2803 = vsel %vm1963, %v2768, %v2771
        %v2805 = vsel %vm620, %v2803, %v2774
        %v2807 = vsel %vm1990, %v2805, %v2777
        %v2809 = vld [vmem:[%s9] sm:$0xf]
        %v2810 = vld [vmem:[%s9 + $0x4] sm:$0xf]
        %v2811 = vld [vmem:[%s9 + $0x8] sm:$0xf]
        %v2812 = vld [vmem:[%s9 + $0xc] sm:$0xf]
        %v2813 = vld [vmem:[%s9 + $0x10] sm:$0xf]
        %v2814 = vld [vmem:[%s9 + $0x14] sm:$0xf]
        %v2815 = vld [vmem:[%s9 + $0x18] sm:$0xf]
        %v2816 = vld [vmem:[%s9 + $0x1c] sm:$0xf]
        %v2817 = vld [vmem:[%s9 + $0x20] sm:$0xf]
        %v2818 = vld [vmem:[%s9 + $0x24] sm:$0xf]
        %v2819 = vld [vmem:[%s9 + $0x28] sm:$0xf]
        %v2820 = vld [vmem:[%s9 + $0x2c] sm:$0xf]
        %v2821 = vld [vmem:[%s9 + $0x30] sm:$0xf]
        %v2822 = vld [vmem:[%s9 + $0x34] sm:$0xf]
        %v2823 = vld [vmem:[%s9 + $0x38] sm:$0xf]
        %v2824 = vld [vmem:[%s9 + $0x3c] sm:$0xf]
        %v2825 = vld [vmem:[%s9 + $0x40] sm:$0xf]
        %v2826 = vld [vmem:[%s9 + $0x44] sm:$0xf]
        %v2827 = vld [vmem:[%s9 + $0x48] sm:$0xf]
        %v2828 = vld [vmem:[%s9 + $0x4c] sm:$0xf]
        %v2829 = vld [vmem:[%s9 + $0x50] sm:$0xf]
        %v2830 = vld [vmem:[%s9 + $0x54] sm:$0xf]
        %v2831 = vld [vmem:[%s9 + $0x58] sm:$0xf]
        %v2832 = vld [vmem:[%s9 + $0x5c] sm:$0xf]
        %v2833 = vld [vmem:[%s9 + $0x60] sm:$0xf]
        %v2834 = vld [vmem:[%s9 + $0x64] sm:$0xf]
        %v2835 = vld [vmem:[%s9 + $0x68] sm:$0xf]
        %v2836 = vld [vmem:[%s9 + $0x6c] sm:$0xf]
        %v2837 = vld [vmem:[%s9 + $0x70] sm:$0xf]
        %v2838 = vld [vmem:[%s9 + $0x74] sm:$0xf]
        %v2839 = vld [vmem:[%s9 + $0x78] sm:$0xf]
        %v2840 = vld [vmem:[%s9 + $0x7c] sm:$0xf]
        %v2841 = vld [vmem:[%s9 + $0x80] sm:$0xf]
        %v2842 = vld [vmem:[%s9 + $0x84] sm:$0xf]
        %v2843 = vld [vmem:[%s9 + $0x88] sm:$0xf]
        %v2844 = vld [vmem:[%s9 + $0x8c] sm:$0xf]
        %v2845 = vld [vmem:[%s9 + $0x90] sm:$0xf]
        %v2846 = vld [vmem:[%s9 + $0x94] sm:$0xf]
        %v2847 = vld [vmem:[%s9 + $0x98] sm:$0xf]
        %v2848 = vld [vmem:[%s9 + $0x9c] sm:$0xf]
        %v2849 = vld [vmem:[%s9 + $0xa0] sm:$0xf]
        %v2850 = vld [vmem:[%s9 + $0xa4] sm:$0xf]
        %v2851 = vld [vmem:[%s9 + $0xa8] sm:$0xf]
        %v2852 = vld [vmem:[%s9 + $0xac] sm:$0xf]
        %v2853 = vld [vmem:[%s9 + $0xb0] sm:$0xf]
        %v2854 = vld [vmem:[%s9 + $0xb4] sm:$0xf]
        %v2855 = vld [vmem:[%s9 + $0xb8] sm:$0xf]
        %v2856 = vld [vmem:[%s9 + $0xbc] sm:$0xf]
        %v2857 = vld [vmem:[%s9 + $0xc0] sm:$0xf]
        %v2858 = vld [vmem:[%s9 + $0xc4] sm:$0xf]
        %v2859 = vld [vmem:[%s9 + $0xc8] sm:$0xf]
        %v2860 = vld [vmem:[%s9 + $0xcc] sm:$0xf]
        %v2861 = vld [vmem:[%s9 + $0xd0] sm:$0xf]
        %v2862 = vld [vmem:[%s9 + $0xd4] sm:$0xf]
        %v2863 = vld [vmem:[%s9 + $0xd8] sm:$0xf]
        %v2864 = vld [vmem:[%s9 + $0xdc] sm:$0xf]
        %v2865 = vld [vmem:[%s9 + $0xe0] sm:$0xf]
        %v2866 = vld [vmem:[%s9 + $0xe4] sm:$0xf]
        %v2867 = vld [vmem:[%s9 + $0xe8] sm:$0xf]
        %v2868 = vld [vmem:[%s9 + $0xec] sm:$0xf]
        %v2869 = vld [vmem:[%s9 + $0xf0] sm:$0xf]
        %v2870 = vld [vmem:[%s9 + $0xf4] sm:$0xf]
        %v2871 = vld [vmem:[%s9 + $0xf8] sm:$0xf]
        %v2872 = vld [vmem:[%s9 + $0xfc] sm:$0xf]
        %v2873 = vld [vmem:[%s10] sm:$0x1]
        %v2938 = vunpack.c.l.b16 %v2809
        %v2939 = vunpack.c.l.b16 %v2810
        %v2940 = vunpack.c.l.b16 %v2811
        %v2941 = vunpack.c.l.b16 %v2812
        %v2942 = vunpack.c.l.b16 %v2813
        %v2943 = vunpack.c.l.b16 %v2814
        %v2944 = vunpack.c.l.b16 %v2815
        %v2945 = vunpack.c.l.b16 %v2816
        %v2946 = vunpack.c.l.b16 %v2817
        %v2947 = vunpack.c.l.b16 %v2818
        %v2948 = vunpack.c.l.b16 %v2819
        %v2949 = vunpack.c.l.b16 %v2820
        %v2950 = vunpack.c.l.b16 %v2821
        %v2951 = vunpack.c.l.b16 %v2822
        %v2952 = vunpack.c.l.b16 %v2823
        %v2953 = vunpack.c.l.b16 %v2824
        %v2954 = vunpack.c.l.b16 %v2825
        %v2955 = vunpack.c.l.b16 %v2826
        %v2956 = vunpack.c.l.b16 %v2827
        %v2957 = vunpack.c.l.b16 %v2828
        %v2958 = vunpack.c.l.b16 %v2829
        %v2959 = vunpack.c.l.b16 %v2830
        %v2960 = vunpack.c.l.b16 %v2831
        %v2961 = vunpack.c.l.b16 %v2832
        %v2962 = vunpack.c.l.b16 %v2833
        %v2963 = vunpack.c.l.b16 %v2834
        %v2964 = vunpack.c.l.b16 %v2835
        %v2965 = vunpack.c.l.b16 %v2836
        %v2966 = vunpack.c.l.b16 %v2837
        %v2967 = vunpack.c.l.b16 %v2838
        %v2968 = vunpack.c.l.b16 %v2839
        %v2969 = vunpack.c.l.b16 %v2840
        %v2970 = vunpack.c.l.b16 %v2841
        %v2971 = vunpack.c.l.b16 %v2842
        %v2972 = vunpack.c.l.b16 %v2843
        %v2973 = vunpack.c.l.b16 %v2844
        %v2974 = vunpack.c.l.b16 %v2845
        %v2975 = vunpack.c.l.b16 %v2846
        %v2976 = vunpack.c.l.b16 %v2847
        %v2977 = vunpack.c.l.b16 %v2848
        %v2978 = vunpack.c.l.b16 %v2849
        %v2979 = vunpack.c.l.b16 %v2850
        %v2980 = vunpack.c.l.b16 %v2851
        %v2981 = vunpack.c.l.b16 %v2852
        %v2982 = vunpack.c.l.b16 %v2853
        %v2983 = vunpack.c.l.b16 %v2854
        %v2984 = vunpack.c.l.b16 %v2855
        %v2985 = vunpack.c.l.b16 %v2856
        %v2986 = vunpack.c.l.b16 %v2857
        %v2987 = vunpack.c.l.b16 %v2858
        %v2988 = vunpack.c.l.b16 %v2859
        %v2989 = vunpack.c.l.b16 %v2860
        %v2990 = vunpack.c.l.b16 %v2861
        %v2991 = vunpack.c.l.b16 %v2862
        %v2992 = vunpack.c.l.b16 %v2863
        %v2993 = vunpack.c.l.b16 %v2864
        %v2994 = vunpack.c.l.b16 %v2865
        %v2995 = vunpack.c.l.b16 %v2866
        %v2996 = vunpack.c.l.b16 %v2867
        %v2997 = vunpack.c.l.b16 %v2868
        %v2998 = vunpack.c.l.b16 %v2869
        %v2999 = vunpack.c.l.b16 %v2870
        %v3000 = vunpack.c.l.b16 %v2871
        %v3001 = vunpack.c.l.b16 %v2872
        %v3002 = vpack.c.b16 %v2939, %v2938
        %v3003 = vpack.c.b16 %v2941, %v2940
        %v3004 = vpack.c.b16 %v2943, %v2942
        %v3005 = vpack.c.b16 %v2945, %v2944
        %v3006 = vpack.c.b16 %v2947, %v2946
        %v3007 = vpack.c.b16 %v2949, %v2948
        %v3008 = vpack.c.b16 %v2951, %v2950
        %v3009 = vpack.c.b16 %v2953, %v2952
        %v3010 = vpack.c.b16 %v2955, %v2954
        %v3011 = vpack.c.b16 %v2957, %v2956
        %v3012 = vpack.c.b16 %v2959, %v2958
        %v3013 = vpack.c.b16 %v2961, %v2960
        %v3014 = vpack.c.b16 %v2963, %v2962
        %v3015 = vpack.c.b16 %v2965, %v2964
        %v3016 = vpack.c.b16 %v2967, %v2966
        %v3017 = vpack.c.b16 %v2969, %v2968
        %v3018 = vpack.c.b16 %v2971, %v2970
        %v3019 = vpack.c.b16 %v2973, %v2972
        %v3020 = vpack.c.b16 %v2975, %v2974
        %v3021 = vpack.c.b16 %v2977, %v2976
        %v3022 = vpack.c.b16 %v2979, %v2978
        %v3023 = vpack.c.b16 %v2981, %v2980
        %v3024 = vpack.c.b16 %v2983, %v2982
        %v3025 = vpack.c.b16 %v2985, %v2984
        %v3026 = vpack.c.b16 %v2987, %v2986
        %v3027 = vpack.c.b16 %v2989, %v2988
        %v3028 = vpack.c.b16 %v2991, %v2990
        %v3029 = vpack.c.b16 %v2993, %v2992
        %v3030 = vpack.c.b16 %v2995, %v2994
        %v3031 = vpack.c.b16 %v2997, %v2996
        %v3032 = vpack.c.b16 %v2999, %v2998
        %v3033 = vpack.c.b16 %v3001, %v3000
        %3066 = vmatprep.subr.bf16.mxu0 0
        %3067 = vmatpush1.bf16.msra.mxu0 %v3002
        %3068 = vmatprep.subr.bf16.mxu0 0
        %3069 = vmatpush1.bf16.msra.mxu0 %v3003
        %3070 = vmatprep.subr.bf16.mxu0 0
        %3071 = vmatpush1.bf16.msra.mxu0 %v3004
        %3072 = vmatprep.subr.bf16.mxu0 0
        %3073 = vmatpush1.bf16.msra.mxu0 %v3005
        %3074 = vmatprep.subr.bf16.mxu0 0
        %3075 = vmatpush1.bf16.msra.mxu0 %v3006
        %3076 = vmatprep.subr.bf16.mxu0 0
        %3077 = vmatpush1.bf16.msra.mxu0 %v3007
        %3078 = vmatprep.subr.bf16.mxu0 0
        %3079 = vmatpush1.bf16.msra.mxu0 %v3008
        %3080 = vmatprep.subr.bf16.mxu0 0
        %3081 = vmatpush1.bf16.msra.mxu0 %v3009
        %3082 = vmatprep.subr.bf16.mxu0 0
        %3083 = vmatpush1.bf16.msra.mxu0 %v3010
        %3084 = vmatprep.subr.bf16.mxu0 0
        %3085 = vmatpush1.bf16.msra.mxu0 %v3011
        %3086 = vmatprep.subr.bf16.mxu0 0
        %3087 = vmatpush1.bf16.msra.mxu0 %v3012
        %3088 = vmatprep.subr.bf16.mxu0 0
        %3089 = vmatpush1.bf16.msra.mxu0 %v3013
        %3090 = vmatprep.subr.bf16.mxu0 0
        %3091 = vmatpush1.bf16.msra.mxu0 %v3014
        %3092 = vmatprep.subr.bf16.mxu0 0
        %3093 = vmatpush1.bf16.msra.mxu0 %v3015
        %3094 = vmatprep.subr.bf16.mxu0 0
        %3095 = vmatpush1.bf16.msra.mxu0 %v3016
        %3096 = vmatprep.subr.bf16.mxu0 0
        %3097 = vmatpush1.bf16.msra.mxu0 %v3017
        %3098 = vmatprep.mubr.bf16.mxu0 %v2791
        %3099 = vmatmul.mubr.bf16.gmra.mrb[0].mxu0 %v2783
        %v3100 = vpop.f32.mrb[0].mxu0
        %v3101 = vadd.f32 %v2873, %v3100
        %v3102 = vpop.f32.mrb[0].mxu0
        %v3103 = vpop.f32.mrb[0].mxu0
        %v3104 = vpop.f32.mrb[0].mxu0
        %3105 = vdwg.mxu0
        %3106 = vmatprep.subr.bf16.mxu0 0
        %3107 = vmatpush1.bf16.msra.mxu0 %v3018
        %3108 = vmatprep.subr.bf16.mxu0 0
        %3109 = vmatpush1.bf16.msra.mxu0 %v3019
        %3110 = vmatprep.subr.bf16.mxu0 0
        %3111 = vmatpush1.bf16.msra.mxu0 %v3020
        %3112 = vmatprep.subr.bf16.mxu0 0
        %3113 = vmatpush1.bf16.msra.mxu0 %v3021
        %3114 = vmatprep.subr.bf16.mxu0 0
        %3115 = vmatpush1.bf16.msra.mxu0 %v3022
        %3116 = vmatprep.subr.bf16.mxu0 0
        %3117 = vmatpush1.bf16.msra.mxu0 %v3023
        %3118 = vmatprep.subr.bf16.mxu0 0
        %3119 = vmatpush1.bf16.msra.mxu0 %v3024
        %3120 = vmatprep.subr.bf16.mxu0 0
        %3121 = vmatpush1.bf16.msra.mxu0 %v3025
        %3122 = vmatprep.subr.bf16.mxu0 0
        %3123 = vmatpush1.bf16.msra.mxu0 %v3026
        %3124 = vmatprep.subr.bf16.mxu0 0
        %3125 = vmatpush1.bf16.msra.mxu0 %v3027
        %3126 = vmatprep.subr.bf16.mxu0 0
        %3127 = vmatpush1.bf16.msra.mxu0 %v3028
        %3128 = vmatprep.subr.bf16.mxu0 0
        %3129 = vmatpush1.bf16.msra.mxu0 %v3029
        %3130 = vmatprep.subr.bf16.mxu0 0
        %3131 = vmatpush1.bf16.msra.mxu0 %v3030
        %3132 = vmatprep.subr.bf16.mxu0 0
        %3133 = vmatpush1.bf16.msra.mxu0 %v3031
        %3134 = vmatprep.subr.bf16.mxu0 0
        %3135 = vmatpush1.bf16.msra.mxu0 %v3032
        %3136 = vmatprep.subr.bf16.mxu0 0
        %3137 = vmatpush1.bf16.msra.mxu0 %v3033
        %3138 = vmatprep.mubr.bf16.mxu0 %v2807
        %3139 = vmatmul.mubr.bf16.gmra.mrb[0].mxu0 %v2799
        %v3140 = vpop.f32.mrb[0].mxu0
        %v3141 = vadd.f32 %v3101, %v3140
        %v3142 = vpop.f32.mrb[0].mxu0
        %v3143 = vpop.f32.mrb[0].mxu0
        %v3144 = vpop.f32.mrb[0].mxu0
        %3145 = vdwg.mxu0
        %v3146 = vmax.f32 %v3141, 0.0
        %v3147 = vpack.c.bf16 %v3146, %v3146
        %v3148 = vld [vmem:[%s11] sm:$0xf]
        %v3149 = vld [vmem:[%s11 + $0x4] sm:$0xf]
        %v3150 = vld [vmem:[%s11 + $0x8] sm:$0xf]
        %v3151 = vld [vmem:[%s11 + $0xc] sm:$0xf]
        %v3152 = vld [vmem:[%s11 + $0x10] sm:$0xf]
        %v3153 = vld [vmem:[%s11 + $0x14] sm:$0xf]
        %v3154 = vld [vmem:[%s11 + $0x18] sm:$0xf]
        %v3155 = vld [vmem:[%s11 + $0x1c] sm:$0xf]
        %v3156 = vld [vmem:[%s12] sm:$0x1]
        %v3165 = vunpack.c.l.b16 %v3148
        %v3166 = vunpack.c.l.b16 %v3149
        %v3167 = vunpack.c.l.b16 %v3150
        %v3168 = vunpack.c.l.b16 %v3151
        %v3169 = vunpack.c.l.b16 %v3152
        %v3170 = vunpack.c.l.b16 %v3153
        %v3171 = vunpack.c.l.b16 %v3154
        %v3172 = vunpack.c.l.b16 %v3155
        %v3173 = vpack.c.b16 %v3166, %v3165
        %v3174 = vpack.c.b16 %v3168, %v3167
        %v3175 = vpack.c.b16 %v3170, %v3169
        %v3176 = vpack.c.b16 %v3172, %v3171
        %v3182 = vsel %vm620, %v3147, 0
        %3184 = vmatprep.subr.bf16.mxu0 0
        %3185 = vmatpush1.bf16.msra.mxu0 %v3173
        %3186 = vmatprep.subr.bf16.mxu0 0
        %3187 = vmatpush1.bf16.msra.mxu0 %v3174
        %3188 = vmatprep.subr.bf16.mxu0 0
        %3189 = vmatpush1.bf16.msra.mxu0 %v3175
        %3190 = vmatprep.subr.bf16.mxu0 0
        %3191 = vmatpush1.bf16.msra.mxu0 %v3176
        %3192 = vmatprep.subr.bf16.mxu0 0
        %3193 = vmatpush1.bf16.msra.mxu0 0
        %3194 = vmatprep.subr.bf16.mxu0 0
        %3195 = vmatpush1.bf16.msra.mxu0 0
        %3196 = vmatprep.subr.bf16.mxu0 0
        %3197 = vmatpush1.bf16.msra.mxu0 0
        %3198 = vmatprep.subr.bf16.mxu0 0
        %3199 = vmatpush1.bf16.msra.mxu0 0
        %3200 = vmatprep.subr.bf16.mxu0 0
        %3201 = vmatpush1.bf16.msra.mxu0 0
        %3202 = vmatprep.subr.bf16.mxu0 0
        %3203 = vmatpush1.bf16.msra.mxu0 0
        %3204 = vmatprep.subr.bf16.mxu0 0
        %3205 = vmatpush1.bf16.msra.mxu0 0
        %3206 = vmatprep.subr.bf16.mxu0 0
        %3207 = vmatpush1.bf16.msra.mxu0 0
        %3208 = vmatprep.subr.bf16.mxu0 0
        %3209 = vmatpush1.bf16.msra.mxu0 0
        %3210 = vmatprep.subr.bf16.mxu0 0
        %3211 = vmatpush1.bf16.msra.mxu0 0
        %3212 = vmatprep.subr.bf16.mxu0 0
        %3213 = vmatpush1.bf16.msra.mxu0 0
        %3214 = vmatprep.subr.bf16.mxu0 0
        %3215 = vmatpush1.bf16.msra.mxu0 0
        %3216 = vmatprep.mubr.bf16.mxu0 0
        %3217 = vmatmul.mubr.bf16.gmra.mrb[0].mxu0 %v3182
        %v3218 = vpop.f32.mrb[0].mxu0
        %v3219 = vadd.f32 %v3156, %v3218
        %v3220 = vpop.f32.mrb[0].mxu0
        %v3221 = vpop.f32.mrb[0].mxu0
        %v3222 = vpop.f32.mrb[0].mxu0
        %3223 = vdwg.mxu0
        %v3224 = vmax.f32 %v3219, 0.0
        %v3225 = vpack.c.bf16 %v3224, %v3224
        %v3226 = vld [vmem:[%s13] sm:$0xf]
        %v3227 = vld [vmem:[%s13 + $0x4] sm:$0xf]
        %v3228 = vld [vmem:[%s13 + $0x8] sm:$0xf]
        %v3229 = vld [vmem:[%s13 + $0xc] sm:$0xf]
        %v3230 = vld [vmem:[%s13 + $0x10] sm:$0xf]
        %v3231 = vld [vmem:[%s13 + $0x14] sm:$0xf]
        %v3232 = vld [vmem:[%s13 + $0x18] sm:$0xf]
        %v3233 = vld [vmem:[%s13 + $0x1c] sm:$0xf]
        %v3234 = vld [vmem:[%s14] sm:$0x1]
        %v3243 = vunpack.c.l.b16 %v3226
        %v3244 = vunpack.c.l.b16 %v3227
        %v3245 = vunpack.c.l.b16 %v3228
        %v3246 = vunpack.c.l.b16 %v3229
        %v3247 = vunpack.c.l.b16 %v3230
        %v3248 = vunpack.c.l.b16 %v3231
        %v3249 = vunpack.c.l.b16 %v3232
        %v3250 = vunpack.c.l.b16 %v3233
        %v3251 = vpack.c.b16 %v3244, %v3243
        %v3252 = vpack.c.b16 %v3246, %v3245
        %v3253 = vpack.c.b16 %v3248, %v3247
        %v3254 = vpack.c.b16 %v3250, %v3249
        %v3260 = vsel %vm620, %v3225, 0
        %3262 = vmatprep.subr.bf16.mxu0 0
        %3263 = vmatpush1.bf16.msra.mxu0 %v3251
        %3264 = vmatprep.subr.bf16.mxu0 0
        %3265 = vmatpush1.bf16.msra.mxu0 %v3252
        %3266 = vmatprep.subr.bf16.mxu0 0
        %3267 = vmatpush1.bf16.msra.mxu0 %v3253
        %3268 = vmatprep.subr.bf16.mxu0 0
        %3269 = vmatpush1.bf16.msra.mxu0 %v3254
        %3270 = vmatprep.subr.bf16.mxu0 0
        %3271 = vmatpush1.bf16.msra.mxu0 0
        %3272 = vmatprep.subr.bf16.mxu0 0
        %3273 = vmatpush1.bf16.msra.mxu0 0
        %3274 = vmatprep.subr.bf16.mxu0 0
        %3275 = vmatpush1.bf16.msra.mxu0 0
        %3276 = vmatprep.subr.bf16.mxu0 0
        %3277 = vmatpush1.bf16.msra.mxu0 0
        %3278 = vmatprep.subr.bf16.mxu0 0
        %3279 = vmatpush1.bf16.msra.mxu0 0
        %3280 = vmatprep.subr.bf16.mxu0 0
        %3281 = vmatpush1.bf16.msra.mxu0 0
        %3282 = vmatprep.subr.bf16.mxu0 0
        %3283 = vmatpush1.bf16.msra.mxu0 0
        %3284 = vmatprep.subr.bf16.mxu0 0
        %3285 = vmatpush1.bf16.msra.mxu0 0
        %3286 = vmatprep.subr.bf16.mxu0 0
        %3287 = vmatpush1.bf16.msra.mxu0 0
        %3288 = vmatprep.subr.bf16.mxu0 0
        %3289 = vmatpush1.bf16.msra.mxu0 0
        %3290 = vmatprep.subr.bf16.mxu0 0
        %3291 = vmatpush1.bf16.msra.mxu0 0
        %3292 = vmatprep.subr.bf16.mxu0 0
        %3293 = vmatpush1.bf16.msra.mxu0 0
        %3294 = vmatprep.mubr.bf16.mxu0 0
        %3295 = vmatmul.mubr.bf16.gmra.mrb[0].mxu0 %v3260
        %v3296 = vpop.f32.mrb[0].mxu0
        %v3297 = vadd.f32 %v3234, %v3296
        %v3298 = vpop.f32.mrb[0].mxu0
        %v3299 = vpop.f32.mrb[0].mxu0
        %v3300 = vpop.f32.mrb[0].mxu0
        %3301 = vdwg.mxu0
        %3302 = vst [vmem:[%s486] sm:$0x1] %v3297
        %s3303 = sand.u32 %s357, 1
        %s3304 = scalar_lea.sflag [#allocation3], %s3303
        %s3305 = sand.u32 %s357, 1
        %s3306 = scalar_lea.vmem [#allocation2], %s3305
        // Predicated region
        $region81: #{jumping_qnetwork_forward.1} parent=79 // pred_check
          %p3307 = pneg %p367
        $region82: #{jumping_qnetwork_forward.1} parent=79 // pred_check_branch
          %3309 = sbr.rel (%p3307) target = $region84
        $region83: #{jumping_qnetwork_forward.1} parent=79 // pred_region
          %s3311 = ssub.s32 16, 16
          %3312 = vsyncadd %s3304, %s3311
          %s3313 = smul.addr %s29, 16
          %s3314 = scalar_lea.hbm %s15, %s3313
          %s3316 = sshll.u32 %s3306, 4
          %s3317 = int_to_ptr.vmem [resolvable:$true] %s3316
          %3319 = dma.vmem_to_hbm [thread:$0]  %s3317, 16, %s3314, %s3304
        $region84: #{jumping_qnetwork_forward.1} parent=79 // pred_fallthru
          _
      $region80: #{jumping_qnetwork_forward.1} parent=5 // pred_fallthru
        _
      %p3320 = scmp.le.s32.totalorder 2, %s24
      // Predicated region
      $region85: #{jumping_qnetwork_forward.1} parent=5 // pred_check
        %p3321 = pneg %p3320
      $region86: #{jumping_qnetwork_forward.1} parent=5 // pred_check_branch
        %3323 = sbr.rel (%p3321) target = $region88
      $region87: #{jumping_qnetwork_forward.1} parent=5 // pred_region
        %s3324 = ssub.s32 %s24, 2
        // Predicated region
        $region89: #{jumping_qnetwork_forward.1} parent=87 // pred_check
          %p3325 = pneg %p373
        $region90: #{jumping_qnetwork_forward.1} parent=87 // pred_check_branch
          %3327 = sbr.rel (%p3325) target = $region92
        $region91: #{jumping_qnetwork_forward.1} parent=87 // pred_region
          %s3328 = sand.u32 %s358, 1
          %s3329 = scalar_lea.sflag [#allocation3], %s3328
          %s3330 = sand.u32 %s358, 1
          %s3331 = scalar_lea.vmem [#allocation2], %s3330
          %3332 = dma.done %s3329, 16
        $region92: #{jumping_qnetwork_forward.1} parent=87 // pred_fallthru
          _
      $region88: #{jumping_qnetwork_forward.1} parent=5 // pred_fallthru
        _
    $region6: #{jumping_qnetwork_forward.1} parent=1 // loop_footer
      %s28 = sadd.s32 1, %s24
    $region7: #{jumping_qnetwork_forward.1} parent=1 // loop_footer_branch
      %23 = sbr.rel target = $region3
    $region8: #{jumping_qnetwork_forward.1} parent=1 // loop_exit
      _
    %3333 = vsyncpa [#allocation3], 1
    %s3334 = scalar_lea.sflag [#allocation3], 1
    %3335 = vsyncpa %s3334, 1

</llo_original>
